<compile_context>
chip_gen: v5e
topology: v5e:2x2
jax: 0.10.0
libtpu: 0.0.40
codegen_flags: <defaults>
</compile_context>

<pallas_src>
import jax
import jax.numpy as jnp
import numpy as np
from jax import lax
from jax.experimental import pallas as pl
from jax.experimental.pallas import tpu as pltpu

# ---------------- model hyper-parameters (small but shape-consistent) --------
B = 2                      # batch
IN_DIM = 32                # in_dim
IN_CHANS = 16              # in_chans == N, must be a perfect square
HH = WW = 4                # h = w = sqrt(in_chans)
N = IN_CHANS
C = 64                     # latent_dim
NUM_HEADS = 4
D_HEAD = C // NUM_HEADS
SCALE = D_HEAD ** -0.5     # used by both spatial and cross attention
RATIO = 32
CR = C // RATIO            # ChannelAttention fc bottleneck
NCLS = 2                   # n_classes
LN_EPS = 1e-5
BN_EPS = 1e-5
NPARAMS = 28


# ---------------- small math helpers (traced inside the kernel) --------------
def _mm(a, b):             # a @ b : single-pass bf16 MXU matmul, f32 accumulate
    return lax.dot_general(a.astype(jnp.bfloat16), b.astype(jnp.bfloat16),
                           (((1,), (0,)), ((), ())),
                           preferred_element_type=jnp.float32)


def _mm_nt(a, b):          # a @ b.T
    return lax.dot_general(a.astype(jnp.bfloat16), b.astype(jnp.bfloat16),
                           (((1,), (1,)), ((), ())),
                           preferred_element_type=jnp.float32)


def _layernorm(x, w, b):
    mu = jnp.mean(x, axis=-1, keepdims=True)
    xc = x - mu
    var = jnp.mean(xc * xc, axis=-1, keepdims=True)
    return xc * lax.rsqrt(var + LN_EPS) * w + b


def _softmax(x, recip):
    m = jnp.max(x, axis=-1, keepdims=True)
    e = jnp.exp(x - m)
    return e * recip(jnp.sum(e, axis=-1, keepdims=True))


def _gelu(x):
    # TODO(synk): PyTorch nn.GELU defaults to the exact erf form; erf has no
    # guaranteed Mosaic lowering, so the tanh approximation is used here.
    c = 0.7978845608028654  # sqrt(2/pi)
    return 0.5 * x * (1.0 + jnp.tanh(c * (x + 0.044715 * x * x * x)))


# ---------------- per-sample forward (shared by kernel and JAX reference) ----
def _forward_single(x, p, recip):
    """Forward of one sample.  Entries of `p` may be VMEM refs (kernel) or
    plain arrays (reference); each is loaded/sliced at its point of use."""
    (w_embed, b_embed, ln0_w, ln0_b, cls_tok,
     n1_w, n1_b, w_sq, w_sk, w_sv, w_sproj, b_sproj,
     n2_w, n2_b, shift_mats, w_dw, b_dw, w_fc1, b_fc1, w_fc2,
     w_cq, w_ckv, w_cproj, b_cproj, n3_w, n3_b,
     w_cls, b_cls) = p

    # ---- embed: Linear -> ReLU -> LayerNorm ---------------------------------
    h = jnp.maximum(_mm(x, w_embed[...]) + b_embed[...], 0.0)
    h = _layernorm(h, ln0_w[...], ln0_b[...])                 # (N, C)

    # ---- spatial attention --------------------------------------------------
    # Only the cls row of h_s ever reaches the classifier, so only the cls
    # query row is evaluated; keys/values still use all N+1 rows.
    cls = cls_tok[...]                                        # (1, C)
    hs_n = _layernorm(jnp.concatenate([cls, h], axis=0),
                      n1_w[...], n1_b[...])                   # (N+1, C)
    q_in = hs_n[0:1, :]                                       # cls query row
    s_out = b_sproj[...]                                      # (1, C) broadcasts
    for hd in range(NUM_HEADS):
        qh = _mm(q_in, w_sq[hd])                              # (1, D)
        kh = _mm(hs_n, w_sk[hd])                              # (N+1, D)
        vh = _mm(hs_n, w_sv[hd])                              # (N+1, D)
        attn = _softmax(_mm_nt(qh, kh) * SCALE, recip)        # (1, N+1)
        # fold per-head output proj: concat_h(o_h) @ W == sum_h o_h @ W[h rows]
        s_out = s_out + _mm(_mm(attn, vh), w_sproj[hd])
    cls_s = cls + s_out                                       # h_s[0] after residual

    # ---- h_c = h + ChannelAttention(norm2(h), H, W) -------------------------
    hn = _layernorm(h, n2_w[...], n2_b[...])                  # (N, C)
    # depthwise 3x3 conv in the flattened (N = H*W) token space: each tap is a
    # precomputed shift + zero-padding-mask matrix (MXU) times its per-channel
    # weight row.
    conv = jnp.zeros((N, C), jnp.float32) + b_dw[...]
    for kk in range(9):
        conv = conv + _mm(shift_mats[kk], hn) * w_dw[kk:kk + 1, :]
    pooled = jnp.mean(conv, axis=0, keepdims=True)            # AdaptiveAvgPool2d(1)
    g1 = _gelu(_mm(pooled, w_fc1[...]) + b_fc1[...])          # (1, CR); BN folded
    gate = recip(1.0 + jnp.exp(-_mm(g1, w_fc2[...])))         # sigmoid, (1, C)
    h_c = h + conv * gate                                     # (N, C)

    # ---- cross attention: query = cls row of h_s; keys = even token rows of
    #      _kv(h_c), values = odd rows (PyTorch reshape(B, N//2, 2, heads, D)) -
    row_i = lax.broadcasted_iota(jnp.int32, (N // 2, N), 0)
    col_i = lax.broadcasted_iota(jnp.int32, (N // 2, N), 1)
    hc_even = _mm((col_i == 2 * row_i).astype(jnp.float32), h_c)      # (N/2, C)
    hc_odd = _mm((col_i == 2 * row_i + 1).astype(jnp.float32), h_c)   # (N/2, C)
    c_out = b_cproj[...]                                      # (1, C)
    for hd in range(NUM_HEADS):
        qh = _mm(cls_s, w_cq[hd])                             # (1, D)
        kh = _mm(hc_even, w_ckv[hd])                          # (N/2, D)
        vh = _mm(hc_odd, w_ckv[hd])                           # (N/2, D)
        attn = _softmax(_mm_nt(qh, kh) * SCALE, recip)        # (1, N/2)
        c_out = c_out + _mm(_mm(attn, vh), w_cproj[hd])
    c_out = _layernorm(c_out, n3_w[...], n3_b[...])           # norm3, cls row
    return _mm(c_out, w_cls[...]) + b_cls[...]                # (1, NCLS)


# ---------------- Pallas kernel -----------------------------------------------
def nciemil_kernel(*refs):
    # refs = (x_ref, *param_refs, o_ref); one grid step == one batch element.
    x_ref = refs[0]
    params = refs[1:1 + NPARAMS]
    o_ref = refs[1 + NPARAMS]

    def approx_recip(v):
        return pl.reciprocal(v, approx=True)   # EUP slot, off the VALU path

    o_ref[0] = _forward_single(x_ref[0], params, approx_recip)


def nciemil_forward(x, params):
    bsz = x.shape[0]
    in_specs = [pl.BlockSpec((1, N, IN_DIM), lambda b: (b, 0, 0))]
    for prm in params:
        in_specs.append(
            pl.BlockSpec(prm.shape, lambda b, nd=prm.ndim: (0,) * nd))
    out = pl.pallas_call(
        nciemil_kernel,
        grid=(bsz,),
        in_specs=in_specs,
        out_specs=pl.BlockSpec((1, 1, NCLS), lambda b: (b, 0, 0)),
        out_shape=jax.ShapeDtypeStruct((bsz, 1, NCLS), jnp.float32),
        compiler_params=pltpu.CompilerParams(
            dimension_semantics=("parallel",)),
    )(x, *params)
    return out[:, 0, :]


# ---------------- pure-JAX reference (same math, no Pallas) -------------------
def nciemil_reference(x, params):
    def plain_recip(v):
        return 1.0 / v
    return jax.vmap(
        lambda xb: _forward_single(xb, params, plain_recip)[0])(x)


# ---------------- deterministic synthetic parameters --------------------------
def init_params(key):
    ks = jax.random.split(key, 16)
    std = 0.02

    def nrm(k, shape):
        return std * jax.random.normal(k, shape, dtype=jnp.float32)

    def col_heads(w):      # (C, C) -> (heads, C, D): per-head output columns
        return jnp.stack(
            [w[:, h * D_HEAD:(h + 1) * D_HEAD] for h in range(NUM_HEADS)], 0)

    def row_heads(w):      # (C, C) -> (heads, D, C): per-head input rows
        return jnp.stack(
            [w[h * D_HEAD:(h + 1) * D_HEAD, :] for h in range(NUM_HEADS)], 0)

    ones = jnp.ones((1, C), jnp.float32)
    zeros = jnp.zeros((1, C), jnp.float32)

    # embed: Linear(in_dim, C) -> ReLU -> LayerNorm(C)
    w_embed = nrm(ks[0], (IN_DIM, C))
    b_embed = nrm(ks[1], (1, C))
    ln0_w, ln0_b = ones, zeros
    cls_tok = nrm(ks[2], (1, C))

    # norm1 + SpatialAttention (qkv_bias=False), weights pre-split per head
    n1_w, n1_b = ones, zeros
    w_qkv = nrm(ks[3], (C, 3 * C))          # stored as x @ W (pre-transposed)
    w_sq = col_heads(w_qkv[:, 0:C])
    w_sk = col_heads(w_qkv[:, C:2 * C])
    w_sv = col_heads(w_qkv[:, 2 * C:3 * C])
    w_sproj = row_heads(nrm(ks[4], (C, C)))
    b_sproj = nrm(ks[5], (1, C))

    # norm2 + ChannelAttention
    n2_w, n2_b = ones, zeros
    w_dw = nrm(ks[6], (9, C))               # depthwise 3x3; row = (dy+1)*3+(dx+1)
    b_dw = nrm(ks[7], (1, C))
    # per-tap shift + zero-padding-mask matrices for the flattened token space
    smat = np.zeros((9, N, N), np.float32)
    for kk in range(9):
        dy, dx = kk // 3 - 1, kk % 3 - 1
        for r in range(N):
            y, xx = r // WW, r % WW
            if 0 <= y + dy < HH and 0 <= xx + dx < WW:
                smat[kk, r, (y + dy) * WW + (xx + dx)] = 1.0
    shift_mats = jnp.asarray(smat)
    # fc: Conv1x1(C->CR, no bias) + BatchNorm2d(CR, eval) folded + GELU + Conv1x1(CR->C)
    bn_gamma = jnp.ones((CR,), jnp.float32)
    bn_beta = jnp.zeros((CR,), jnp.float32)
    bn_mean = jnp.zeros((CR,), jnp.float32)
    bn_var = jnp.ones((CR,), jnp.float32)
    g = bn_gamma * lax.rsqrt(bn_var + BN_EPS)
    w_fc1 = nrm(ks[8], (C, CR)) * g[None, :]
    b_fc1 = (bn_beta - bn_mean * g)[None, :]
    w_fc2 = nrm(ks[9], (CR, C))

    # cross attention (_q, _kv bias=False; _proj has bias), pre-split per head
    w_cq = col_heads(nrm(ks[10], (C, C)))
    w_ckv = col_heads(nrm(ks[11], (C, C)))
    w_cproj = row_heads(nrm(ks[12], (C, C)))
    b_cproj = nrm(ks[13], (1, C))
    n3_w, n3_b = ones, zeros

    # classifier
    w_cls = nrm(ks[14], (C, NCLS))
    b_cls = nrm(ks[15], (1, NCLS))

    return (w_embed, b_embed, ln0_w, ln0_b, cls_tok,
            n1_w, n1_b, w_sq, w_sk, w_sv, w_sproj, b_sproj,
            n2_w, n2_b, shift_mats, w_dw, b_dw, w_fc1, b_fc1, w_fc2,
            w_cq, w_ckv, w_cproj, b_cproj, n3_w, n3_b,
            w_cls, b_cls)


if __name__ == "__main__":
    key = jax.random.PRNGKey(0)
    kx, kp = jax.random.split(key)
    x = jax.random.normal(kx, (B, N, IN_DIM), dtype=jnp.float32)
    params = init_params(kp)
    assert len(params) == NPARAMS

    fwd = jax.jit(nciemil_forward)
    out = jax.block_until_ready(fwd(x, params))
    assert out.shape == (B, NCLS), out.shape

    # pure-JAX reference sharing the same math (only the approx reciprocal in
    # the softmax/sigmoid denominators differs) -> validates the lowering.
    ref = jax.block_until_ready(jax.jit(nciemil_reference)(x, params))
    err = float(np.max(np.abs(np.asarray(out) - np.asarray(ref))))
    assert err < 1e-2, f"mismatch vs reference: {err}"
    print("KERNEL_OK")
</pallas_src>

<mosaic_0001>
module attributes {stable_mosaic.version = 11 : i64} {
  func.func @nciemil_kernel(%arg0: i32, %arg1: memref<1x16x32xf32, #tpu.memory_space<vmem>>, %arg2: memref<32x64xf32, #tpu.memory_space<vmem>>, %arg3: memref<1x64xf32, #tpu.memory_space<vmem>>, %arg4: memref<1x64xf32, #tpu.memory_space<vmem>>, %arg5: memref<1x64xf32, #tpu.memory_space<vmem>>, %arg6: memref<1x64xf32, #tpu.memory_space<vmem>>, %arg7: memref<1x64xf32, #tpu.memory_space<vmem>>, %arg8: memref<1x64xf32, #tpu.memory_space<vmem>>, %arg9: memref<4x64x16xf32, #tpu.memory_space<vmem>>, %arg10: memref<4x64x16xf32, #tpu.memory_space<vmem>>, %arg11: memref<4x64x16xf32, #tpu.memory_space<vmem>>, %arg12: memref<4x16x64xf32, #tpu.memory_space<vmem>>, %arg13: memref<1x64xf32, #tpu.memory_space<vmem>>, %arg14: memref<1x64xf32, #tpu.memory_space<vmem>>, %arg15: memref<1x64xf32, #tpu.memory_space<vmem>>, %arg16: memref<9x16x16xf32, #tpu.memory_space<vmem>>, %arg17: memref<9x64xf32, #tpu.memory_space<vmem>>, %arg18: memref<1x64xf32, #tpu.memory_space<vmem>>, %arg19: memref<64x2xf32, #tpu.memory_space<vmem>>, %arg20: memref<1x2xf32, #tpu.memory_space<vmem>>, %arg21: memref<2x64xf32, #tpu.memory_space<vmem>>, %arg22: memref<4x64x16xf32, #tpu.memory_space<vmem>>, %arg23: memref<4x64x16xf32, #tpu.memory_space<vmem>>, %arg24: memref<4x16x64xf32, #tpu.memory_space<vmem>>, %arg25: memref<1x64xf32, #tpu.memory_space<vmem>>, %arg26: memref<1x64xf32, #tpu.memory_space<vmem>>, %arg27: memref<1x64xf32, #tpu.memory_space<vmem>>, %arg28: memref<64x2xf32, #tpu.memory_space<vmem>>, %arg29: memref<1x2xf32, #tpu.memory_space<vmem>>, %arg30: memref<1x1x2xf32, #tpu.memory_space<vmem>>) attributes {dimension_semantics = [#tpu.dimension_semantics<parallel>], iteration_bounds = array<i64: 2>, scalar_prefetch = 0 : i64, scratch_operands = 0 : i64, tpu.core_type = #tpu.core_type<tc>, window_params = [{transform_indices = @transform_0, window_bounds = array<i64: 1, 16, 32>}, {pipeline_mode = #tpu.pipeline_mode<synchronous>, transform_indices = @transform_1, window_bounds = array<i64: 32, 64>}, {pipeline_mode = #tpu.pipeline_mode<synchronous>, transform_indices = @transform_2, window_bounds = array<i64: 1, 64>}, {pipeline_mode = #tpu.pipeline_mode<synchronous>, transform_indices = @transform_3, window_bounds = array<i64: 1, 64>}, {pipeline_mode = #tpu.pipeline_mode<synchronous>, transform_indices = @transform_4, window_bounds = array<i64: 1, 64>}, {pipeline_mode = #tpu.pipeline_mode<synchronous>, transform_indices = @transform_5, window_bounds = array<i64: 1, 64>}, {pipeline_mode = #tpu.pipeline_mode<synchronous>, transform_indices = @transform_6, window_bounds = array<i64: 1, 64>}, {pipeline_mode = #tpu.pipeline_mode<synchronous>, transform_indices = @transform_7, window_bounds = array<i64: 1, 64>}, {pipeline_mode = #tpu.pipeline_mode<synchronous>, transform_indices = @transform_8, window_bounds = array<i64: 4, 64, 16>}, {pipeline_mode = #tpu.pipeline_mode<synchronous>, transform_indices = @transform_9, window_bounds = array<i64: 4, 64, 16>}, {pipeline_mode = #tpu.pipeline_mode<synchronous>, transform_indices = @transform_10, window_bounds = array<i64: 4, 64, 16>}, {pipeline_mode = #tpu.pipeline_mode<synchronous>, transform_indices = @transform_11, window_bounds = array<i64: 4, 16, 64>}, {pipeline_mode = #tpu.pipeline_mode<synchronous>, transform_indices = @transform_12, window_bounds = array<i64: 1, 64>}, {pipeline_mode = #tpu.pipeline_mode<synchronous>, transform_indices = @transform_13, window_bounds = array<i64: 1, 64>}, {pipeline_mode = #tpu.pipeline_mode<synchronous>, transform_indices = @transform_14, window_bounds = array<i64: 1, 64>}, {pipeline_mode = #tpu.pipeline_mode<synchronous>, transform_indices = @transform_15, window_bounds = array<i64: 9, 16, 16>}, {pipeline_mode = #tpu.pipeline_mode<synchronous>, transform_indices = @transform_16, window_bounds = array<i64: 9, 64>}, {pipeline_mode = #tpu.pipeline_mode<synchronous>, transform_indices = @transform_17, window_bounds = array<i64: 1, 64>}, {pipeline_mode = #tpu.pipeline_mode<synchronous>, transform_indices = @transform_18, window_bounds = array<i64: 64, 2>}, {pipeline_mode = #tpu.pipeline_mode<synchronous>, transform_indices = @transform_19, window_bounds = array<i64: 1, 2>}, {pipeline_mode = #tpu.pipeline_mode<synchronous>, transform_indices = @transform_20, window_bounds = array<i64: 2, 64>}, {pipeline_mode = #tpu.pipeline_mode<synchronous>, transform_indices = @transform_21, window_bounds = array<i64: 4, 64, 16>}, {pipeline_mode = #tpu.pipeline_mode<synchronous>, transform_indices = @transform_22, window_bounds = array<i64: 4, 64, 16>}, {pipeline_mode = #tpu.pipeline_mode<synchronous>, transform_indices = @transform_23, window_bounds = array<i64: 4, 16, 64>}, {pipeline_mode = #tpu.pipeline_mode<synchronous>, transform_indices = @transform_24, window_bounds = array<i64: 1, 64>}, {pipeline_mode = #tpu.pipeline_mode<synchronous>, transform_indices = @transform_25, window_bounds = array<i64: 1, 64>}, {pipeline_mode = #tpu.pipeline_mode<synchronous>, transform_indices = @transform_26, window_bounds = array<i64: 1, 64>}, {pipeline_mode = #tpu.pipeline_mode<synchronous>, transform_indices = @transform_27, window_bounds = array<i64: 64, 2>}, {pipeline_mode = #tpu.pipeline_mode<synchronous>, transform_indices = @transform_28, window_bounds = array<i64: 1, 2>}, {transform_indices = @transform_29, window_bounds = array<i64: 1, 1, 2>}]} {
    %c0 = arith.constant 0 : index
    %c0_0 = arith.constant 0 : index
    %c0_1 = arith.constant 0 : index
    %0 = vector.load %arg1[%c0, %c0_0, %c0_1] : memref<1x16x32xf32, #tpu.memory_space<vmem>>, vector<1x16x32xf32>
    %1 = vector.shape_cast %0 : vector<1x16x32xf32> to vector<16x32xf32>
    %c0_2 = arith.constant 0 : index
    %c0_3 = arith.constant 0 : index
    %2 = vector.load %arg2[%c0_2, %c0_3] : memref<32x64xf32, #tpu.memory_space<vmem>>, vector<32x64xf32>
    %3 = arith.truncf %1 : vector<16x32xf32> to vector<16x32xbf16>
    %4 = arith.truncf %2 : vector<32x64xf32> to vector<32x64xbf16>
    %cst = arith.constant dense<0.000000e+00> : vector<16x64xf32>
    %5 = tpu.matmul %3, %4, %cst {dimension_numbers = #tpu.dot_dimension_numbers<[1], [0], [0], [1], [0, 0, 1, 1], [], []>} : vector<16x32xbf16>, vector<32x64xbf16>, vector<16x64xf32> -> vector<16x64xf32>
    %c0_4 = arith.constant 0 : index
    %c0_5 = arith.constant 0 : index
    %6 = vector.load %arg3[%c0_4, %c0_5] : memref<1x64xf32, #tpu.memory_space<vmem>>, vector<1x64xf32>
    %7 = vector.broadcast %6 : vector<1x64xf32> to vector<16x64xf32>
    %8 = arith.addf %5, %7 : vector<16x64xf32>
    %cst_6 = arith.constant 0.000000e+00 : f32
    %9 = vector.broadcast %cst_6 : f32 to vector<16x64xf32>
    %10 = arith.maximumf %8, %9 : vector<16x64xf32>
    %c0_7 = arith.constant 0 : index
    %c0_8 = arith.constant 0 : index
    %11 = vector.load %arg4[%c0_7, %c0_8] : memref<1x64xf32, #tpu.memory_space<vmem>>, vector<1x64xf32>
    %c0_9 = arith.constant 0 : index
    %c0_10 = arith.constant 0 : index
    %12 = vector.load %arg5[%c0_9, %c0_10] : memref<1x64xf32, #tpu.memory_space<vmem>>, vector<1x64xf32>
    %cst_11 = arith.constant dense<0.000000e+00> : vector<16xf32>
    %13 = vector.multi_reduction <add>, %10, %cst_11 [1] : vector<16x64xf32> to vector<16xf32>
    %14 = vector.shape_cast %13 : vector<16xf32> to vector<16x1xf32>
    %cst_12 = arith.constant 6.400000e+01 : f32
    %15 = vector.broadcast %cst_12 : f32 to vector<16x1xf32>
    %16 = arith.divf %14, %15 : vector<16x1xf32>
    %17 = vector.broadcast %16 : vector<16x1xf32> to vector<16x64xf32>
    %18 = arith.subf %10, %17 : vector<16x64xf32>
    %19 = arith.mulf %18, %18 : vector<16x64xf32>
    %cst_13 = arith.constant dense<0.000000e+00> : vector<16xf32>
    %20 = vector.multi_reduction <add>, %19, %cst_13 [1] : vector<16x64xf32> to vector<16xf32>
    %21 = vector.shape_cast %20 : vector<16xf32> to vector<16x1xf32>
    %cst_14 = arith.constant 6.400000e+01 : f32
    %22 = vector.broadcast %cst_14 : f32 to vector<16x1xf32>
    %23 = arith.divf %21, %22 : vector<16x1xf32>
    %cst_15 = arith.constant 9.99999974E-6 : f32
    %24 = vector.broadcast %cst_15 : f32 to vector<16x1xf32>
    %25 = arith.addf %23, %24 : vector<16x1xf32>
    %26 = math.rsqrt %25 : vector<16x1xf32>
    %27 = vector.broadcast %26 : vector<16x1xf32> to vector<16x64xf32>
    %28 = arith.mulf %18, %27 : vector<16x64xf32>
    %29 = vector.broadcast %11 : vector<1x64xf32> to vector<16x64xf32>
    %30 = arith.mulf %28, %29 : vector<16x64xf32>
    %31 = vector.broadcast %12 : vector<1x64xf32> to vector<16x64xf32>
    %32 = arith.addf %30, %31 : vector<16x64xf32>
    %c0_16 = arith.constant 0 : index
    %c0_17 = arith.constant 0 : index
    %33 = vector.load %arg6[%c0_16, %c0_17] : memref<1x64xf32, #tpu.memory_space<vmem>>, vector<1x64xf32>
    %34 = tpu.concatenate %33, %32 in 0 : vector<1x64xf32>, vector<16x64xf32> -> vector<17x64xf32>
    %c0_18 = arith.constant 0 : index
    %c0_19 = arith.constant 0 : index
    %35 = vector.load %arg7[%c0_18, %c0_19] : memref<1x64xf32, #tpu.memory_space<vmem>>, vector<1x64xf32>
    %c0_20 = arith.constant 0 : index
    %c0_21 = arith.constant 0 : index
    %36 = vector.load %arg8[%c0_20, %c0_21] : memref<1x64xf32, #tpu.memory_space<vmem>>, vector<1x64xf32>
    %cst_22 = arith.constant dense<0.000000e+00> : vector<17xf32>
    %37 = vector.multi_reduction <add>, %34, %cst_22 [1] : vector<17x64xf32> to vector<17xf32>
    %38 = vector.shape_cast %37 : vector<17xf32> to vector<17x1xf32>
    %cst_23 = arith.constant 6.400000e+01 : f32
    %39 = vector.broadcast %cst_23 : f32 to vector<17x1xf32>
    %40 = arith.divf %38, %39 : vector<17x1xf32>
    %41 = vector.broadcast %40 : vector<17x1xf32> to vector<17x64xf32>
    %42 = arith.subf %34, %41 : vector<17x64xf32>
    %43 = arith.mulf %42, %42 : vector<17x64xf32>
    %cst_24 = arith.constant dense<0.000000e+00> : vector<17xf32>
    %44 = vector.multi_reduction <add>, %43, %cst_24 [1] : vector<17x64xf32> to vector<17xf32>
    %45 = vector.shape_cast %44 : vector<17xf32> to vector<17x1xf32>
    %cst_25 = arith.constant 6.400000e+01 : f32
    %46 = vector.broadcast %cst_25 : f32 to vector<17x1xf32>
    %47 = arith.divf %45, %46 : vector<17x1xf32>
    %cst_26 = arith.constant 9.99999974E-6 : f32
    %48 = vector.broadcast %cst_26 : f32 to vector<17x1xf32>
    %49 = arith.addf %47, %48 : vector<17x1xf32>
    %50 = math.rsqrt %49 : vector<17x1xf32>
    %51 = vector.broadcast %50 : vector<17x1xf32> to vector<17x64xf32>
    %52 = arith.mulf %42, %51 : vector<17x64xf32>
    %53 = vector.broadcast %35 : vector<1x64xf32> to vector<17x64xf32>
    %54 = arith.mulf %52, %53 : vector<17x64xf32>
    %55 = vector.broadcast %36 : vector<1x64xf32> to vector<17x64xf32>
    %56 = arith.addf %54, %55 : vector<17x64xf32>
    %57 = vector.extract_strided_slice %56 {offsets = [0, 0], sizes = [1, 64], strides = [1, 1]} : vector<17x64xf32> to vector<1x64xf32>
    %c0_27 = arith.constant 0 : index
    %c0_28 = arith.constant 0 : index
    %58 = vector.load %arg13[%c0_27, %c0_28] : memref<1x64xf32, #tpu.memory_space<vmem>>, vector<1x64xf32>
    %c0_29 = arith.constant 0 : index
    %c0_30 = arith.constant 0 : index
    %c0_31 = arith.constant 0 : index
    %59 = vector.load %arg9[%c0_29, %c0_30, %c0_31] : memref<4x64x16xf32, #tpu.memory_space<vmem>>, vector<1x64x16xf32>
    %60 = vector.shape_cast %59 : vector<1x64x16xf32> to vector<64x16xf32>
    %61 = arith.truncf %57 : vector<1x64xf32> to vector<1x64xbf16>
    %62 = arith.truncf %60 : vector<64x16xf32> to vector<64x16xbf16>
    %cst_32 = arith.constant dense<0.000000e+00> : vector<1x16xf32>
    %63 = tpu.matmul %61, %62, %cst_32 {dimension_numbers = #tpu.dot_dimension_numbers<[1], [0], [0], [1], [0, 0, 1, 1], [], []>} : vector<1x64xbf16>, vector<64x16xbf16>, vector<1x16xf32> -> vector<1x16xf32>
    %c0_33 = arith.constant 0 : index
    %c0_34 = arith.constant 0 : index
    %c0_35 = arith.constant 0 : index
    %64 = vector.load %arg10[%c0_33, %c0_34, %c0_35] : memref<4x64x16xf32, #tpu.memory_space<vmem>>, vector<1x64x16xf32>
    %65 = vector.shape_cast %64 : vector<1x64x16xf32> to vector<64x16xf32>
    %66 = arith.truncf %56 : vector<17x64xf32> to vector<17x64xbf16>
    %67 = arith.truncf %65 : vector<64x16xf32> to vector<64x16xbf16>
    %cst_36 = arith.constant dense<0.000000e+00> : vector<17x16xf32>
    %68 = tpu.matmul %66, %67, %cst_36 {dimension_numbers = #tpu.dot_dimension_numbers<[1], [0], [0], [1], [0, 0, 1, 1], [], []>} : vector<17x64xbf16>, vector<64x16xbf16>, vector<17x16xf32> -> vector<17x16xf32>
    %c0_37 = arith.constant 0 : index
    %c0_38 = arith.constant 0 : index
    %c0_39 = arith.constant 0 : index
    %69 = vector.load %arg11[%c0_37, %c0_38, %c0_39] : memref<4x64x16xf32, #tpu.memory_space<vmem>>, vector<1x64x16xf32>
    %70 = vector.shape_cast %69 : vector<1x64x16xf32> to vector<64x16xf32>
    %71 = arith.truncf %56 : vector<17x64xf32> to vector<17x64xbf16>
    %72 = arith.truncf %70 : vector<64x16xf32> to vector<64x16xbf16>
    %cst_40 = arith.constant dense<0.000000e+00> : vector<17x16xf32>
    %73 = tpu.matmul %71, %72, %cst_40 {dimension_numbers = #tpu.dot_dimension_numbers<[1], [0], [0], [1], [0, 0, 1, 1], [], []>} : vector<17x64xbf16>, vector<64x16xbf16>, vector<17x16xf32> -> vector<17x16xf32>
    %74 = arith.truncf %63 : vector<1x16xf32> to vector<1x16xbf16>
    %75 = arith.truncf %68 : vector<17x16xf32> to vector<17x16xbf16>
    %cst_41 = arith.constant dense<0.000000e+00> : vector<1x17xf32>
    %76 = tpu.matmul %74, %75, %cst_41 {dimension_numbers = #tpu.dot_dimension_numbers<[1], [1], [0], [0], [0, 0, 1, 0], [], []>} : vector<1x16xbf16>, vector<17x16xbf16>, vector<1x17xf32> -> vector<1x17xf32>
    %cst_42 = arith.constant 2.500000e-01 : f32
    %77 = vector.broadcast %cst_42 : f32 to vector<1x17xf32>
    %78 = arith.mulf %76, %77 : vector<1x17xf32>
    %cst_43 = arith.constant dense<0xFF800000> : vector<1xf32>
    %79 = vector.multi_reduction <maximumf>, %78, %cst_43 [1] : vector<1x17xf32> to vector<1xf32>
    %80 = vector.shape_cast %79 : vector<1xf32> to vector<1x1xf32>
    %81 = vector.broadcast %80 : vector<1x1xf32> to vector<1x17xf32>
    %82 = arith.subf %78, %81 : vector<1x17xf32>
    %83 = math.exp %82 : vector<1x17xf32>
    %cst_44 = arith.constant dense<0.000000e+00> : vector<1xf32>
    %84 = vector.multi_reduction <add>, %83, %cst_44 [1] : vector<1x17xf32> to vector<1xf32>
    %85 = vector.shape_cast %84 : vector<1xf32> to vector<1x1xf32>
    %86 = tpu.reciprocal %85 {approx = true} : vector<1x1xf32> -> vector<1x1xf32>
    %87 = vector.broadcast %86 : vector<1x1xf32> to vector<1x17xf32>
    %88 = arith.mulf %83, %87 : vector<1x17xf32>
    %89 = arith.truncf %88 : vector<1x17xf32> to vector<1x17xbf16>
    %90 = arith.truncf %73 : vector<17x16xf32> to vector<17x16xbf16>
    %cst_45 = arith.constant dense<0.000000e+00> : vector<1x16xf32>
    %91 = tpu.matmul %89, %90, %cst_45 {dimension_numbers = #tpu.dot_dimension_numbers<[1], [0], [0], [1], [0, 0, 1, 1], [], []>} : vector<1x17xbf16>, vector<17x16xbf16>, vector<1x16xf32> -> vector<1x16xf32>
    %c0_46 = arith.constant 0 : index
    %c0_47 = arith.constant 0 : index
    %c0_48 = arith.constant 0 : index
    %92 = vector.load %arg12[%c0_46, %c0_47, %c0_48] : memref<4x16x64xf32, #tpu.memory_space<vmem>>, vector<1x16x64xf32>
    %93 = vector.shape_cast %92 : vector<1x16x64xf32> to vector<16x64xf32>
    %94 = arith.truncf %91 : vector<1x16xf32> to vector<1x16xbf16>
    %95 = arith.truncf %93 : vector<16x64xf32> to vector<16x64xbf16>
    %cst_49 = arith.constant dense<0.000000e+00> : vector<1x64xf32>
    %96 = tpu.matmul %94, %95, %cst_49 {dimension_numbers = #tpu.dot_dimension_numbers<[1], [0], [0], [1], [0, 0, 1, 1], [], []>} : vector<1x16xbf16>, vector<16x64xbf16>, vector<1x64xf32> -> vector<1x64xf32>
    %97 = arith.addf %58, %96 : vector<1x64xf32>
    %c1 = arith.constant 1 : index
    %c0_50 = arith.constant 0 : index
    %c0_51 = arith.constant 0 : index
    %98 = vector.load %arg9[%c1, %c0_50, %c0_51] : memref<4x64x16xf32, #tpu.memory_space<vmem>>, vector<1x64x16xf32>
    %99 = vector.shape_cast %98 : vector<1x64x16xf32> to vector<64x16xf32>
    %100 = arith.truncf %57 : vector<1x64xf32> to vector<1x64xbf16>
    %101 = arith.truncf %99 : vector<64x16xf32> to vector<64x16xbf16>
    %cst_52 = arith.constant dense<0.000000e+00> : vector<1x16xf32>
    %102 = tpu.matmul %100, %101, %cst_52 {dimension_numbers = #tpu.dot_dimension_numbers<[1], [0], [0], [1], [0, 0, 1, 1], [], []>} : vector<1x64xbf16>, vector<64x16xbf16>, vector<1x16xf32> -> vector<1x16xf32>
    %c1_53 = arith.constant 1 : index
    %c0_54 = arith.constant 0 : index
    %c0_55 = arith.constant 0 : index
    %103 = vector.load %arg10[%c1_53, %c0_54, %c0_55] : memref<4x64x16xf32, #tpu.memory_space<vmem>>, vector<1x64x16xf32>
    %104 = vector.shape_cast %103 : vector<1x64x16xf32> to vector<64x16xf32>
    %105 = arith.truncf %56 : vector<17x64xf32> to vector<17x64xbf16>
    %106 = arith.truncf %104 : vector<64x16xf32> to vector<64x16xbf16>
    %cst_56 = arith.constant dense<0.000000e+00> : vector<17x16xf32>
    %107 = tpu.matmul %105, %106, %cst_56 {dimension_numbers = #tpu.dot_dimension_numbers<[1], [0], [0], [1], [0, 0, 1, 1], [], []>} : vector<17x64xbf16>, vector<64x16xbf16>, vector<17x16xf32> -> vector<17x16xf32>
    %c1_57 = arith.constant 1 : index
    %c0_58 = arith.constant 0 : index
    %c0_59 = arith.constant 0 : index
    %108 = vector.load %arg11[%c1_57, %c0_58, %c0_59] : memref<4x64x16xf32, #tpu.memory_space<vmem>>, vector<1x64x16xf32>
    %109 = vector.shape_cast %108 : vector<1x64x16xf32> to vector<64x16xf32>
    %110 = arith.truncf %56 : vector<17x64xf32> to vector<17x64xbf16>
    %111 = arith.truncf %109 : vector<64x16xf32> to vector<64x16xbf16>
    %cst_60 = arith.constant dense<0.000000e+00> : vector<17x16xf32>
    %112 = tpu.matmul %110, %111, %cst_60 {dimension_numbers = #tpu.dot_dimension_numbers<[1], [0], [0], [1], [0, 0, 1, 1], [], []>} : vector<17x64xbf16>, vector<64x16xbf16>, vector<17x16xf32> -> vector<17x16xf32>
    %113 = arith.truncf %102 : vector<1x16xf32> to vector<1x16xbf16>
    %114 = arith.truncf %107 : vector<17x16xf32> to vector<17x16xbf16>
    %cst_61 = arith.constant dense<0.000000e+00> : vector<1x17xf32>
    %115 = tpu.matmul %113, %114, %cst_61 {dimension_numbers = #tpu.dot_dimension_numbers<[1], [1], [0], [0], [0, 0, 1, 0], [], []>} : vector<1x16xbf16>, vector<17x16xbf16>, vector<1x17xf32> -> vector<1x17xf32>
    %cst_62 = arith.constant 2.500000e-01 : f32
    %116 = vector.broadcast %cst_62 : f32 to vector<1x17xf32>
    %117 = arith.mulf %115, %116 : vector<1x17xf32>
    %cst_63 = arith.constant dense<0xFF800000> : vector<1xf32>
    %118 = vector.multi_reduction <maximumf>, %117, %cst_63 [1] : vector<1x17xf32> to vector<1xf32>
    %119 = vector.shape_cast %118 : vector<1xf32> to vector<1x1xf32>
    %120 = vector.broadcast %119 : vector<1x1xf32> to vector<1x17xf32>
    %121 = arith.subf %117, %120 : vector<1x17xf32>
    %122 = math.exp %121 : vector<1x17xf32>
    %cst_64 = arith.constant dense<0.000000e+00> : vector<1xf32>
    %123 = vector.multi_reduction <add>, %122, %cst_64 [1] : vector<1x17xf32> to vector<1xf32>
    %124 = vector.shape_cast %123 : vector<1xf32> to vector<1x1xf32>
    %125 = tpu.reciprocal %124 {approx = true} : vector<1x1xf32> -> vector<1x1xf32>
    %126 = vector.broadcast %125 : vector<1x1xf32> to vector<1x17xf32>
    %127 = arith.mulf %122, %126 : vector<1x17xf32>
    %128 = arith.truncf %127 : vector<1x17xf32> to vector<1x17xbf16>
    %129 = arith.truncf %112 : vector<17x16xf32> to vector<17x16xbf16>
    %cst_65 = arith.constant dense<0.000000e+00> : vector<1x16xf32>
    %130 = tpu.matmul %128, %129, %cst_65 {dimension_numbers = #tpu.dot_dimension_numbers<[1], [0], [0], [1], [0, 0, 1, 1], [], []>} : vector<1x17xbf16>, vector<17x16xbf16>, vector<1x16xf32> -> vector<1x16xf32>
    %c1_66 = arith.constant 1 : index
    %c0_67 = arith.constant 0 : index
    %c0_68 = arith.constant 0 : index
    %131 = vector.load %arg12[%c1_66, %c0_67, %c0_68] : memref<4x16x64xf32, #tpu.memory_space<vmem>>, vector<1x16x64xf32>
    %132 = vector.shape_cast %131 : vector<1x16x64xf32> to vector<16x64xf32>
    %133 = arith.truncf %130 : vector<1x16xf32> to vector<1x16xbf16>
    %134 = arith.truncf %132 : vector<16x64xf32> to vector<16x64xbf16>
    %cst_69 = arith.constant dense<0.000000e+00> : vector<1x64xf32>
    %135 = tpu.matmul %133, %134, %cst_69 {dimension_numbers = #tpu.dot_dimension_numbers<[1], [0], [0], [1], [0, 0, 1, 1], [], []>} : vector<1x16xbf16>, vector<16x64xbf16>, vector<1x64xf32> -> vector<1x64xf32>
    %136 = arith.addf %97, %135 : vector<1x64xf32>
    %c2 = arith.constant 2 : index
    %c0_70 = arith.constant 0 : index
    %c0_71 = arith.constant 0 : index
    %137 = vector.load %arg9[%c2, %c0_70, %c0_71] : memref<4x64x16xf32, #tpu.memory_space<vmem>>, vector<1x64x16xf32>
    %138 = vector.shape_cast %137 : vector<1x64x16xf32> to vector<64x16xf32>
    %139 = arith.truncf %57 : vector<1x64xf32> to vector<1x64xbf16>
    %140 = arith.truncf %138 : vector<64x16xf32> to vector<64x16xbf16>
    %cst_72 = arith.constant dense<0.000000e+00> : vector<1x16xf32>
    %141 = tpu.matmul %139, %140, %cst_72 {dimension_numbers = #tpu.dot_dimension_numbers<[1], [0], [0], [1], [0, 0, 1, 1], [], []>} : vector<1x64xbf16>, vector<64x16xbf16>, vector<1x16xf32> -> vector<1x16xf32>
    %c2_73 = arith.constant 2 : index
    %c0_74 = arith.constant 0 : index
    %c0_75 = arith.constant 0 : index
    %142 = vector.load %arg10[%c2_73, %c0_74, %c0_75] : memref<4x64x16xf32, #tpu.memory_space<vmem>>, vector<1x64x16xf32>
    %143 = vector.shape_cast %142 : vector<1x64x16xf32> to vector<64x16xf32>
    %144 = arith.truncf %56 : vector<17x64xf32> to vector<17x64xbf16>
    %145 = arith.truncf %143 : vector<64x16xf32> to vector<64x16xbf16>
    %cst_76 = arith.constant dense<0.000000e+00> : vector<17x16xf32>
    %146 = tpu.matmul %144, %145, %cst_76 {dimension_numbers = #tpu.dot_dimension_numbers<[1], [0], [0], [1], [0, 0, 1, 1], [], []>} : vector<17x64xbf16>, vector<64x16xbf16>, vector<17x16xf32> -> vector<17x16xf32>
    %c2_77 = arith.constant 2 : index
    %c0_78 = arith.constant 0 : index
    %c0_79 = arith.constant 0 : index
    %147 = vector.load %arg11[%c2_77, %c0_78, %c0_79] : memref<4x64x16xf32, #tpu.memory_space<vmem>>, vector<1x64x16xf32>
    %148 = vector.shape_cast %147 : vector<1x64x16xf32> to vector<64x16xf32>
    %149 = arith.truncf %56 : vector<17x64xf32> to vector<17x64xbf16>
    %150 = arith.truncf %148 : vector<64x16xf32> to vector<64x16xbf16>
    %cst_80 = arith.constant dense<0.000000e+00> : vector<17x16xf32>
    %151 = tpu.matmul %149, %150, %cst_80 {dimension_numbers = #tpu.dot_dimension_numbers<[1], [0], [0], [1], [0, 0, 1, 1], [], []>} : vector<17x64xbf16>, vector<64x16xbf16>, vector<17x16xf32> -> vector<17x16xf32>
    %152 = arith.truncf %141 : vector<1x16xf32> to vector<1x16xbf16>
    %153 = arith.truncf %146 : vector<17x16xf32> to vector<17x16xbf16>
    %cst_81 = arith.constant dense<0.000000e+00> : vector<1x17xf32>
    %154 = tpu.matmul %152, %153, %cst_81 {dimension_numbers = #tpu.dot_dimension_numbers<[1], [1], [0], [0], [0, 0, 1, 0], [], []>} : vector<1x16xbf16>, vector<17x16xbf16>, vector<1x17xf32> -> vector<1x17xf32>
    %cst_82 = arith.constant 2.500000e-01 : f32
    %155 = vector.broadcast %cst_82 : f32 to vector<1x17xf32>
    %156 = arith.mulf %154, %155 : vector<1x17xf32>
    %cst_83 = arith.constant dense<0xFF800000> : vector<1xf32>
    %157 = vector.multi_reduction <maximumf>, %156, %cst_83 [1] : vector<1x17xf32> to vector<1xf32>
    %158 = vector.shape_cast %157 : vector<1xf32> to vector<1x1xf32>
    %159 = vector.broadcast %158 : vector<1x1xf32> to vector<1x17xf32>
    %160 = arith.subf %156, %159 : vector<1x17xf32>
    %161 = math.exp %160 : vector<1x17xf32>
    %cst_84 = arith.constant dense<0.000000e+00> : vector<1xf32>
    %162 = vector.multi_reduction <add>, %161, %cst_84 [1] : vector<1x17xf32> to vector<1xf32>
    %163 = vector.shape_cast %162 : vector<1xf32> to vector<1x1xf32>
    %164 = tpu.reciprocal %163 {approx = true} : vector<1x1xf32> -> vector<1x1xf32>
    %165 = vector.broadcast %164 : vector<1x1xf32> to vector<1x17xf32>
    %166 = arith.mulf %161, %165 : vector<1x17xf32>
    %167 = arith.truncf %166 : vector<1x17xf32> to vector<1x17xbf16>
    %168 = arith.truncf %151 : vector<17x16xf32> to vector<17x16xbf16>
    %cst_85 = arith.constant dense<0.000000e+00> : vector<1x16xf32>
    %169 = tpu.matmul %167, %168, %cst_85 {dimension_numbers = #tpu.dot_dimension_numbers<[1], [0], [0], [1], [0, 0, 1, 1], [], []>} : vector<1x17xbf16>, vector<17x16xbf16>, vector<1x16xf32> -> vector<1x16xf32>
    %c2_86 = arith.constant 2 : index
    %c0_87 = arith.constant 0 : index
    %c0_88 = arith.constant 0 : index
    %170 = vector.load %arg12[%c2_86, %c0_87, %c0_88] : memref<4x16x64xf32, #tpu.memory_space<vmem>>, vector<1x16x64xf32>
    %171 = vector.shape_cast %170 : vector<1x16x64xf32> to vector<16x64xf32>
    %172 = arith.truncf %169 : vector<1x16xf32> to vector<1x16xbf16>
    %173 = arith.truncf %171 : vector<16x64xf32> to vector<16x64xbf16>
    %cst_89 = arith.constant dense<0.000000e+00> : vector<1x64xf32>
    %174 = tpu.matmul %172, %173, %cst_89 {dimension_numbers = #tpu.dot_dimension_numbers<[1], [0], [0], [1], [0, 0, 1, 1], [], []>} : vector<1x16xbf16>, vector<16x64xbf16>, vector<1x64xf32> -> vector<1x64xf32>
    %175 = arith.addf %136, %174 : vector<1x64xf32>
    %c3 = arith.constant 3 : index
    %c0_90 = arith.constant 0 : index
    %c0_91 = arith.constant 0 : index
    %176 = vector.load %arg9[%c3, %c0_90, %c0_91] : memref<4x64x16xf32, #tpu.memory_space<vmem>>, vector<1x64x16xf32>
    %177 = vector.shape_cast %176 : vector<1x64x16xf32> to vector<64x16xf32>
    %178 = arith.truncf %57 : vector<1x64xf32> to vector<1x64xbf16>
    %179 = arith.truncf %177 : vector<64x16xf32> to vector<64x16xbf16>
    %cst_92 = arith.constant dense<0.000000e+00> : vector<1x16xf32>
    %180 = tpu.matmul %178, %179, %cst_92 {dimension_numbers = #tpu.dot_dimension_numbers<[1], [0], [0], [1], [0, 0, 1, 1], [], []>} : vector<1x64xbf16>, vector<64x16xbf16>, vector<1x16xf32> -> vector<1x16xf32>
    %c3_93 = arith.constant 3 : index
    %c0_94 = arith.constant 0 : index
    %c0_95 = arith.constant 0 : index
    %181 = vector.load %arg10[%c3_93, %c0_94, %c0_95] : memref<4x64x16xf32, #tpu.memory_space<vmem>>, vector<1x64x16xf32>
    %182 = vector.shape_cast %181 : vector<1x64x16xf32> to vector<64x16xf32>
    %183 = arith.truncf %56 : vector<17x64xf32> to vector<17x64xbf16>
    %184 = arith.truncf %182 : vector<64x16xf32> to vector<64x16xbf16>
    %cst_96 = arith.constant dense<0.000000e+00> : vector<17x16xf32>
    %185 = tpu.matmul %183, %184, %cst_96 {dimension_numbers = #tpu.dot_dimension_numbers<[1], [0], [0], [1], [0, 0, 1, 1], [], []>} : vector<17x64xbf16>, vector<64x16xbf16>, vector<17x16xf32> -> vector<17x16xf32>
    %c3_97 = arith.constant 3 : index
    %c0_98 = arith.constant 0 : index
    %c0_99 = arith.constant 0 : index
    %186 = vector.load %arg11[%c3_97, %c0_98, %c0_99] : memref<4x64x16xf32, #tpu.memory_space<vmem>>, vector<1x64x16xf32>
    %187 = vector.shape_cast %186 : vector<1x64x16xf32> to vector<64x16xf32>
    %188 = arith.truncf %56 : vector<17x64xf32> to vector<17x64xbf16>
    %189 = arith.truncf %187 : vector<64x16xf32> to vector<64x16xbf16>
    %cst_100 = arith.constant dense<0.000000e+00> : vector<17x16xf32>
    %190 = tpu.matmul %188, %189, %cst_100 {dimension_numbers = #tpu.dot_dimension_numbers<[1], [0], [0], [1], [0, 0, 1, 1], [], []>} : vector<17x64xbf16>, vector<64x16xbf16>, vector<17x16xf32> -> vector<17x16xf32>
    %191 = arith.truncf %180 : vector<1x16xf32> to vector<1x16xbf16>
    %192 = arith.truncf %185 : vector<17x16xf32> to vector<17x16xbf16>
    %cst_101 = arith.constant dense<0.000000e+00> : vector<1x17xf32>
    %193 = tpu.matmul %191, %192, %cst_101 {dimension_numbers = #tpu.dot_dimension_numbers<[1], [1], [0], [0], [0, 0, 1, 0], [], []>} : vector<1x16xbf16>, vector<17x16xbf16>, vector<1x17xf32> -> vector<1x17xf32>
    %cst_102 = arith.constant 2.500000e-01 : f32
    %194 = vector.broadcast %cst_102 : f32 to vector<1x17xf32>
    %195 = arith.mulf %193, %194 : vector<1x17xf32>
    %cst_103 = arith.constant dense<0xFF800000> : vector<1xf32>
    %196 = vector.multi_reduction <maximumf>, %195, %cst_103 [1] : vector<1x17xf32> to vector<1xf32>
    %197 = vector.shape_cast %196 : vector<1xf32> to vector<1x1xf32>
    %198 = vector.broadcast %197 : vector<1x1xf32> to vector<1x17xf32>
    %199 = arith.subf %195, %198 : vector<1x17xf32>
    %200 = math.exp %199 : vector<1x17xf32>
    %cst_104 = arith.constant dense<0.000000e+00> : vector<1xf32>
    %201 = vector.multi_reduction <add>, %200, %cst_104 [1] : vector<1x17xf32> to vector<1xf32>
    %202 = vector.shape_cast %201 : vector<1xf32> to vector<1x1xf32>
    %203 = tpu.reciprocal %202 {approx = true} : vector<1x1xf32> -> vector<1x1xf32>
    %204 = vector.broadcast %203 : vector<1x1xf32> to vector<1x17xf32>
    %205 = arith.mulf %200, %204 : vector<1x17xf32>
    %206 = arith.truncf %205 : vector<1x17xf32> to vector<1x17xbf16>
    %207 = arith.truncf %190 : vector<17x16xf32> to vector<17x16xbf16>
    %cst_105 = arith.constant dense<0.000000e+00> : vector<1x16xf32>
    %208 = tpu.matmul %206, %207, %cst_105 {dimension_numbers = #tpu.dot_dimension_numbers<[1], [0], [0], [1], [0, 0, 1, 1], [], []>} : vector<1x17xbf16>, vector<17x16xbf16>, vector<1x16xf32> -> vector<1x16xf32>
    %c3_106 = arith.constant 3 : index
    %c0_107 = arith.constant 0 : index
    %c0_108 = arith.constant 0 : index
    %209 = vector.load %arg12[%c3_106, %c0_107, %c0_108] : memref<4x16x64xf32, #tpu.memory_space<vmem>>, vector<1x16x64xf32>
    %210 = vector.shape_cast %209 : vector<1x16x64xf32> to vector<16x64xf32>
    %211 = arith.truncf %208 : vector<1x16xf32> to vector<1x16xbf16>
    %212 = arith.truncf %210 : vector<16x64xf32> to vector<16x64xbf16>
    %cst_109 = arith.constant dense<0.000000e+00> : vector<1x64xf32>
    %213 = tpu.matmul %211, %212, %cst_109 {dimension_numbers = #tpu.dot_dimension_numbers<[1], [0], [0], [1], [0, 0, 1, 1], [], []>} : vector<1x16xbf16>, vector<16x64xbf16>, vector<1x64xf32> -> vector<1x64xf32>
    %214 = arith.addf %175, %213 : vector<1x64xf32>
    %215 = arith.addf %33, %214 : vector<1x64xf32>
    %c0_110 = arith.constant 0 : index
    %c0_111 = arith.constant 0 : index
    %216 = vector.load %arg14[%c0_110, %c0_111] : memref<1x64xf32, #tpu.memory_space<vmem>>, vector<1x64xf32>
    %c0_112 = arith.constant 0 : index
    %c0_113 = arith.constant 0 : index
    %217 = vector.load %arg15[%c0_112, %c0_113] : memref<1x64xf32, #tpu.memory_space<vmem>>, vector<1x64xf32>
    %cst_114 = arith.constant dense<0.000000e+00> : vector<16xf32>
    %218 = vector.multi_reduction <add>, %32, %cst_114 [1] : vector<16x64xf32> to vector<16xf32>
    %219 = vector.shape_cast %218 : vector<16xf32> to vector<16x1xf32>
    %cst_115 = arith.constant 6.400000e+01 : f32
    %220 = vector.broadcast %cst_115 : f32 to vector<16x1xf32>
    %221 = arith.divf %219, %220 : vector<16x1xf32>
    %222 = vector.broadcast %221 : vector<16x1xf32> to vector<16x64xf32>
    %223 = arith.subf %32, %222 : vector<16x64xf32>
    %224 = arith.mulf %223, %223 : vector<16x64xf32>
    %cst_116 = arith.constant dense<0.000000e+00> : vector<16xf32>
    %225 = vector.multi_reduction <add>, %224, %cst_116 [1] : vector<16x64xf32> to vector<16xf32>
    %226 = vector.shape_cast %225 : vector<16xf32> to vector<16x1xf32>
    %cst_117 = arith.constant 6.400000e+01 : f32
    %227 = vector.broadcast %cst_117 : f32 to vector<16x1xf32>
    %228 = arith.divf %226, %227 : vector<16x1xf32>
    %cst_118 = arith.constant 9.99999974E-6 : f32
    %229 = vector.broadcast %cst_118 : f32 to vector<16x1xf32>
    %230 = arith.addf %228, %229 : vector<16x1xf32>
    %231 = math.rsqrt %230 : vector<16x1xf32>
    %232 = vector.broadcast %231 : vector<16x1xf32> to vector<16x64xf32>
    %233 = arith.mulf %223, %232 : vector<16x64xf32>
    %234 = vector.broadcast %216 : vector<1x64xf32> to vector<16x64xf32>
    %235 = arith.mulf %233, %234 : vector<16x64xf32>
    %236 = vector.broadcast %217 : vector<1x64xf32> to vector<16x64xf32>
    %237 = arith.addf %235, %236 : vector<16x64xf32>
    %cst_119 = arith.constant 0.000000e+00 : f32
    %238 = vector.broadcast %cst_119 : f32 to vector<16x64xf32>
    %c0_120 = arith.constant 0 : index
    %c0_121 = arith.constant 0 : index
    %239 = vector.load %arg18[%c0_120, %c0_121] : memref<1x64xf32, #tpu.memory_space<vmem>>, vector<1x64xf32>
    %240 = vector.broadcast %239 : vector<1x64xf32> to vector<16x64xf32>
    %241 = arith.addf %238, %240 : vector<16x64xf32>
    %c0_122 = arith.constant 0 : index
    %c0_123 = arith.constant 0 : index
    %c0_124 = arith.constant 0 : index
    %242 = vector.load %arg16[%c0_122, %c0_123, %c0_124] : memref<9x16x16xf32, #tpu.memory_space<vmem>>, vector<1x16x16xf32>
    %243 = vector.shape_cast %242 : vector<1x16x16xf32> to vector<16x16xf32>
    %244 = arith.truncf %243 : vector<16x16xf32> to vector<16x16xbf16>
    %245 = arith.truncf %237 : vector<16x64xf32> to vector<16x64xbf16>
    %cst_125 = arith.constant dense<0.000000e+00> : vector<16x64xf32>
    %246 = tpu.matmul %244, %245, %cst_125 {dimension_numbers = #tpu.dot_dimension_numbers<[1], [0], [0], [1], [0, 0, 1, 1], [], []>} : vector<16x16xbf16>, vector<16x64xbf16>, vector<16x64xf32> -> vector<16x64xf32>
    %c0_126 = arith.constant 0 : index
    %c0_127 = arith.constant 0 : index
    %247 = vector.load %arg17[%c0_126, %c0_127] : memref<9x64xf32, #tpu.memory_space<vmem>>, vector<1x64xf32>
    %248 = vector.broadcast %247 : vector<1x64xf32> to vector<16x64xf32>
    %249 = arith.mulf %246, %248 : vector<16x64xf32>
    %250 = arith.addf %241, %249 : vector<16x64xf32>
    %c1_128 = arith.constant 1 : index
    %c0_129 = arith.constant 0 : index
    %c0_130 = arith.constant 0 : index
    %251 = vector.load %arg16[%c1_128, %c0_129, %c0_130] : memref<9x16x16xf32, #tpu.memory_space<vmem>>, vector<1x16x16xf32>
    %252 = vector.shape_cast %251 : vector<1x16x16xf32> to vector<16x16xf32>
    %253 = arith.truncf %252 : vector<16x16xf32> to vector<16x16xbf16>
    %254 = arith.truncf %237 : vector<16x64xf32> to vector<16x64xbf16>
    %cst_131 = arith.constant dense<0.000000e+00> : vector<16x64xf32>
    %255 = tpu.matmul %253, %254, %cst_131 {dimension_numbers = #tpu.dot_dimension_numbers<[1], [0], [0], [1], [0, 0, 1, 1], [], []>} : vector<16x16xbf16>, vector<16x64xbf16>, vector<16x64xf32> -> vector<16x64xf32>
    %c1_132 = arith.constant 1 : index
    %c0_133 = arith.constant 0 : index
    %256 = vector.load %arg17[%c1_132, %c0_133] : memref<9x64xf32, #tpu.memory_space<vmem>>, vector<1x64xf32>
    %257 = vector.broadcast %256 : vector<1x64xf32> to vector<16x64xf32>
    %258 = arith.mulf %255, %257 : vector<16x64xf32>
    %259 = arith.addf %250, %258 : vector<16x64xf32>
    %c2_134 = arith.constant 2 : index
    %c0_135 = arith.constant 0 : index
    %c0_136 = arith.constant 0 : index
    %260 = vector.load %arg16[%c2_134, %c0_135, %c0_136] : memref<9x16x16xf32, #tpu.memory_space<vmem>>, vector<1x16x16xf32>
    %261 = vector.shape_cast %260 : vector<1x16x16xf32> to vector<16x16xf32>
    %262 = arith.truncf %261 : vector<16x16xf32> to vector<16x16xbf16>
    %263 = arith.truncf %237 : vector<16x64xf32> to vector<16x64xbf16>
    %cst_137 = arith.constant dense<0.000000e+00> : vector<16x64xf32>
    %264 = tpu.matmul %262, %263, %cst_137 {dimension_numbers = #tpu.dot_dimension_numbers<[1], [0], [0], [1], [0, 0, 1, 1], [], []>} : vector<16x16xbf16>, vector<16x64xbf16>, vector<16x64xf32> -> vector<16x64xf32>
    %c2_138 = arith.constant 2 : index
    %c0_139 = arith.constant 0 : index
    %265 = vector.load %arg17[%c2_138, %c0_139] : memref<9x64xf32, #tpu.memory_space<vmem>>, vector<1x64xf32>
    %266 = vector.broadcast %265 : vector<1x64xf32> to vector<16x64xf32>
    %267 = arith.mulf %264, %266 : vector<16x64xf32>
    %268 = arith.addf %259, %267 : vector<16x64xf32>
    %c3_140 = arith.constant 3 : index
    %c0_141 = arith.constant 0 : index
    %c0_142 = arith.constant 0 : index
    %269 = vector.load %arg16[%c3_140, %c0_141, %c0_142] : memref<9x16x16xf32, #tpu.memory_space<vmem>>, vector<1x16x16xf32>
    %270 = vector.shape_cast %269 : vector<1x16x16xf32> to vector<16x16xf32>
    %271 = arith.truncf %270 : vector<16x16xf32> to vector<16x16xbf16>
    %272 = arith.truncf %237 : vector<16x64xf32> to vector<16x64xbf16>
    %cst_143 = arith.constant dense<0.000000e+00> : vector<16x64xf32>
    %273 = tpu.matmul %271, %272, %cst_143 {dimension_numbers = #tpu.dot_dimension_numbers<[1], [0], [0], [1], [0, 0, 1, 1], [], []>} : vector<16x16xbf16>, vector<16x64xbf16>, vector<16x64xf32> -> vector<16x64xf32>
    %c3_144 = arith.constant 3 : index
    %c0_145 = arith.constant 0 : index
    %274 = vector.load %arg17[%c3_144, %c0_145] : memref<9x64xf32, #tpu.memory_space<vmem>>, vector<1x64xf32>
    %275 = vector.broadcast %274 : vector<1x64xf32> to vector<16x64xf32>
    %276 = arith.mulf %273, %275 : vector<16x64xf32>
    %277 = arith.addf %268, %276 : vector<16x64xf32>
    %c4 = arith.constant 4 : index
    %c0_146 = arith.constant 0 : index
    %c0_147 = arith.constant 0 : index
    %278 = vector.load %arg16[%c4, %c0_146, %c0_147] : memref<9x16x16xf32, #tpu.memory_space<vmem>>, vector<1x16x16xf32>
    %279 = vector.shape_cast %278 : vector<1x16x16xf32> to vector<16x16xf32>
    %280 = arith.truncf %279 : vector<16x16xf32> to vector<16x16xbf16>
    %281 = arith.truncf %237 : vector<16x64xf32> to vector<16x64xbf16>
    %cst_148 = arith.constant dense<0.000000e+00> : vector<16x64xf32>
    %282 = tpu.matmul %280, %281, %cst_148 {dimension_numbers = #tpu.dot_dimension_numbers<[1], [0], [0], [1], [0, 0, 1, 1], [], []>} : vector<16x16xbf16>, vector<16x64xbf16>, vector<16x64xf32> -> vector<16x64xf32>
    %c4_149 = arith.constant 4 : index
    %c0_150 = arith.constant 0 : index
    %283 = vector.load %arg17[%c4_149, %c0_150] : memref<9x64xf32, #tpu.memory_space<vmem>>, vector<1x64xf32>
    %284 = vector.broadcast %283 : vector<1x64xf32> to vector<16x64xf32>
    %285 = arith.mulf %282, %284 : vector<16x64xf32>
    %286 = arith.addf %277, %285 : vector<16x64xf32>
    %c5 = arith.constant 5 : index
    %c0_151 = arith.constant 0 : index
    %c0_152 = arith.constant 0 : index
    %287 = vector.load %arg16[%c5, %c0_151, %c0_152] : memref<9x16x16xf32, #tpu.memory_space<vmem>>, vector<1x16x16xf32>
    %288 = vector.shape_cast %287 : vector<1x16x16xf32> to vector<16x16xf32>
    %289 = arith.truncf %288 : vector<16x16xf32> to vector<16x16xbf16>
    %290 = arith.truncf %237 : vector<16x64xf32> to vector<16x64xbf16>
    %cst_153 = arith.constant dense<0.000000e+00> : vector<16x64xf32>
    %291 = tpu.matmul %289, %290, %cst_153 {dimension_numbers = #tpu.dot_dimension_numbers<[1], [0], [0], [1], [0, 0, 1, 1], [], []>} : vector<16x16xbf16>, vector<16x64xbf16>, vector<16x64xf32> -> vector<16x64xf32>
    %c5_154 = arith.constant 5 : index
    %c0_155 = arith.constant 0 : index
    %292 = vector.load %arg17[%c5_154, %c0_155] : memref<9x64xf32, #tpu.memory_space<vmem>>, vector<1x64xf32>
    %293 = vector.broadcast %292 : vector<1x64xf32> to vector<16x64xf32>
    %294 = arith.mulf %291, %293 : vector<16x64xf32>
    %295 = arith.addf %286, %294 : vector<16x64xf32>
    %c6 = arith.constant 6 : index
    %c0_156 = arith.constant 0 : index
    %c0_157 = arith.constant 0 : index
    %296 = vector.load %arg16[%c6, %c0_156, %c0_157] : memref<9x16x16xf32, #tpu.memory_space<vmem>>, vector<1x16x16xf32>
    %297 = vector.shape_cast %296 : vector<1x16x16xf32> to vector<16x16xf32>
    %298 = arith.truncf %297 : vector<16x16xf32> to vector<16x16xbf16>
    %299 = arith.truncf %237 : vector<16x64xf32> to vector<16x64xbf16>
    %cst_158 = arith.constant dense<0.000000e+00> : vector<16x64xf32>
    %300 = tpu.matmul %298, %299, %cst_158 {dimension_numbers = #tpu.dot_dimension_numbers<[1], [0], [0], [1], [0, 0, 1, 1], [], []>} : vector<16x16xbf16>, vector<16x64xbf16>, vector<16x64xf32> -> vector<16x64xf32>
    %c6_159 = arith.constant 6 : index
    %c0_160 = arith.constant 0 : index
    %301 = vector.load %arg17[%c6_159, %c0_160] : memref<9x64xf32, #tpu.memory_space<vmem>>, vector<1x64xf32>
    %302 = vector.broadcast %301 : vector<1x64xf32> to vector<16x64xf32>
    %303 = arith.mulf %300, %302 : vector<16x64xf32>
    %304 = arith.addf %295, %303 : vector<16x64xf32>
    %c7 = arith.constant 7 : index
    %c0_161 = arith.constant 0 : index
    %c0_162 = arith.constant 0 : index
    %305 = vector.load %arg16[%c7, %c0_161, %c0_162] : memref<9x16x16xf32, #tpu.memory_space<vmem>>, vector<1x16x16xf32>
    %306 = vector.shape_cast %305 : vector<1x16x16xf32> to vector<16x16xf32>
    %307 = arith.truncf %306 : vector<16x16xf32> to vector<16x16xbf16>
    %308 = arith.truncf %237 : vector<16x64xf32> to vector<16x64xbf16>
    %cst_163 = arith.constant dense<0.000000e+00> : vector<16x64xf32>
    %309 = tpu.matmul %307, %308, %cst_163 {dimension_numbers = #tpu.dot_dimension_numbers<[1], [0], [0], [1], [0, 0, 1, 1], [], []>} : vector<16x16xbf16>, vector<16x64xbf16>, vector<16x64xf32> -> vector<16x64xf32>
    %c7_164 = arith.constant 7 : index
    %c0_165 = arith.constant 0 : index
    %310 = vector.load %arg17[%c7_164, %c0_165] : memref<9x64xf32, #tpu.memory_space<vmem>>, vector<1x64xf32>
    %311 = vector.broadcast %310 : vector<1x64xf32> to vector<16x64xf32>
    %312 = arith.mulf %309, %311 : vector<16x64xf32>
    %313 = arith.addf %304, %312 : vector<16x64xf32>
    %c8 = arith.constant 8 : index
    %c0_166 = arith.constant 0 : index
    %c0_167 = arith.constant 0 : index
    %314 = vector.load %arg16[%c8, %c0_166, %c0_167] : memref<9x16x16xf32, #tpu.memory_space<vmem>>, vector<1x16x16xf32>
    %315 = vector.shape_cast %314 : vector<1x16x16xf32> to vector<16x16xf32>
    %316 = arith.truncf %315 : vector<16x16xf32> to vector<16x16xbf16>
    %317 = arith.truncf %237 : vector<16x64xf32> to vector<16x64xbf16>
    %cst_168 = arith.constant dense<0.000000e+00> : vector<16x64xf32>
    %318 = tpu.matmul %316, %317, %cst_168 {dimension_numbers = #tpu.dot_dimension_numbers<[1], [0], [0], [1], [0, 0, 1, 1], [], []>} : vector<16x16xbf16>, vector<16x64xbf16>, vector<16x64xf32> -> vector<16x64xf32>
    %c8_169 = arith.constant 8 : index
    %c0_170 = arith.constant 0 : index
    %319 = vector.load %arg17[%c8_169, %c0_170] : memref<9x64xf32, #tpu.memory_space<vmem>>, vector<1x64xf32>
    %320 = vector.broadcast %319 : vector<1x64xf32> to vector<16x64xf32>
    %321 = arith.mulf %318, %320 : vector<16x64xf32>
    %322 = arith.addf %313, %321 : vector<16x64xf32>
    %cst_171 = arith.constant dense<0.000000e+00> : vector<64xf32>
    %323 = vector.multi_reduction <add>, %322, %cst_171 [0] : vector<16x64xf32> to vector<64xf32>
    %324 = vector.shape_cast %323 : vector<64xf32> to vector<1x64xf32>
    %cst_172 = arith.constant 1.600000e+01 : f32
    %325 = vector.broadcast %cst_172 : f32 to vector<1x64xf32>
    %326 = arith.divf %324, %325 : vector<1x64xf32>
    %c0_173 = arith.constant 0 : index
    %c0_174 = arith.constant 0 : index
    %327 = vector.load %arg19[%c0_173, %c0_174] : memref<64x2xf32, #tpu.memory_space<vmem>>, vector<64x2xf32>
    %328 = arith.truncf %326 : vector<1x64xf32> to vector<1x64xbf16>
    %329 = arith.truncf %327 : vector<64x2xf32> to vector<64x2xbf16>
    %cst_175 = arith.constant dense<0.000000e+00> : vector<1x2xf32>
    %330 = tpu.matmul %328, %329, %cst_175 {dimension_numbers = #tpu.dot_dimension_numbers<[1], [0], [0], [1], [0, 0, 1, 1], [], []>} : vector<1x64xbf16>, vector<64x2xbf16>, vector<1x2xf32> -> vector<1x2xf32>
    %c0_176 = arith.constant 0 : index
    %c0_177 = arith.constant 0 : index
    %331 = vector.load %arg20[%c0_176, %c0_177] : memref<1x2xf32, #tpu.memory_space<vmem>>, vector<1x2xf32>
    %332 = arith.addf %330, %331 : vector<1x2xf32>
    %cst_178 = arith.constant 5.000000e-01 : f32
    %333 = vector.broadcast %cst_178 : f32 to vector<1x2xf32>
    %334 = arith.mulf %333, %332 : vector<1x2xf32>
    %cst_179 = arith.constant 4.471500e-02 : f32
    %335 = vector.broadcast %cst_179 : f32 to vector<1x2xf32>
    %336 = arith.mulf %335, %332 : vector<1x2xf32>
    %337 = arith.mulf %336, %332 : vector<1x2xf32>
    %338 = arith.mulf %337, %332 : vector<1x2xf32>
    %339 = arith.addf %332, %338 : vector<1x2xf32>
    %cst_180 = arith.constant 0.797884583 : f32
    %340 = vector.broadcast %cst_180 : f32 to vector<1x2xf32>
    %341 = arith.mulf %340, %339 : vector<1x2xf32>
    %342 = math.tanh %341 : vector<1x2xf32>
    %cst_181 = arith.constant 1.000000e+00 : f32
    %343 = vector.broadcast %cst_181 : f32 to vector<1x2xf32>
    %344 = arith.addf %343, %342 : vector<1x2xf32>
    %345 = arith.mulf %334, %344 : vector<1x2xf32>
    %c0_182 = arith.constant 0 : index
    %c0_183 = arith.constant 0 : index
    %346 = vector.load %arg21[%c0_182, %c0_183] : memref<2x64xf32, #tpu.memory_space<vmem>>, vector<2x64xf32>
    %347 = arith.truncf %345 : vector<1x2xf32> to vector<1x2xbf16>
    %348 = arith.truncf %346 : vector<2x64xf32> to vector<2x64xbf16>
    %cst_184 = arith.constant dense<0.000000e+00> : vector<1x64xf32>
    %349 = tpu.matmul %347, %348, %cst_184 {dimension_numbers = #tpu.dot_dimension_numbers<[1], [0], [0], [1], [0, 0, 1, 1], [], []>} : vector<1x2xbf16>, vector<2x64xbf16>, vector<1x64xf32> -> vector<1x64xf32>
    %cst_185 = arith.constant 0.000000e+00 : f32
    %350 = vector.broadcast %cst_185 : f32 to vector<1x64xf32>
    %351 = arith.subf %350, %349 : vector<1x64xf32>
    %352 = math.exp %351 : vector<1x64xf32>
    %cst_186 = arith.constant 1.000000e+00 : f32
    %353 = vector.broadcast %cst_186 : f32 to vector<1x64xf32>
    %354 = arith.addf %353, %352 : vector<1x64xf32>
    %355 = tpu.reciprocal %354 {approx = true} : vector<1x64xf32> -> vector<1x64xf32>
    %356 = vector.broadcast %355 : vector<1x64xf32> to vector<16x64xf32>
    %357 = arith.mulf %322, %356 : vector<16x64xf32>
    %358 = arith.addf %32, %357 : vector<16x64xf32>
    %359 = tpu.iota {dimensions = array<i32: 0>} : vector<8x16xi32>
    %360 = tpu.iota {dimensions = array<i32: 1>} : vector<8x16xi32>
    %c2_i32 = arith.constant 2 : i32
    %361 = vector.broadcast %c2_i32 : i32 to vector<8x16xi32>
    %362 = arith.muli %361, %359 : vector<8x16xi32>
    %363 = arith.cmpi eq, %360, %362 : vector<8x16xi32>
    %364 = arith.extui %363 : vector<8x16xi1> to vector<8x16xi32>
    %365 = arith.sitofp %364 : vector<8x16xi32> to vector<8x16xf32>
    %366 = arith.truncf %365 : vector<8x16xf32> to vector<8x16xbf16>
    %367 = arith.truncf %358 : vector<16x64xf32> to vector<16x64xbf16>
    %cst_187 = arith.constant dense<0.000000e+00> : vector<8x64xf32>
    %368 = tpu.matmul %366, %367, %cst_187 {dimension_numbers = #tpu.dot_dimension_numbers<[1], [0], [0], [1], [0, 0, 1, 1], [], []>} : vector<8x16xbf16>, vector<16x64xbf16>, vector<8x64xf32> -> vector<8x64xf32>
    %c2_i32_188 = arith.constant 2 : i32
    %369 = vector.broadcast %c2_i32_188 : i32 to vector<8x16xi32>
    %370 = arith.muli %369, %359 : vector<8x16xi32>
    %c1_i32 = arith.constant 1 : i32
    %371 = vector.broadcast %c1_i32 : i32 to vector<8x16xi32>
    %372 = arith.addi %370, %371 : vector<8x16xi32>
    %373 = arith.cmpi eq, %360, %372 : vector<8x16xi32>
    %374 = arith.extui %373 : vector<8x16xi1> to vector<8x16xi32>
    %375 = arith.sitofp %374 : vector<8x16xi32> to vector<8x16xf32>
    %376 = arith.truncf %375 : vector<8x16xf32> to vector<8x16xbf16>
    %377 = arith.truncf %358 : vector<16x64xf32> to vector<16x64xbf16>
    %cst_189 = arith.constant dense<0.000000e+00> : vector<8x64xf32>
    %378 = tpu.matmul %376, %377, %cst_189 {dimension_numbers = #tpu.dot_dimension_numbers<[1], [0], [0], [1], [0, 0, 1, 1], [], []>} : vector<8x16xbf16>, vector<16x64xbf16>, vector<8x64xf32> -> vector<8x64xf32>
    %c0_190 = arith.constant 0 : index
    %c0_191 = arith.constant 0 : index
    %379 = vector.load %arg25[%c0_190, %c0_191] : memref<1x64xf32, #tpu.memory_space<vmem>>, vector<1x64xf32>
    %c0_192 = arith.constant 0 : index
    %c0_193 = arith.constant 0 : index
    %c0_194 = arith.constant 0 : index
    %380 = vector.load %arg22[%c0_192, %c0_193, %c0_194] : memref<4x64x16xf32, #tpu.memory_space<vmem>>, vector<1x64x16xf32>
    %381 = vector.shape_cast %380 : vector<1x64x16xf32> to vector<64x16xf32>
    %382 = arith.truncf %215 : vector<1x64xf32> to vector<1x64xbf16>
    %383 = arith.truncf %381 : vector<64x16xf32> to vector<64x16xbf16>
    %cst_195 = arith.constant dense<0.000000e+00> : vector<1x16xf32>
    %384 = tpu.matmul %382, %383, %cst_195 {dimension_numbers = #tpu.dot_dimension_numbers<[1], [0], [0], [1], [0, 0, 1, 1], [], []>} : vector<1x64xbf16>, vector<64x16xbf16>, vector<1x16xf32> -> vector<1x16xf32>
    %c0_196 = arith.constant 0 : index
    %c0_197 = arith.constant 0 : index
    %c0_198 = arith.constant 0 : index
    %385 = vector.load %arg23[%c0_196, %c0_197, %c0_198] : memref<4x64x16xf32, #tpu.memory_space<vmem>>, vector<1x64x16xf32>
    %386 = vector.shape_cast %385 : vector<1x64x16xf32> to vector<64x16xf32>
    %387 = arith.truncf %368 : vector<8x64xf32> to vector<8x64xbf16>
    %388 = arith.truncf %386 : vector<64x16xf32> to vector<64x16xbf16>
    %cst_199 = arith.constant dense<0.000000e+00> : vector<8x16xf32>
    %389 = tpu.matmul %387, %388, %cst_199 {dimension_numbers = #tpu.dot_dimension_numbers<[1], [0], [0], [1], [0, 0, 1, 1], [], []>} : vector<8x64xbf16>, vector<64x16xbf16>, vector<8x16xf32> -> vector<8x16xf32>
    %c0_200 = arith.constant 0 : index
    %c0_201 = arith.constant 0 : index
    %c0_202 = arith.constant 0 : index
    %390 = vector.load %arg23[%c0_200, %c0_201, %c0_202] : memref<4x64x16xf32, #tpu.memory_space<vmem>>, vector<1x64x16xf32>
    %391 = vector.shape_cast %390 : vector<1x64x16xf32> to vector<64x16xf32>
    %392 = arith.truncf %378 : vector<8x64xf32> to vector<8x64xbf16>
    %393 = arith.truncf %391 : vector<64x16xf32> to vector<64x16xbf16>
    %cst_203 = arith.constant dense<0.000000e+00> : vector<8x16xf32>
    %394 = tpu.matmul %392, %393, %cst_203 {dimension_numbers = #tpu.dot_dimension_numbers<[1], [0], [0], [1], [0, 0, 1, 1], [], []>} : vector<8x64xbf16>, vector<64x16xbf16>, vector<8x16xf32> -> vector<8x16xf32>
    %395 = arith.truncf %384 : vector<1x16xf32> to vector<1x16xbf16>
    %396 = arith.truncf %389 : vector<8x16xf32> to vector<8x16xbf16>
    %cst_204 = arith.constant dense<0.000000e+00> : vector<1x8xf32>
    %397 = tpu.matmul %395, %396, %cst_204 {dimension_numbers = #tpu.dot_dimension_numbers<[1], [1], [0], [0], [0, 0, 1, 0], [], []>} : vector<1x16xbf16>, vector<8x16xbf16>, vector<1x8xf32> -> vector<1x8xf32>
    %cst_205 = arith.constant 2.500000e-01 : f32
    %398 = vector.broadcast %cst_205 : f32 to vector<1x8xf32>
    %399 = arith.mulf %397, %398 : vector<1x8xf32>
    %cst_206 = arith.constant dense<0xFF800000> : vector<1xf32>
    %400 = vector.multi_reduction <maximumf>, %399, %cst_206 [1] : vector<1x8xf32> to vector<1xf32>
    %401 = vector.shape_cast %400 : vector<1xf32> to vector<1x1xf32>
    %402 = vector.broadcast %401 : vector<1x1xf32> to vector<1x8xf32>
    %403 = arith.subf %399, %402 : vector<1x8xf32>
    %404 = math.exp %403 : vector<1x8xf32>
    %cst_207 = arith.constant dense<0.000000e+00> : vector<1xf32>
    %405 = vector.multi_reduction <add>, %404, %cst_207 [1] : vector<1x8xf32> to vector<1xf32>
    %406 = vector.shape_cast %405 : vector<1xf32> to vector<1x1xf32>
    %407 = tpu.reciprocal %406 {approx = true} : vector<1x1xf32> -> vector<1x1xf32>
    %408 = vector.broadcast %407 : vector<1x1xf32> to vector<1x8xf32>
    %409 = arith.mulf %404, %408 : vector<1x8xf32>
    %410 = arith.truncf %409 : vector<1x8xf32> to vector<1x8xbf16>
    %411 = arith.truncf %394 : vector<8x16xf32> to vector<8x16xbf16>
    %cst_208 = arith.constant dense<0.000000e+00> : vector<1x16xf32>
    %412 = tpu.matmul %410, %411, %cst_208 {dimension_numbers = #tpu.dot_dimension_numbers<[1], [0], [0], [1], [0, 0, 1, 1], [], []>} : vector<1x8xbf16>, vector<8x16xbf16>, vector<1x16xf32> -> vector<1x16xf32>
    %c0_209 = arith.constant 0 : index
    %c0_210 = arith.constant 0 : index
    %c0_211 = arith.constant 0 : index
    %413 = vector.load %arg24[%c0_209, %c0_210, %c0_211] : memref<4x16x64xf32, #tpu.memory_space<vmem>>, vector<1x16x64xf32>
    %414 = vector.shape_cast %413 : vector<1x16x64xf32> to vector<16x64xf32>
    %415 = arith.truncf %412 : vector<1x16xf32> to vector<1x16xbf16>
    %416 = arith.truncf %414 : vector<16x64xf32> to vector<16x64xbf16>
    %cst_212 = arith.constant dense<0.000000e+00> : vector<1x64xf32>
    %417 = tpu.matmul %415, %416, %cst_212 {dimension_numbers = #tpu.dot_dimension_numbers<[1], [0], [0], [1], [0, 0, 1, 1], [], []>} : vector<1x16xbf16>, vector<16x64xbf16>, vector<1x64xf32> -> vector<1x64xf32>
    %418 = arith.addf %379, %417 : vector<1x64xf32>
    %c1_213 = arith.constant 1 : index
    %c0_214 = arith.constant 0 : index
    %c0_215 = arith.constant 0 : index
    %419 = vector.load %arg22[%c1_213, %c0_214, %c0_215] : memref<4x64x16xf32, #tpu.memory_space<vmem>>, vector<1x64x16xf32>
    %420 = vector.shape_cast %419 : vector<1x64x16xf32> to vector<64x16xf32>
    %421 = arith.truncf %215 : vector<1x64xf32> to vector<1x64xbf16>
    %422 = arith.truncf %420 : vector<64x16xf32> to vector<64x16xbf16>
    %cst_216 = arith.constant dense<0.000000e+00> : vector<1x16xf32>
    %423 = tpu.matmul %421, %422, %cst_216 {dimension_numbers = #tpu.dot_dimension_numbers<[1], [0], [0], [1], [0, 0, 1, 1], [], []>} : vector<1x64xbf16>, vector<64x16xbf16>, vector<1x16xf32> -> vector<1x16xf32>
    %c1_217 = arith.constant 1 : index
    %c0_218 = arith.constant 0 : index
    %c0_219 = arith.constant 0 : index
    %424 = vector.load %arg23[%c1_217, %c0_218, %c0_219] : memref<4x64x16xf32, #tpu.memory_space<vmem>>, vector<1x64x16xf32>
    %425 = vector.shape_cast %424 : vector<1x64x16xf32> to vector<64x16xf32>
    %426 = arith.truncf %368 : vector<8x64xf32> to vector<8x64xbf16>
    %427 = arith.truncf %425 : vector<64x16xf32> to vector<64x16xbf16>
    %cst_220 = arith.constant dense<0.000000e+00> : vector<8x16xf32>
    %428 = tpu.matmul %426, %427, %cst_220 {dimension_numbers = #tpu.dot_dimension_numbers<[1], [0], [0], [1], [0, 0, 1, 1], [], []>} : vector<8x64xbf16>, vector<64x16xbf16>, vector<8x16xf32> -> vector<8x16xf32>
    %c1_221 = arith.constant 1 : index
    %c0_222 = arith.constant 0 : index
    %c0_223 = arith.constant 0 : index
    %429 = vector.load %arg23[%c1_221, %c0_222, %c0_223] : memref<4x64x16xf32, #tpu.memory_space<vmem>>, vector<1x64x16xf32>
    %430 = vector.shape_cast %429 : vector<1x64x16xf32> to vector<64x16xf32>
    %431 = arith.truncf %378 : vector<8x64xf32> to vector<8x64xbf16>
    %432 = arith.truncf %430 : vector<64x16xf32> to vector<64x16xbf16>
    %cst_224 = arith.constant dense<0.000000e+00> : vector<8x16xf32>
    %433 = tpu.matmul %431, %432, %cst_224 {dimension_numbers = #tpu.dot_dimension_numbers<[1], [0], [0], [1], [0, 0, 1, 1], [], []>} : vector<8x64xbf16>, vector<64x16xbf16>, vector<8x16xf32> -> vector<8x16xf32>
    %434 = arith.truncf %423 : vector<1x16xf32> to vector<1x16xbf16>
    %435 = arith.truncf %428 : vector<8x16xf32> to vector<8x16xbf16>
    %cst_225 = arith.constant dense<0.000000e+00> : vector<1x8xf32>
    %436 = tpu.matmul %434, %435, %cst_225 {dimension_numbers = #tpu.dot_dimension_numbers<[1], [1], [0], [0], [0, 0, 1, 0], [], []>} : vector<1x16xbf16>, vector<8x16xbf16>, vector<1x8xf32> -> vector<1x8xf32>
    %cst_226 = arith.constant 2.500000e-01 : f32
    %437 = vector.broadcast %cst_226 : f32 to vector<1x8xf32>
    %438 = arith.mulf %436, %437 : vector<1x8xf32>
    %cst_227 = arith.constant dense<0xFF800000> : vector<1xf32>
    %439 = vector.multi_reduction <maximumf>, %438, %cst_227 [1] : vector<1x8xf32> to vector<1xf32>
    %440 = vector.shape_cast %439 : vector<1xf32> to vector<1x1xf32>
    %441 = vector.broadcast %440 : vector<1x1xf32> to vector<1x8xf32>
    %442 = arith.subf %438, %441 : vector<1x8xf32>
    %443 = math.exp %442 : vector<1x8xf32>
    %cst_228 = arith.constant dense<0.000000e+00> : vector<1xf32>
    %444 = vector.multi_reduction <add>, %443, %cst_228 [1] : vector<1x8xf32> to vector<1xf32>
    %445 = vector.shape_cast %444 : vector<1xf32> to vector<1x1xf32>
    %446 = tpu.reciprocal %445 {approx = true} : vector<1x1xf32> -> vector<1x1xf32>
    %447 = vector.broadcast %446 : vector<1x1xf32> to vector<1x8xf32>
    %448 = arith.mulf %443, %447 : vector<1x8xf32>
    %449 = arith.truncf %448 : vector<1x8xf32> to vector<1x8xbf16>
    %450 = arith.truncf %433 : vector<8x16xf32> to vector<8x16xbf16>
    %cst_229 = arith.constant dense<0.000000e+00> : vector<1x16xf32>
    %451 = tpu.matmul %449, %450, %cst_229 {dimension_numbers = #tpu.dot_dimension_numbers<[1], [0], [0], [1], [0, 0, 1, 1], [], []>} : vector<1x8xbf16>, vector<8x16xbf16>, vector<1x16xf32> -> vector<1x16xf32>
    %c1_230 = arith.constant 1 : index
    %c0_231 = arith.constant 0 : index
    %c0_232 = arith.constant 0 : index
    %452 = vector.load %arg24[%c1_230, %c0_231, %c0_232] : memref<4x16x64xf32, #tpu.memory_space<vmem>>, vector<1x16x64xf32>
    %453 = vector.shape_cast %452 : vector<1x16x64xf32> to vector<16x64xf32>
    %454 = arith.truncf %451 : vector<1x16xf32> to vector<1x16xbf16>
    %455 = arith.truncf %453 : vector<16x64xf32> to vector<16x64xbf16>
    %cst_233 = arith.constant dense<0.000000e+00> : vector<1x64xf32>
    %456 = tpu.matmul %454, %455, %cst_233 {dimension_numbers = #tpu.dot_dimension_numbers<[1], [0], [0], [1], [0, 0, 1, 1], [], []>} : vector<1x16xbf16>, vector<16x64xbf16>, vector<1x64xf32> -> vector<1x64xf32>
    %457 = arith.addf %418, %456 : vector<1x64xf32>
    %c2_234 = arith.constant 2 : index
    %c0_235 = arith.constant 0 : index
    %c0_236 = arith.constant 0 : index
    %458 = vector.load %arg22[%c2_234, %c0_235, %c0_236] : memref<4x64x16xf32, #tpu.memory_space<vmem>>, vector<1x64x16xf32>
    %459 = vector.shape_cast %458 : vector<1x64x16xf32> to vector<64x16xf32>
    %460 = arith.truncf %215 : vector<1x64xf32> to vector<1x64xbf16>
    %461 = arith.truncf %459 : vector<64x16xf32> to vector<64x16xbf16>
    %cst_237 = arith.constant dense<0.000000e+00> : vector<1x16xf32>
    %462 = tpu.matmul %460, %461, %cst_237 {dimension_numbers = #tpu.dot_dimension_numbers<[1], [0], [0], [1], [0, 0, 1, 1], [], []>} : vector<1x64xbf16>, vector<64x16xbf16>, vector<1x16xf32> -> vector<1x16xf32>
    %c2_238 = arith.constant 2 : index
    %c0_239 = arith.constant 0 : index
    %c0_240 = arith.constant 0 : index
    %463 = vector.load %arg23[%c2_238, %c0_239, %c0_240] : memref<4x64x16xf32, #tpu.memory_space<vmem>>, vector<1x64x16xf32>
    %464 = vector.shape_cast %463 : vector<1x64x16xf32> to vector<64x16xf32>
    %465 = arith.truncf %368 : vector<8x64xf32> to vector<8x64xbf16>
    %466 = arith.truncf %464 : vector<64x16xf32> to vector<64x16xbf16>
    %cst_241 = arith.constant dense<0.000000e+00> : vector<8x16xf32>
    %467 = tpu.matmul %465, %466, %cst_241 {dimension_numbers = #tpu.dot_dimension_numbers<[1], [0], [0], [1], [0, 0, 1, 1], [], []>} : vector<8x64xbf16>, vector<64x16xbf16>, vector<8x16xf32> -> vector<8x16xf32>
    %c2_242 = arith.constant 2 : index
    %c0_243 = arith.constant 0 : index
    %c0_244 = arith.constant 0 : index
    %468 = vector.load %arg23[%c2_242, %c0_243, %c0_244] : memref<4x64x16xf32, #tpu.memory_space<vmem>>, vector<1x64x16xf32>
    %469 = vector.shape_cast %468 : vector<1x64x16xf32> to vector<64x16xf32>
    %470 = arith.truncf %378 : vector<8x64xf32> to vector<8x64xbf16>
    %471 = arith.truncf %469 : vector<64x16xf32> to vector<64x16xbf16>
    %cst_245 = arith.constant dense<0.000000e+00> : vector<8x16xf32>
    %472 = tpu.matmul %470, %471, %cst_245 {dimension_numbers = #tpu.dot_dimension_numbers<[1], [0], [0], [1], [0, 0, 1, 1], [], []>} : vector<8x64xbf16>, vector<64x16xbf16>, vector<8x16xf32> -> vector<8x16xf32>
    %473 = arith.truncf %462 : vector<1x16xf32> to vector<1x16xbf16>
    %474 = arith.truncf %467 : vector<8x16xf32> to vector<8x16xbf16>
    %cst_246 = arith.constant dense<0.000000e+00> : vector<1x8xf32>
    %475 = tpu.matmul %473, %474, %cst_246 {dimension_numbers = #tpu.dot_dimension_numbers<[1], [1], [0], [0], [0, 0, 1, 0], [], []>} : vector<1x16xbf16>, vector<8x16xbf16>, vector<1x8xf32> -> vector<1x8xf32>
    %cst_247 = arith.constant 2.500000e-01 : f32
    %476 = vector.broadcast %cst_247 : f32 to vector<1x8xf32>
    %477 = arith.mulf %475, %476 : vector<1x8xf32>
    %cst_248 = arith.constant dense<0xFF800000> : vector<1xf32>
    %478 = vector.multi_reduction <maximumf>, %477, %cst_248 [1] : vector<1x8xf32> to vector<1xf32>
    %479 = vector.shape_cast %478 : vector<1xf32> to vector<1x1xf32>
    %480 = vector.broadcast %479 : vector<1x1xf32> to vector<1x8xf32>
    %481 = arith.subf %477, %480 : vector<1x8xf32>
    %482 = math.exp %481 : vector<1x8xf32>
    %cst_249 = arith.constant dense<0.000000e+00> : vector<1xf32>
    %483 = vector.multi_reduction <add>, %482, %cst_249 [1] : vector<1x8xf32> to vector<1xf32>
    %484 = vector.shape_cast %483 : vector<1xf32> to vector<1x1xf32>
    %485 = tpu.reciprocal %484 {approx = true} : vector<1x1xf32> -> vector<1x1xf32>
    %486 = vector.broadcast %485 : vector<1x1xf32> to vector<1x8xf32>
    %487 = arith.mulf %482, %486 : vector<1x8xf32>
    %488 = arith.truncf %487 : vector<1x8xf32> to vector<1x8xbf16>
    %489 = arith.truncf %472 : vector<8x16xf32> to vector<8x16xbf16>
    %cst_250 = arith.constant dense<0.000000e+00> : vector<1x16xf32>
    %490 = tpu.matmul %488, %489, %cst_250 {dimension_numbers = #tpu.dot_dimension_numbers<[1], [0], [0], [1], [0, 0, 1, 1], [], []>} : vector<1x8xbf16>, vector<8x16xbf16>, vector<1x16xf32> -> vector<1x16xf32>
    %c2_251 = arith.constant 2 : index
    %c0_252 = arith.constant 0 : index
    %c0_253 = arith.constant 0 : index
    %491 = vector.load %arg24[%c2_251, %c0_252, %c0_253] : memref<4x16x64xf32, #tpu.memory_space<vmem>>, vector<1x16x64xf32>
    %492 = vector.shape_cast %491 : vector<1x16x64xf32> to vector<16x64xf32>
    %493 = arith.truncf %490 : vector<1x16xf32> to vector<1x16xbf16>
    %494 = arith.truncf %492 : vector<16x64xf32> to vector<16x64xbf16>
    %cst_254 = arith.constant dense<0.000000e+00> : vector<1x64xf32>
    %495 = tpu.matmul %493, %494, %cst_254 {dimension_numbers = #tpu.dot_dimension_numbers<[1], [0], [0], [1], [0, 0, 1, 1], [], []>} : vector<1x16xbf16>, vector<16x64xbf16>, vector<1x64xf32> -> vector<1x64xf32>
    %496 = arith.addf %457, %495 : vector<1x64xf32>
    %c3_255 = arith.constant 3 : index
    %c0_256 = arith.constant 0 : index
    %c0_257 = arith.constant 0 : index
    %497 = vector.load %arg22[%c3_255, %c0_256, %c0_257] : memref<4x64x16xf32, #tpu.memory_space<vmem>>, vector<1x64x16xf32>
    %498 = vector.shape_cast %497 : vector<1x64x16xf32> to vector<64x16xf32>
    %499 = arith.truncf %215 : vector<1x64xf32> to vector<1x64xbf16>
    %500 = arith.truncf %498 : vector<64x16xf32> to vector<64x16xbf16>
    %cst_258 = arith.constant dense<0.000000e+00> : vector<1x16xf32>
    %501 = tpu.matmul %499, %500, %cst_258 {dimension_numbers = #tpu.dot_dimension_numbers<[1], [0], [0], [1], [0, 0, 1, 1], [], []>} : vector<1x64xbf16>, vector<64x16xbf16>, vector<1x16xf32> -> vector<1x16xf32>
    %c3_259 = arith.constant 3 : index
    %c0_260 = arith.constant 0 : index
    %c0_261 = arith.constant 0 : index
    %502 = vector.load %arg23[%c3_259, %c0_260, %c0_261] : memref<4x64x16xf32, #tpu.memory_space<vmem>>, vector<1x64x16xf32>
    %503 = vector.shape_cast %502 : vector<1x64x16xf32> to vector<64x16xf32>
    %504 = arith.truncf %368 : vector<8x64xf32> to vector<8x64xbf16>
    %505 = arith.truncf %503 : vector<64x16xf32> to vector<64x16xbf16>
    %cst_262 = arith.constant dense<0.000000e+00> : vector<8x16xf32>
    %506 = tpu.matmul %504, %505, %cst_262 {dimension_numbers = #tpu.dot_dimension_numbers<[1], [0], [0], [1], [0, 0, 1, 1], [], []>} : vector<8x64xbf16>, vector<64x16xbf16>, vector<8x16xf32> -> vector<8x16xf32>
    %c3_263 = arith.constant 3 : index
    %c0_264 = arith.constant 0 : index
    %c0_265 = arith.constant 0 : index
    %507 = vector.load %arg23[%c3_263, %c0_264, %c0_265] : memref<4x64x16xf32, #tpu.memory_space<vmem>>, vector<1x64x16xf32>
    %508 = vector.shape_cast %507 : vector<1x64x16xf32> to vector<64x16xf32>
    %509 = arith.truncf %378 : vector<8x64xf32> to vector<8x64xbf16>
    %510 = arith.truncf %508 : vector<64x16xf32> to vector<64x16xbf16>
    %cst_266 = arith.constant dense<0.000000e+00> : vector<8x16xf32>
    %511 = tpu.matmul %509, %510, %cst_266 {dimension_numbers = #tpu.dot_dimension_numbers<[1], [0], [0], [1], [0, 0, 1, 1], [], []>} : vector<8x64xbf16>, vector<64x16xbf16>, vector<8x16xf32> -> vector<8x16xf32>
    %512 = arith.truncf %501 : vector<1x16xf32> to vector<1x16xbf16>
    %513 = arith.truncf %506 : vector<8x16xf32> to vector<8x16xbf16>
    %cst_267 = arith.constant dense<0.000000e+00> : vector<1x8xf32>
    %514 = tpu.matmul %512, %513, %cst_267 {dimension_numbers = #tpu.dot_dimension_numbers<[1], [1], [0], [0], [0, 0, 1, 0], [], []>} : vector<1x16xbf16>, vector<8x16xbf16>, vector<1x8xf32> -> vector<1x8xf32>
    %cst_268 = arith.constant 2.500000e-01 : f32
    %515 = vector.broadcast %cst_268 : f32 to vector<1x8xf32>
    %516 = arith.mulf %514, %515 : vector<1x8xf32>
    %cst_269 = arith.constant dense<0xFF800000> : vector<1xf32>
    %517 = vector.multi_reduction <maximumf>, %516, %cst_269 [1] : vector<1x8xf32> to vector<1xf32>
    %518 = vector.shape_cast %517 : vector<1xf32> to vector<1x1xf32>
    %519 = vector.broadcast %518 : vector<1x1xf32> to vector<1x8xf32>
    %520 = arith.subf %516, %519 : vector<1x8xf32>
    %521 = math.exp %520 : vector<1x8xf32>
    %cst_270 = arith.constant dense<0.000000e+00> : vector<1xf32>
    %522 = vector.multi_reduction <add>, %521, %cst_270 [1] : vector<1x8xf32> to vector<1xf32>
    %523 = vector.shape_cast %522 : vector<1xf32> to vector<1x1xf32>
    %524 = tpu.reciprocal %523 {approx = true} : vector<1x1xf32> -> vector<1x1xf32>
    %525 = vector.broadcast %524 : vector<1x1xf32> to vector<1x8xf32>
    %526 = arith.mulf %521, %525 : vector<1x8xf32>
    %527 = arith.truncf %526 : vector<1x8xf32> to vector<1x8xbf16>
    %528 = arith.truncf %511 : vector<8x16xf32> to vector<8x16xbf16>
    %cst_271 = arith.constant dense<0.000000e+00> : vector<1x16xf32>
    %529 = tpu.matmul %527, %528, %cst_271 {dimension_numbers = #tpu.dot_dimension_numbers<[1], [0], [0], [1], [0, 0, 1, 1], [], []>} : vector<1x8xbf16>, vector<8x16xbf16>, vector<1x16xf32> -> vector<1x16xf32>
    %c3_272 = arith.constant 3 : index
    %c0_273 = arith.constant 0 : index
    %c0_274 = arith.constant 0 : index
    %530 = vector.load %arg24[%c3_272, %c0_273, %c0_274] : memref<4x16x64xf32, #tpu.memory_space<vmem>>, vector<1x16x64xf32>
    %531 = vector.shape_cast %530 : vector<1x16x64xf32> to vector<16x64xf32>
    %532 = arith.truncf %529 : vector<1x16xf32> to vector<1x16xbf16>
    %533 = arith.truncf %531 : vector<16x64xf32> to vector<16x64xbf16>
    %cst_275 = arith.constant dense<0.000000e+00> : vector<1x64xf32>
    %534 = tpu.matmul %532, %533, %cst_275 {dimension_numbers = #tpu.dot_dimension_numbers<[1], [0], [0], [1], [0, 0, 1, 1], [], []>} : vector<1x16xbf16>, vector<16x64xbf16>, vector<1x64xf32> -> vector<1x64xf32>
    %535 = arith.addf %496, %534 : vector<1x64xf32>
    %c0_276 = arith.constant 0 : index
    %c0_277 = arith.constant 0 : index
    %536 = vector.load %arg26[%c0_276, %c0_277] : memref<1x64xf32, #tpu.memory_space<vmem>>, vector<1x64xf32>
    %c0_278 = arith.constant 0 : index
    %c0_279 = arith.constant 0 : index
    %537 = vector.load %arg27[%c0_278, %c0_279] : memref<1x64xf32, #tpu.memory_space<vmem>>, vector<1x64xf32>
    %cst_280 = arith.constant dense<0.000000e+00> : vector<1xf32>
    %538 = vector.multi_reduction <add>, %535, %cst_280 [1] : vector<1x64xf32> to vector<1xf32>
    %539 = vector.shape_cast %538 : vector<1xf32> to vector<1x1xf32>
    %cst_281 = arith.constant 6.400000e+01 : f32
    %540 = vector.broadcast %cst_281 : f32 to vector<1x1xf32>
    %541 = arith.divf %539, %540 : vector<1x1xf32>
    %542 = vector.broadcast %541 : vector<1x1xf32> to vector<1x64xf32>
    %543 = arith.subf %535, %542 : vector<1x64xf32>
    %544 = arith.mulf %543, %543 : vector<1x64xf32>
    %cst_282 = arith.constant dense<0.000000e+00> : vector<1xf32>
    %545 = vector.multi_reduction <add>, %544, %cst_282 [1] : vector<1x64xf32> to vector<1xf32>
    %546 = vector.shape_cast %545 : vector<1xf32> to vector<1x1xf32>
    %cst_283 = arith.constant 6.400000e+01 : f32
    %547 = vector.broadcast %cst_283 : f32 to vector<1x1xf32>
    %548 = arith.divf %546, %547 : vector<1x1xf32>
    %cst_284 = arith.constant 9.99999974E-6 : f32
    %549 = vector.broadcast %cst_284 : f32 to vector<1x1xf32>
    %550 = arith.addf %548, %549 : vector<1x1xf32>
    %551 = math.rsqrt %550 : vector<1x1xf32>
    %552 = vector.broadcast %551 : vector<1x1xf32> to vector<1x64xf32>
    %553 = arith.mulf %543, %552 : vector<1x64xf32>
    %554 = arith.mulf %553, %536 : vector<1x64xf32>
    %555 = arith.addf %554, %537 : vector<1x64xf32>
    %c0_285 = arith.constant 0 : index
    %c0_286 = arith.constant 0 : index
    %556 = vector.load %arg28[%c0_285, %c0_286] : memref<64x2xf32, #tpu.memory_space<vmem>>, vector<64x2xf32>
    %557 = arith.truncf %555 : vector<1x64xf32> to vector<1x64xbf16>
    %558 = arith.truncf %556 : vector<64x2xf32> to vector<64x2xbf16>
    %cst_287 = arith.constant dense<0.000000e+00> : vector<1x2xf32>
    %559 = tpu.matmul %557, %558, %cst_287 {dimension_numbers = #tpu.dot_dimension_numbers<[1], [0], [0], [1], [0, 0, 1, 1], [], []>} : vector<1x64xbf16>, vector<64x2xbf16>, vector<1x2xf32> -> vector<1x2xf32>
    %c0_288 = arith.constant 0 : index
    %c0_289 = arith.constant 0 : index
    %560 = vector.load %arg29[%c0_288, %c0_289] : memref<1x2xf32, #tpu.memory_space<vmem>>, vector<1x2xf32>
    %561 = arith.addf %559, %560 : vector<1x2xf32>
    %c0_290 = arith.constant 0 : index
    %c0_291 = arith.constant 0 : index
    %c0_292 = arith.constant 0 : index
    %562 = vector.load %arg30[%c0_290, %c0_291, %c0_292] : memref<1x1x2xf32, #tpu.memory_space<vmem>>, vector<1x1x2xf32>
    %563 = vector.shape_cast %562 : vector<1x1x2xf32> to vector<1x2xf32>
    %564 = vector.shape_cast %561 : vector<1x2xf32> to vector<1x1x2xf32>
    tpu.vector_store %arg30[%c0_290, %c0_291, %c0_292], %564 {strides = array<i32>} : memref<1x1x2xf32, #tpu.memory_space<vmem>>, vector<1x1x2xf32>,
    return
  }
  func.func @transform_0(%arg0: i32) -> (i32, i32, i32) {
    %c0_i32 = arith.constant 0 : i32
    %c0_i32_0 = arith.constant 0 : i32
    %c0_i32_1 = arith.constant 0 : i32
    return %arg0, %c0_i32, %c0_i32_0 : i32, i32, i32
  }
  func.func @transform_1(%arg0: i32) -> (i32, i32) {
    %c0_i32 = arith.constant 0 : i32
    %c0_i32_0 = arith.constant 0 : i32
    %c0_i32_1 = arith.constant 0 : i32
    return %c0_i32, %c0_i32_0 : i32, i32
  }
  func.func @transform_2(%arg0: i32) -> (i32, i32) {
    %c0_i32 = arith.constant 0 : i32
    %c0_i32_0 = arith.constant 0 : i32
    %c0_i32_1 = arith.constant 0 : i32
    return %c0_i32, %c0_i32_0 : i32, i32
  }
  func.func @transform_3(%arg0: i32) -> (i32, i32) {
    %c0_i32 = arith.constant 0 : i32
    %c0_i32_0 = arith.constant 0 : i32
    %c0_i32_1 = arith.constant 0 : i32
    return %c0_i32, %c0_i32_0 : i32, i32
  }
  func.func @transform_4(%arg0: i32) -> (i32, i32) {
    %c0_i32 = arith.constant 0 : i32
    %c0_i32_0 = arith.constant 0 : i32
    %c0_i32_1 = arith.constant 0 : i32
    return %c0_i32, %c0_i32_0 : i32, i32
  }
  func.func @transform_5(%arg0: i32) -> (i32, i32) {
    %c0_i32 = arith.constant 0 : i32
    %c0_i32_0 = arith.constant 0 : i32
    %c0_i32_1 = arith.constant 0 : i32
    return %c0_i32, %c0_i32_0 : i32, i32
  }
  func.func @transform_6(%arg0: i32) -> (i32, i32) {
    %c0_i32 = arith.constant 0 : i32
    %c0_i32_0 = arith.constant 0 : i32
    %c0_i32_1 = arith.constant 0 : i32
    return %c0_i32, %c0_i32_0 : i32, i32
  }
  func.func @transform_7(%arg0: i32) -> (i32, i32) {
    %c0_i32 = arith.constant 0 : i32
    %c0_i32_0 = arith.constant 0 : i32
    %c0_i32_1 = arith.constant 0 : i32
    return %c0_i32, %c0_i32_0 : i32, i32
  }
  func.func @transform_8(%arg0: i32) -> (i32, i32, i32) {
    %c0_i32 = arith.constant 0 : i32
    %c0_i32_0 = arith.constant 0 : i32
    %c0_i32_1 = arith.constant 0 : i32
    %c0_i32_2 = arith.constant 0 : i32
    return %c0_i32, %c0_i32_0, %c0_i32_1 : i32, i32, i32
  }
  func.func @transform_9(%arg0: i32) -> (i32, i32, i32) {
    %c0_i32 = arith.constant 0 : i32
    %c0_i32_0 = arith.constant 0 : i32
    %c0_i32_1 = arith.constant 0 : i32
    %c0_i32_2 = arith.constant 0 : i32
    return %c0_i32, %c0_i32_0, %c0_i32_1 : i32, i32, i32
  }
  func.func @transform_10(%arg0: i32) -> (i32, i32, i32) {
    %c0_i32 = arith.constant 0 : i32
    %c0_i32_0 = arith.constant 0 : i32
    %c0_i32_1 = arith.constant 0 : i32
    %c0_i32_2 = arith.constant 0 : i32
    return %c0_i32, %c0_i32_0, %c0_i32_1 : i32, i32, i32
  }
  func.func @transform_11(%arg0: i32) -> (i32, i32, i32) {
    %c0_i32 = arith.constant 0 : i32
    %c0_i32_0 = arith.constant 0 : i32
    %c0_i32_1 = arith.constant 0 : i32
    %c0_i32_2 = arith.constant 0 : i32
    return %c0_i32, %c0_i32_0, %c0_i32_1 : i32, i32, i32
  }
  func.func @transform_12(%arg0: i32) -> (i32, i32) {
    %c0_i32 = arith.constant 0 : i32
    %c0_i32_0 = arith.constant 0 : i32
    %c0_i32_1 = arith.constant 0 : i32
    return %c0_i32, %c0_i32_0 : i32, i32
  }
  func.func @transform_13(%arg0: i32) -> (i32, i32) {
    %c0_i32 = arith.constant 0 : i32
    %c0_i32_0 = arith.constant 0 : i32
    %c0_i32_1 = arith.constant 0 : i32
    return %c0_i32, %c0_i32_0 : i32, i32
  }
  func.func @transform_14(%arg0: i32) -> (i32, i32) {
    %c0_i32 = arith.constant 0 : i32
    %c0_i32_0 = arith.constant 0 : i32
    %c0_i32_1 = arith.constant 0 : i32
    return %c0_i32, %c0_i32_0 : i32, i32
  }
  func.func @transform_15(%arg0: i32) -> (i32, i32, i32) {
    %c0_i32 = arith.constant 0 : i32
    %c0_i32_0 = arith.constant 0 : i32
    %c0_i32_1 = arith.constant 0 : i32
    %c0_i32_2 = arith.constant 0 : i32
    return %c0_i32, %c0_i32_0, %c0_i32_1 : i32, i32, i32
  }
  func.func @transform_16(%arg0: i32) -> (i32, i32) {
    %c0_i32 = arith.constant 0 : i32
    %c0_i32_0 = arith.constant 0 : i32
    %c0_i32_1 = arith.constant 0 : i32
    return %c0_i32, %c0_i32_0 : i32, i32
  }
  func.func @transform_17(%arg0: i32) -> (i32, i32) {
    %c0_i32 = arith.constant 0 : i32
    %c0_i32_0 = arith.constant 0 : i32
    %c0_i32_1 = arith.constant 0 : i32
    return %c0_i32, %c0_i32_0 : i32, i32
  }
  func.func @transform_18(%arg0: i32) -> (i32, i32) {
    %c0_i32 = arith.constant 0 : i32
    %c0_i32_0 = arith.constant 0 : i32
    %c0_i32_1 = arith.constant 0 : i32
    return %c0_i32, %c0_i32_0 : i32, i32
  }
  func.func @transform_19(%arg0: i32) -> (i32, i32) {
    %c0_i32 = arith.constant 0 : i32
    %c0_i32_0 = arith.constant 0 : i32
    %c0_i32_1 = arith.constant 0 : i32
    return %c0_i32, %c0_i32_0 : i32, i32
  }
  func.func @transform_20(%arg0: i32) -> (i32, i32) {
    %c0_i32 = arith.constant 0 : i32
    %c0_i32_0 = arith.constant 0 : i32
    %c0_i32_1 = arith.constant 0 : i32
    return %c0_i32, %c0_i32_0 : i32, i32
  }
  func.func @transform_21(%arg0: i32) -> (i32, i32, i32) {
    %c0_i32 = arith.constant 0 : i32
    %c0_i32_0 = arith.constant 0 : i32
    %c0_i32_1 = arith.constant 0 : i32
    %c0_i32_2 = arith.constant 0 : i32
    return %c0_i32, %c0_i32_0, %c0_i32_1 : i32, i32, i32
  }
  func.func @transform_22(%arg0: i32) -> (i32, i32, i32) {
    %c0_i32 = arith.constant 0 : i32
    %c0_i32_0 = arith.constant 0 : i32
    %c0_i32_1 = arith.constant 0 : i32
    %c0_i32_2 = arith.constant 0 : i32
    return %c0_i32, %c0_i32_0, %c0_i32_1 : i32, i32, i32
  }
  func.func @transform_23(%arg0: i32) -> (i32, i32, i32) {
    %c0_i32 = arith.constant 0 : i32
    %c0_i32_0 = arith.constant 0 : i32
    %c0_i32_1 = arith.constant 0 : i32
    %c0_i32_2 = arith.constant 0 : i32
    return %c0_i32, %c0_i32_0, %c0_i32_1 : i32, i32, i32
  }
  func.func @transform_24(%arg0: i32) -> (i32, i32) {
    %c0_i32 = arith.constant 0 : i32
    %c0_i32_0 = arith.constant 0 : i32
    %c0_i32_1 = arith.constant 0 : i32
    return %c0_i32, %c0_i32_0 : i32, i32
  }
  func.func @transform_25(%arg0: i32) -> (i32, i32) {
    %c0_i32 = arith.constant 0 : i32
    %c0_i32_0 = arith.constant 0 : i32
    %c0_i32_1 = arith.constant 0 : i32
    return %c0_i32, %c0_i32_0 : i32, i32
  }
  func.func @transform_26(%arg0: i32) -> (i32, i32) {
    %c0_i32 = arith.constant 0 : i32
    %c0_i32_0 = arith.constant 0 : i32
    %c0_i32_1 = arith.constant 0 : i32
    return %c0_i32, %c0_i32_0 : i32, i32
  }
  func.func @transform_27(%arg0: i32) -> (i32, i32) {
    %c0_i32 = arith.constant 0 : i32
    %c0_i32_0 = arith.constant 0 : i32
    %c0_i32_1 = arith.constant 0 : i32
    return %c0_i32, %c0_i32_0 : i32, i32
  }
  func.func @transform_28(%arg0: i32) -> (i32, i32) {
    %c0_i32 = arith.constant 0 : i32
    %c0_i32_0 = arith.constant 0 : i32
    %c0_i32_1 = arith.constant 0 : i32
    return %c0_i32, %c0_i32_0 : i32, i32
  }
  func.func @transform_29(%arg0: i32) -> (i32, i32, i32) {
    %c0_i32 = arith.constant 0 : i32
    %c0_i32_0 = arith.constant 0 : i32
    %c0_i32_1 = arith.constant 0 : i32
    return %arg0, %c0_i32, %c0_i32_0 : i32, i32, i32
  }
}

</mosaic_0001>

<llo_original>
// kernel: nciemil_forward.1
$region0: #{nciemil_forward.1}
  #allocation0 [shape = 'u32[]', space=smem, size = 0x4, offset = 0x4, fixed_abs, tag = 'smem constant byte address 0x4 - core index']
  #allocation1 [shape = 'u32[72,128]{1,0:T(1,128)}', space=vmem, size = 0x9000, scoped, tag = 'internal scratch']
  %s0 = inlined_call_operand.smem [shape: u32[30], index: -1, kind: input, shape index: {}]
  %s1 = sld [smem:[%s0]]
  %s2 = scalar_lea.smem %s0, 1
  %s3 = sld [smem:[%s2]]
  %s4 = scalar_lea.smem %s0, 2
  %s5 = sld [smem:[%s4]]
  %s6 = scalar_lea.smem %s0, 3
  %s7 = sld [smem:[%s6]]
  %s8 = scalar_lea.smem %s0, 4
  %s9 = sld [smem:[%s8]]
  %s10 = scalar_lea.smem %s0, 5
  %s11 = sld [smem:[%s10]]
  %s12 = scalar_lea.smem %s0, 6
  %s13 = sld [smem:[%s12]]
  %s14 = scalar_lea.smem %s0, 7
  %s15 = sld [smem:[%s14]]
  %s16 = scalar_lea.smem %s0, 8
  %s17 = sld [smem:[%s16]]
  %s18 = scalar_lea.smem %s0, 9
  %s19 = sld [smem:[%s18]]
  %s20 = scalar_lea.smem %s0, 10
  %s21 = sld [smem:[%s20]]
  %s22 = scalar_lea.smem %s0, 11
  %s23 = sld [smem:[%s22]]
  %s24 = scalar_lea.smem %s0, 12
  %s25 = sld [smem:[%s24]]
  %s26 = scalar_lea.smem %s0, 13
  %s27 = sld [smem:[%s26]]
  %s28 = scalar_lea.smem %s0, 14
  %s29 = sld [smem:[%s28]]
  %s30 = scalar_lea.smem %s0, 15
  %s31 = sld [smem:[%s30]]
  %s32 = scalar_lea.smem %s0, 16
  %s33 = sld [smem:[%s32]]
  %s34 = scalar_lea.smem %s0, 17
  %s35 = sld [smem:[%s34]]
  %s36 = scalar_lea.smem %s0, 18
  %s37 = sld [smem:[%s36]]
  %s38 = scalar_lea.smem %s0, 19
  %s39 = sld [smem:[%s38]]
  %s40 = scalar_lea.smem %s0, 20
  %s41 = sld [smem:[%s40]]
  %s42 = scalar_lea.smem %s0, 21
  %s43 = sld [smem:[%s42]]
  %s44 = scalar_lea.smem %s0, 22
  %s45 = sld [smem:[%s44]]
  %s46 = scalar_lea.smem %s0, 23
  %s47 = sld [smem:[%s46]]
  %s48 = scalar_lea.smem %s0, 24
  %s49 = sld [smem:[%s48]]
  %s50 = scalar_lea.smem %s0, 25
  %s51 = sld [smem:[%s50]]
  %s52 = scalar_lea.smem %s0, 26
  %s53 = sld [smem:[%s52]]
  %s54 = scalar_lea.smem %s0, 27
  %s55 = sld [smem:[%s54]]
  %s56 = scalar_lea.smem %s0, 28
  %s57 = sld [smem:[%s56]]
  %s58 = scalar_lea.smem %s0, 29
  %s59 = sld [smem:[%s58]]
  %s60 = sld [smem:[#allocation0]]
  $region149: #{nciemil_forward.1} parent=0
    _
  %s62 = ssub.s32 1, %s60
  %s63 = scalar_select 0, %s62, %s60
  $region1: #{nciemil_forward.1} parent=0
    #allocation2 [shape = 'u8[1024]{0}', space=vmem, size = 0x400, scoped, tag = 'output window, operand 0']
    #allocation3 [shape = 's32[2]{0}', space=sflag, size = 0x8, scoped, tag = 'scoped memory for nciemil_forward.1']
    %64 = vsyncpa [#allocation3], 0
    %s65 = scalar_lea.sflag [#allocation3], 1
    %66 = vsyncpa %s65, 0
    loop: start=0, step=1, limit=4
    $region2: #{nciemil_forward.1} parent=1 // loop_pre_header
      _
    $region3: #{nciemil_forward.1} parent=1 // loop_header
      %s68 = sphi 0, %s72
      %p69 = scmp.ge.s32.totalorder %s68, 4
      %s78 = sphi 0, %s80
      %s81 = sphi 0, %s78
      %s82 = sphi 0, %s81
      %s98 = sphi 0, %s82
      %s102 = sphi 0, %s102
      %s104 = sphi 0, %s102
      %s105 = sphi 0, %s104
      %s119 = sphi 0, %s105
      %s123 = sphi 0, %s123
      %s125 = sphi 0, %s123
      %s126 = sphi 0, %s125
      %s140 = sphi 0, %s126
      %s144 = sphi 0, %s144
      %s146 = sphi 0, %s144
      %s147 = sphi 0, %s146
      %s161 = sphi 0, %s147
      %s165 = sphi 0, %s165
      %s167 = sphi 0, %s165
      %s168 = sphi 0, %s167
      %s182 = sphi 0, %s168
      %s186 = sphi 0, %s186
      %s188 = sphi 0, %s186
      %s189 = sphi 0, %s188
      %s203 = sphi 0, %s189
      %s207 = sphi 0, %s207
      %s209 = sphi 0, %s207
      %s210 = sphi 0, %s209
      %s224 = sphi 0, %s210
      %s228 = sphi 0, %s228
      %s230 = sphi 0, %s228
      %s231 = sphi 0, %s230
      %s245 = sphi 0, %s231
      %s249 = sphi 0, %s249
      %s251 = sphi 0, %s249
      %s252 = sphi 0, %s251
      %s266 = sphi 0, %s252
      %s270 = sphi 0, %s270
      %s272 = sphi 0, %s270
      %s273 = sphi 0, %s272
      %s287 = sphi 0, %s273
      %s291 = sphi 0, %s291
      %s293 = sphi 0, %s291
      %s294 = sphi 0, %s293
      %s308 = sphi 0, %s294
      %s312 = sphi 0, %s312
      %s314 = sphi 0, %s312
      %s315 = sphi 0, %s314
      %s329 = sphi 0, %s315
      %s333 = sphi 0, %s333
      %s335 = sphi 0, %s333
      %s336 = sphi 0, %s335
      %s350 = sphi 0, %s336
      %s354 = sphi 0, %s354
      %s356 = sphi 0, %s354
      %s357 = sphi 0, %s356
      %s371 = sphi 0, %s357
      %s375 = sphi 0, %s375
      %s377 = sphi 0, %s375
      %s378 = sphi 0, %s377
      %s392 = sphi 0, %s378
      %s396 = sphi 0, %s396
      %s398 = sphi 0, %s396
      %s399 = sphi 0, %s398
      %s413 = sphi 0, %s399
      %s417 = sphi 0, %s417
      %s419 = sphi 0, %s417
      %s420 = sphi 0, %s419
      %s434 = sphi 0, %s420
      %s438 = sphi 0, %s438
      %s440 = sphi 0, %s438
      %s441 = sphi 0, %s440
      %s455 = sphi 0, %s441
      %s459 = sphi 0, %s459
      %s461 = sphi 0, %s459
      %s462 = sphi 0, %s461
      %s476 = sphi 0, %s462
      %s480 = sphi 0, %s480
      %s482 = sphi 0, %s480
      %s483 = sphi 0, %s482
      %s497 = sphi 0, %s483
      %s501 = sphi 0, %s501
      %s503 = sphi 0, %s501
      %s504 = sphi 0, %s503
      %s518 = sphi 0, %s504
      %s522 = sphi 0, %s522
      %s524 = sphi 0, %s522
      %s525 = sphi 0, %s524
      %s539 = sphi 0, %s525
      %s543 = sphi 0, %s543
      %s545 = sphi 0, %s543
      %s546 = sphi 0, %s545
      %s560 = sphi 0, %s546
      %s564 = sphi 0, %s564
      %s566 = sphi 0, %s564
      %s567 = sphi 0, %s566
      %s581 = sphi 0, %s567
      %s585 = sphi 0, %s585
      %s587 = sphi 0, %s585
      %s588 = sphi 0, %s587
      %s602 = sphi 0, %s588
      %s606 = sphi 0, %s606
      %s608 = sphi 0, %s606
      %s609 = sphi 0, %s608
      %s623 = sphi 0, %s609
      %s627 = sphi 0, %s627
      %s629 = sphi 0, %s627
      %s630 = sphi 0, %s629
      %s644 = sphi 0, %s630
      %s648 = sphi 0, %s648
      %s650 = sphi 0, %s648
      %s651 = sphi 0, %s650
      %s665 = sphi 0, %s651
      %s669 = sphi 0, %s669
      %s671 = sphi 0, %s669
      %s672 = sphi 0, %s671
      %s686 = sphi 0, %s672
      %s692 = sphi 0, %s694
      %s695 = sphi 0, %s692
      %s696 = sphi 0, %s695
      %s712 = sphi 0, %s696
    $region4: #{nciemil_forward.1} parent=1 // loop_header_branch
      %71 = sbr.rel (%p69) target = $region8
    $region5: #{nciemil_forward.1} parent=1 // loop_body
      %s73 = ssub.s32 %s68, 1
      %s74 = ssub.s32 %s68, 2
      %s75 = sadd.s32 %s68, 1
      %s76 = ssub.s32 %s68, %s75
      %p77 = scmp.eq.s32.totalorder %s76, 0
      %s79 = sadd.s32 %s78, 1
      %s80 = scalar_select %p77, %s78, %s79
      %p83 = pneg %p77
      %p84 = scmp.eq.s32.totalorder %s68, 1
      %p85 = por %p83, %p84
      %p86 = scmp.ne.s32.totalorder %s78, %s81
      %p87 = scmp.eq.s32.totalorder %s68, 0
      %p88 = por %p86, %p87
      %p89 = scmp.ne.s32.totalorder %s78, %s81
      %p90 = scmp.eq.s32.totalorder %s73, 1
      %p91 = por %p89, %p90
      %p92 = scmp.ne.s32.totalorder %s81, %s82
      %p93 = scmp.eq.s32.totalorder %s73, 0
      %p94 = por %p92, %p93
      %p95 = scmp.ne.s32.totalorder %s81, %s82
      %p96 = scmp.eq.s32.totalorder %s74, 1
      %p97 = por %p95, %p96
      %p99 = scmp.ne.s32.totalorder %s82, %s98
      %p100 = scmp.eq.s32.totalorder %s74, 0
      %p101 = por %p99, %p100
      %s103 = sadd.s32 %s102, 1
      %p106 = scmp.eq.s32.totalorder %s68, 1
      %p107 = scmp.ne.s32.totalorder %s102, %s104
      %p108 = scmp.eq.s32.totalorder %s68, 0
      %p109 = por %p107, %p108
      %p110 = scmp.ne.s32.totalorder %s102, %s104
      %p111 = scmp.eq.s32.totalorder %s73, 1
      %p112 = por %p110, %p111
      %p113 = scmp.ne.s32.totalorder %s104, %s105
      %p114 = scmp.eq.s32.totalorder %s73, 0
      %p115 = por %p113, %p114
      %p116 = scmp.ne.s32.totalorder %s104, %s105
      %p117 = scmp.eq.s32.totalorder %s74, 1
      %p118 = por %p116, %p117
      %p120 = scmp.ne.s32.totalorder %s105, %s119
      %p121 = scmp.eq.s32.totalorder %s74, 0
      %p122 = por %p120, %p121
      %s124 = sadd.s32 %s123, 1
      %p127 = scmp.eq.s32.totalorder %s68, 1
      %p128 = scmp.ne.s32.totalorder %s123, %s125
      %p129 = scmp.eq.s32.totalorder %s68, 0
      %p130 = por %p128, %p129
      %p131 = scmp.ne.s32.totalorder %s123, %s125
      %p132 = scmp.eq.s32.totalorder %s73, 1
      %p133 = por %p131, %p132
      %p134 = scmp.ne.s32.totalorder %s125, %s126
      %p135 = scmp.eq.s32.totalorder %s73, 0
      %p136 = por %p134, %p135
      %p137 = scmp.ne.s32.totalorder %s125, %s126
      %p138 = scmp.eq.s32.totalorder %s74, 1
      %p139 = por %p137, %p138
      %p141 = scmp.ne.s32.totalorder %s126, %s140
      %p142 = scmp.eq.s32.totalorder %s74, 0
      %p143 = por %p141, %p142
      %s145 = sadd.s32 %s144, 1
      %p148 = scmp.eq.s32.totalorder %s68, 1
      %p149 = scmp.ne.s32.totalorder %s144, %s146
      %p150 = scmp.eq.s32.totalorder %s68, 0
      %p151 = por %p149, %p150
      %p152 = scmp.ne.s32.totalorder %s144, %s146
      %p153 = scmp.eq.s32.totalorder %s73, 1
      %p154 = por %p152, %p153
      %p155 = scmp.ne.s32.totalorder %s146, %s147
      %p156 = scmp.eq.s32.totalorder %s73, 0
      %p157 = por %p155, %p156
      %p158 = scmp.ne.s32.totalorder %s146, %s147
      %p159 = scmp.eq.s32.totalorder %s74, 1
      %p160 = por %p158, %p159
      %p162 = scmp.ne.s32.totalorder %s147, %s161
      %p163 = scmp.eq.s32.totalorder %s74, 0
      %p164 = por %p162, %p163
      %s166 = sadd.s32 %s165, 1
      %p169 = scmp.eq.s32.totalorder %s68, 1
      %p170 = scmp.ne.s32.totalorder %s165, %s167
      %p171 = scmp.eq.s32.totalorder %s68, 0
      %p172 = por %p170, %p171
      %p173 = scmp.ne.s32.totalorder %s165, %s167
      %p174 = scmp.eq.s32.totalorder %s73, 1
      %p175 = por %p173, %p174
      %p176 = scmp.ne.s32.totalorder %s167, %s168
      %p177 = scmp.eq.s32.totalorder %s73, 0
      %p178 = por %p176, %p177
      %p179 = scmp.ne.s32.totalorder %s167, %s168
      %p180 = scmp.eq.s32.totalorder %s74, 1
      %p181 = por %p179, %p180
      %p183 = scmp.ne.s32.totalorder %s168, %s182
      %p184 = scmp.eq.s32.totalorder %s74, 0
      %p185 = por %p183, %p184
      %s187 = sadd.s32 %s186, 1
      %p190 = scmp.eq.s32.totalorder %s68, 1
      %p191 = scmp.ne.s32.totalorder %s186, %s188
      %p192 = scmp.eq.s32.totalorder %s68, 0
      %p193 = por %p191, %p192
      %p194 = scmp.ne.s32.totalorder %s186, %s188
      %p195 = scmp.eq.s32.totalorder %s73, 1
      %p196 = por %p194, %p195
      %p197 = scmp.ne.s32.totalorder %s188, %s189
      %p198 = scmp.eq.s32.totalorder %s73, 0
      %p199 = por %p197, %p198
      %p200 = scmp.ne.s32.totalorder %s188, %s189
      %p201 = scmp.eq.s32.totalorder %s74, 1
      %p202 = por %p200, %p201
      %p204 = scmp.ne.s32.totalorder %s189, %s203
      %p205 = scmp.eq.s32.totalorder %s74, 0
      %p206 = por %p204, %p205
      %s208 = sadd.s32 %s207, 1
      %p211 = scmp.eq.s32.totalorder %s68, 1
      %p212 = scmp.ne.s32.totalorder %s207, %s209
      %p213 = scmp.eq.s32.totalorder %s68, 0
      %p214 = por %p212, %p213
      %p215 = scmp.ne.s32.totalorder %s207, %s209
      %p216 = scmp.eq.s32.totalorder %s73, 1
      %p217 = por %p215, %p216
      %p218 = scmp.ne.s32.totalorder %s209, %s210
      %p219 = scmp.eq.s32.totalorder %s73, 0
      %p220 = por %p218, %p219
      %p221 = scmp.ne.s32.totalorder %s209, %s210
      %p222 = scmp.eq.s32.totalorder %s74, 1
      %p223 = por %p221, %p222
      %p225 = scmp.ne.s32.totalorder %s210, %s224
      %p226 = scmp.eq.s32.totalorder %s74, 0
      %p227 = por %p225, %p226
      %s229 = sadd.s32 %s228, 1
      %p232 = scmp.eq.s32.totalorder %s68, 1
      %p233 = scmp.ne.s32.totalorder %s228, %s230
      %p234 = scmp.eq.s32.totalorder %s68, 0
      %p235 = por %p233, %p234
      %p236 = scmp.ne.s32.totalorder %s228, %s230
      %p237 = scmp.eq.s32.totalorder %s73, 1
      %p238 = por %p236, %p237
      %p239 = scmp.ne.s32.totalorder %s230, %s231
      %p240 = scmp.eq.s32.totalorder %s73, 0
      %p241 = por %p239, %p240
      %p242 = scmp.ne.s32.totalorder %s230, %s231
      %p243 = scmp.eq.s32.totalorder %s74, 1
      %p244 = por %p242, %p243
      %p246 = scmp.ne.s32.totalorder %s231, %s245
      %p247 = scmp.eq.s32.totalorder %s74, 0
      %p248 = por %p246, %p247
      %s250 = sadd.s32 %s249, 1
      %p253 = scmp.eq.s32.totalorder %s68, 1
      %p254 = scmp.ne.s32.totalorder %s249, %s251
      %p255 = scmp.eq.s32.totalorder %s68, 0
      %p256 = por %p254, %p255
      %p257 = scmp.ne.s32.totalorder %s249, %s251
      %p258 = scmp.eq.s32.totalorder %s73, 1
      %p259 = por %p257, %p258
      %p260 = scmp.ne.s32.totalorder %s251, %s252
      %p261 = scmp.eq.s32.totalorder %s73, 0
      %p262 = por %p260, %p261
      %p263 = scmp.ne.s32.totalorder %s251, %s252
      %p264 = scmp.eq.s32.totalorder %s74, 1
      %p265 = por %p263, %p264
      %p267 = scmp.ne.s32.totalorder %s252, %s266
      %p268 = scmp.eq.s32.totalorder %s74, 0
      %p269 = por %p267, %p268
      %s271 = sadd.s32 %s270, 1
      %p274 = scmp.eq.s32.totalorder %s68, 1
      %p275 = scmp.ne.s32.totalorder %s270, %s272
      %p276 = scmp.eq.s32.totalorder %s68, 0
      %p277 = por %p275, %p276
      %p278 = scmp.ne.s32.totalorder %s270, %s272
      %p279 = scmp.eq.s32.totalorder %s73, 1
      %p280 = por %p278, %p279
      %p281 = scmp.ne.s32.totalorder %s272, %s273
      %p282 = scmp.eq.s32.totalorder %s73, 0
      %p283 = por %p281, %p282
      %p284 = scmp.ne.s32.totalorder %s272, %s273
      %p285 = scmp.eq.s32.totalorder %s74, 1
      %p286 = por %p284, %p285
      %p288 = scmp.ne.s32.totalorder %s273, %s287
      %p289 = scmp.eq.s32.totalorder %s74, 0
      %p290 = por %p288, %p289
      %s292 = sadd.s32 %s291, 1
      %p295 = scmp.eq.s32.totalorder %s68, 1
      %p296 = scmp.ne.s32.totalorder %s291, %s293
      %p297 = scmp.eq.s32.totalorder %s68, 0
      %p298 = por %p296, %p297
      %p299 = scmp.ne.s32.totalorder %s291, %s293
      %p300 = scmp.eq.s32.totalorder %s73, 1
      %p301 = por %p299, %p300
      %p302 = scmp.ne.s32.totalorder %s293, %s294
      %p303 = scmp.eq.s32.totalorder %s73, 0
      %p304 = por %p302, %p303
      %p305 = scmp.ne.s32.totalorder %s293, %s294
      %p306 = scmp.eq.s32.totalorder %s74, 1
      %p307 = por %p305, %p306
      %p309 = scmp.ne.s32.totalorder %s294, %s308
      %p310 = scmp.eq.s32.totalorder %s74, 0
      %p311 = por %p309, %p310
      %s313 = sadd.s32 %s312, 1
      %p316 = scmp.eq.s32.totalorder %s68, 1
      %p317 = scmp.ne.s32.totalorder %s312, %s314
      %p318 = scmp.eq.s32.totalorder %s68, 0
      %p319 = por %p317, %p318
      %p320 = scmp.ne.s32.totalorder %s312, %s314
      %p321 = scmp.eq.s32.totalorder %s73, 1
      %p322 = por %p320, %p321
      %p323 = scmp.ne.s32.totalorder %s314, %s315
      %p324 = scmp.eq.s32.totalorder %s73, 0
      %p325 = por %p323, %p324
      %p326 = scmp.ne.s32.totalorder %s314, %s315
      %p327 = scmp.eq.s32.totalorder %s74, 1
      %p328 = por %p326, %p327
      %p330 = scmp.ne.s32.totalorder %s315, %s329
      %p331 = scmp.eq.s32.totalorder %s74, 0
      %p332 = por %p330, %p331
      %s334 = sadd.s32 %s333, 1
      %p337 = scmp.eq.s32.totalorder %s68, 1
      %p338 = scmp.ne.s32.totalorder %s333, %s335
      %p339 = scmp.eq.s32.totalorder %s68, 0
      %p340 = por %p338, %p339
      %p341 = scmp.ne.s32.totalorder %s333, %s335
      %p342 = scmp.eq.s32.totalorder %s73, 1
      %p343 = por %p341, %p342
      %p344 = scmp.ne.s32.totalorder %s335, %s336
      %p345 = scmp.eq.s32.totalorder %s73, 0
      %p346 = por %p344, %p345
      %p347 = scmp.ne.s32.totalorder %s335, %s336
      %p348 = scmp.eq.s32.totalorder %s74, 1
      %p349 = por %p347, %p348
      %p351 = scmp.ne.s32.totalorder %s336, %s350
      %p352 = scmp.eq.s32.totalorder %s74, 0
      %p353 = por %p351, %p352
      %s355 = sadd.s32 %s354, 1
      %p358 = scmp.eq.s32.totalorder %s68, 1
      %p359 = scmp.ne.s32.totalorder %s354, %s356
      %p360 = scmp.eq.s32.totalorder %s68, 0
      %p361 = por %p359, %p360
      %p362 = scmp.ne.s32.totalorder %s354, %s356
      %p363 = scmp.eq.s32.totalorder %s73, 1
      %p364 = por %p362, %p363
      %p365 = scmp.ne.s32.totalorder %s356, %s357
      %p366 = scmp.eq.s32.totalorder %s73, 0
      %p367 = por %p365, %p366
      %p368 = scmp.ne.s32.totalorder %s356, %s357
      %p369 = scmp.eq.s32.totalorder %s74, 1
      %p370 = por %p368, %p369
      %p372 = scmp.ne.s32.totalorder %s357, %s371
      %p373 = scmp.eq.s32.totalorder %s74, 0
      %p374 = por %p372, %p373
      %s376 = sadd.s32 %s375, 1
      %p379 = scmp.eq.s32.totalorder %s68, 1
      %p380 = scmp.ne.s32.totalorder %s375, %s377
      %p381 = scmp.eq.s32.totalorder %s68, 0
      %p382 = por %p380, %p381
      %p383 = scmp.ne.s32.totalorder %s375, %s377
      %p384 = scmp.eq.s32.totalorder %s73, 1
      %p385 = por %p383, %p384
      %p386 = scmp.ne.s32.totalorder %s377, %s378
      %p387 = scmp.eq.s32.totalorder %s73, 0
      %p388 = por %p386, %p387
      %p389 = scmp.ne.s32.totalorder %s377, %s378
      %p390 = scmp.eq.s32.totalorder %s74, 1
      %p391 = por %p389, %p390
      %p393 = scmp.ne.s32.totalorder %s378, %s392
      %p394 = scmp.eq.s32.totalorder %s74, 0
      %p395 = por %p393, %p394
      %s397 = sadd.s32 %s396, 1
      %p400 = scmp.eq.s32.totalorder %s68, 1
      %p401 = scmp.ne.s32.totalorder %s396, %s398
      %p402 = scmp.eq.s32.totalorder %s68, 0
      %p403 = por %p401, %p402
      %p404 = scmp.ne.s32.totalorder %s396, %s398
      %p405 = scmp.eq.s32.totalorder %s73, 1
      %p406 = por %p404, %p405
      %p407 = scmp.ne.s32.totalorder %s398, %s399
      %p408 = scmp.eq.s32.totalorder %s73, 0
      %p409 = por %p407, %p408
      %p410 = scmp.ne.s32.totalorder %s398, %s399
      %p411 = scmp.eq.s32.totalorder %s74, 1
      %p412 = por %p410, %p411
      %p414 = scmp.ne.s32.totalorder %s399, %s413
      %p415 = scmp.eq.s32.totalorder %s74, 0
      %p416 = por %p414, %p415
      %s418 = sadd.s32 %s417, 1
      %p421 = scmp.eq.s32.totalorder %s68, 1
      %p422 = scmp.ne.s32.totalorder %s417, %s419
      %p423 = scmp.eq.s32.totalorder %s68, 0
      %p424 = por %p422, %p423
      %p425 = scmp.ne.s32.totalorder %s417, %s419
      %p426 = scmp.eq.s32.totalorder %s73, 1
      %p427 = por %p425, %p426
      %p428 = scmp.ne.s32.totalorder %s419, %s420
      %p429 = scmp.eq.s32.totalorder %s73, 0
      %p430 = por %p428, %p429
      %p431 = scmp.ne.s32.totalorder %s419, %s420
      %p432 = scmp.eq.s32.totalorder %s74, 1
      %p433 = por %p431, %p432
      %p435 = scmp.ne.s32.totalorder %s420, %s434
      %p436 = scmp.eq.s32.totalorder %s74, 0
      %p437 = por %p435, %p436
      %s439 = sadd.s32 %s438, 1
      %p442 = scmp.eq.s32.totalorder %s68, 1
      %p443 = scmp.ne.s32.totalorder %s438, %s440
      %p444 = scmp.eq.s32.totalorder %s68, 0
      %p445 = por %p443, %p444
      %p446 = scmp.ne.s32.totalorder %s438, %s440
      %p447 = scmp.eq.s32.totalorder %s73, 1
      %p448 = por %p446, %p447
      %p449 = scmp.ne.s32.totalorder %s440, %s441
      %p450 = scmp.eq.s32.totalorder %s73, 0
      %p451 = por %p449, %p450
      %p452 = scmp.ne.s32.totalorder %s440, %s441
      %p453 = scmp.eq.s32.totalorder %s74, 1
      %p454 = por %p452, %p453
      %p456 = scmp.ne.s32.totalorder %s441, %s455
      %p457 = scmp.eq.s32.totalorder %s74, 0
      %p458 = por %p456, %p457
      %s460 = sadd.s32 %s459, 1
      %p463 = scmp.eq.s32.totalorder %s68, 1
      %p464 = scmp.ne.s32.totalorder %s459, %s461
      %p465 = scmp.eq.s32.totalorder %s68, 0
      %p466 = por %p464, %p465
      %p467 = scmp.ne.s32.totalorder %s459, %s461
      %p468 = scmp.eq.s32.totalorder %s73, 1
      %p469 = por %p467, %p468
      %p470 = scmp.ne.s32.totalorder %s461, %s462
      %p471 = scmp.eq.s32.totalorder %s73, 0
      %p472 = por %p470, %p471
      %p473 = scmp.ne.s32.totalorder %s461, %s462
      %p474 = scmp.eq.s32.totalorder %s74, 1
      %p475 = por %p473, %p474
      %p477 = scmp.ne.s32.totalorder %s462, %s476
      %p478 = scmp.eq.s32.totalorder %s74, 0
      %p479 = por %p477, %p478
      %s481 = sadd.s32 %s480, 1
      %p484 = scmp.eq.s32.totalorder %s68, 1
      %p485 = scmp.ne.s32.totalorder %s480, %s482
      %p486 = scmp.eq.s32.totalorder %s68, 0
      %p487 = por %p485, %p486
      %p488 = scmp.ne.s32.totalorder %s480, %s482
      %p489 = scmp.eq.s32.totalorder %s73, 1
      %p490 = por %p488, %p489
      %p491 = scmp.ne.s32.totalorder %s482, %s483
      %p492 = scmp.eq.s32.totalorder %s73, 0
      %p493 = por %p491, %p492
      %p494 = scmp.ne.s32.totalorder %s482, %s483
      %p495 = scmp.eq.s32.totalorder %s74, 1
      %p496 = por %p494, %p495
      %p498 = scmp.ne.s32.totalorder %s483, %s497
      %p499 = scmp.eq.s32.totalorder %s74, 0
      %p500 = por %p498, %p499
      %s502 = sadd.s32 %s501, 1
      %p505 = scmp.eq.s32.totalorder %s68, 1
      %p506 = scmp.ne.s32.totalorder %s501, %s503
      %p507 = scmp.eq.s32.totalorder %s68, 0
      %p508 = por %p506, %p507
      %p509 = scmp.ne.s32.totalorder %s501, %s503
      %p510 = scmp.eq.s32.totalorder %s73, 1
      %p511 = por %p509, %p510
      %p512 = scmp.ne.s32.totalorder %s503, %s504
      %p513 = scmp.eq.s32.totalorder %s73, 0
      %p514 = por %p512, %p513
      %p515 = scmp.ne.s32.totalorder %s503, %s504
      %p516 = scmp.eq.s32.totalorder %s74, 1
      %p517 = por %p515, %p516
      %p519 = scmp.ne.s32.totalorder %s504, %s518
      %p520 = scmp.eq.s32.totalorder %s74, 0
      %p521 = por %p519, %p520
      %s523 = sadd.s32 %s522, 1
      %p526 = scmp.eq.s32.totalorder %s68, 1
      %p527 = scmp.ne.s32.totalorder %s522, %s524
      %p528 = scmp.eq.s32.totalorder %s68, 0
      %p529 = por %p527, %p528
      %p530 = scmp.ne.s32.totalorder %s522, %s524
      %p531 = scmp.eq.s32.totalorder %s73, 1
      %p532 = por %p530, %p531
      %p533 = scmp.ne.s32.totalorder %s524, %s525
      %p534 = scmp.eq.s32.totalorder %s73, 0
      %p535 = por %p533, %p534
      %p536 = scmp.ne.s32.totalorder %s524, %s525
      %p537 = scmp.eq.s32.totalorder %s74, 1
      %p538 = por %p536, %p537
      %p540 = scmp.ne.s32.totalorder %s525, %s539
      %p541 = scmp.eq.s32.totalorder %s74, 0
      %p542 = por %p540, %p541
      %s544 = sadd.s32 %s543, 1
      %p547 = scmp.eq.s32.totalorder %s68, 1
      %p548 = scmp.ne.s32.totalorder %s543, %s545
      %p549 = scmp.eq.s32.totalorder %s68, 0
      %p550 = por %p548, %p549
      %p551 = scmp.ne.s32.totalorder %s543, %s545
      %p552 = scmp.eq.s32.totalorder %s73, 1
      %p553 = por %p551, %p552
      %p554 = scmp.ne.s32.totalorder %s545, %s546
      %p555 = scmp.eq.s32.totalorder %s73, 0
      %p556 = por %p554, %p555
      %p557 = scmp.ne.s32.totalorder %s545, %s546
      %p558 = scmp.eq.s32.totalorder %s74, 1
      %p559 = por %p557, %p558
      %p561 = scmp.ne.s32.totalorder %s546, %s560
      %p562 = scmp.eq.s32.totalorder %s74, 0
      %p563 = por %p561, %p562
      %s565 = sadd.s32 %s564, 1
      %p568 = scmp.eq.s32.totalorder %s68, 1
      %p569 = scmp.ne.s32.totalorder %s564, %s566
      %p570 = scmp.eq.s32.totalorder %s68, 0
      %p571 = por %p569, %p570
      %p572 = scmp.ne.s32.totalorder %s564, %s566
      %p573 = scmp.eq.s32.totalorder %s73, 1
      %p574 = por %p572, %p573
      %p575 = scmp.ne.s32.totalorder %s566, %s567
      %p576 = scmp.eq.s32.totalorder %s73, 0
      %p577 = por %p575, %p576
      %p578 = scmp.ne.s32.totalorder %s566, %s567
      %p579 = scmp.eq.s32.totalorder %s74, 1
      %p580 = por %p578, %p579
      %p582 = scmp.ne.s32.totalorder %s567, %s581
      %p583 = scmp.eq.s32.totalorder %s74, 0
      %p584 = por %p582, %p583
      %s586 = sadd.s32 %s585, 1
      %p589 = scmp.eq.s32.totalorder %s68, 1
      %p590 = scmp.ne.s32.totalorder %s585, %s587
      %p591 = scmp.eq.s32.totalorder %s68, 0
      %p592 = por %p590, %p591
      %p593 = scmp.ne.s32.totalorder %s585, %s587
      %p594 = scmp.eq.s32.totalorder %s73, 1
      %p595 = por %p593, %p594
      %p596 = scmp.ne.s32.totalorder %s587, %s588
      %p597 = scmp.eq.s32.totalorder %s73, 0
      %p598 = por %p596, %p597
      %p599 = scmp.ne.s32.totalorder %s587, %s588
      %p600 = scmp.eq.s32.totalorder %s74, 1
      %p601 = por %p599, %p600
      %p603 = scmp.ne.s32.totalorder %s588, %s602
      %p604 = scmp.eq.s32.totalorder %s74, 0
      %p605 = por %p603, %p604
      %s607 = sadd.s32 %s606, 1
      %p610 = scmp.eq.s32.totalorder %s68, 1
      %p611 = scmp.ne.s32.totalorder %s606, %s608
      %p612 = scmp.eq.s32.totalorder %s68, 0
      %p613 = por %p611, %p612
      %p614 = scmp.ne.s32.totalorder %s606, %s608
      %p615 = scmp.eq.s32.totalorder %s73, 1
      %p616 = por %p614, %p615
      %p617 = scmp.ne.s32.totalorder %s608, %s609
      %p618 = scmp.eq.s32.totalorder %s73, 0
      %p619 = por %p617, %p618
      %p620 = scmp.ne.s32.totalorder %s608, %s609
      %p621 = scmp.eq.s32.totalorder %s74, 1
      %p622 = por %p620, %p621
      %p624 = scmp.ne.s32.totalorder %s609, %s623
      %p625 = scmp.eq.s32.totalorder %s74, 0
      %p626 = por %p624, %p625
      %s628 = sadd.s32 %s627, 1
      %p631 = scmp.eq.s32.totalorder %s68, 1
      %p632 = scmp.ne.s32.totalorder %s627, %s629
      %p633 = scmp.eq.s32.totalorder %s68, 0
      %p634 = por %p632, %p633
      %p635 = scmp.ne.s32.totalorder %s627, %s629
      %p636 = scmp.eq.s32.totalorder %s73, 1
      %p637 = por %p635, %p636
      %p638 = scmp.ne.s32.totalorder %s629, %s630
      %p639 = scmp.eq.s32.totalorder %s73, 0
      %p640 = por %p638, %p639
      %p641 = scmp.ne.s32.totalorder %s629, %s630
      %p642 = scmp.eq.s32.totalorder %s74, 1
      %p643 = por %p641, %p642
      %p645 = scmp.ne.s32.totalorder %s630, %s644
      %p646 = scmp.eq.s32.totalorder %s74, 0
      %p647 = por %p645, %p646
      %s649 = sadd.s32 %s648, 1
      %p652 = scmp.eq.s32.totalorder %s68, 1
      %p653 = scmp.ne.s32.totalorder %s648, %s650
      %p654 = scmp.eq.s32.totalorder %s68, 0
      %p655 = por %p653, %p654
      %p656 = scmp.ne.s32.totalorder %s648, %s650
      %p657 = scmp.eq.s32.totalorder %s73, 1
      %p658 = por %p656, %p657
      %p659 = scmp.ne.s32.totalorder %s650, %s651
      %p660 = scmp.eq.s32.totalorder %s73, 0
      %p661 = por %p659, %p660
      %p662 = scmp.ne.s32.totalorder %s650, %s651
      %p663 = scmp.eq.s32.totalorder %s74, 1
      %p664 = por %p662, %p663
      %p666 = scmp.ne.s32.totalorder %s651, %s665
      %p667 = scmp.eq.s32.totalorder %s74, 0
      %p668 = por %p666, %p667
      %s670 = sadd.s32 %s669, 1
      %p673 = scmp.eq.s32.totalorder %s68, 1
      %p674 = scmp.ne.s32.totalorder %s669, %s671
      %p675 = scmp.eq.s32.totalorder %s68, 0
      %p676 = por %p674, %p675
      %p677 = scmp.ne.s32.totalorder %s669, %s671
      %p678 = scmp.eq.s32.totalorder %s73, 1
      %p679 = por %p677, %p678
      %p680 = scmp.ne.s32.totalorder %s671, %s672
      %p681 = scmp.eq.s32.totalorder %s73, 0
      %p682 = por %p680, %p681
      %p683 = scmp.ne.s32.totalorder %s671, %s672
      %p684 = scmp.eq.s32.totalorder %s74, 1
      %p685 = por %p683, %p684
      %p687 = scmp.ne.s32.totalorder %s672, %s686
      %p688 = scmp.eq.s32.totalorder %s74, 0
      %p689 = por %p687, %p688
      %s690 = ssub.s32 %s68, %s75
      %p691 = scmp.eq.s32.totalorder %s690, 0
      %s693 = sadd.s32 %s692, 1
      %s694 = scalar_select %p691, %s692, %s693
      %p697 = pneg %p691
      %p698 = scmp.eq.s32.totalorder %s68, 1
      %p699 = por %p697, %p698
      %p700 = scmp.ne.s32.totalorder %s692, %s695
      %p701 = scmp.eq.s32.totalorder %s68, 0
      %p702 = por %p700, %p701
      %p703 = scmp.ne.s32.totalorder %s692, %s695
      %p704 = scmp.eq.s32.totalorder %s73, 1
      %p705 = por %p703, %p704
      %p706 = scmp.ne.s32.totalorder %s695, %s696
      %p707 = scmp.eq.s32.totalorder %s73, 0
      %p708 = por %p706, %p707
      %p709 = scmp.ne.s32.totalorder %s695, %s696
      %p710 = scmp.eq.s32.totalorder %s74, 1
      %p711 = por %p709, %p710
      %p713 = scmp.ne.s32.totalorder %s696, %s712
      %p714 = scmp.eq.s32.totalorder %s74, 0
      %p715 = por %p713, %p714
      %p716 = scmp.le.s32.totalorder 1, %s68
      %p717 = scmp.lt.s32.totalorder %s68, 3
      %p718 = pnand %p716, %p717
      %p719 = pneg %p718
      // Predicated region
      $region9: #{nciemil_forward.1} parent=5 // pred_check
        _
      $region10: #{nciemil_forward.1} parent=5 // pred_check_branch
        %721 = sbr.rel (%p718) target = $region12
      $region11: #{nciemil_forward.1} parent=5 // pred_region
        %s722 = ssub.s32 %s68, 1
        // Predicated region
        $region13: #{nciemil_forward.1} parent=11 // pred_check
          %p723 = pneg %p115
        $region14: #{nciemil_forward.1} parent=11 // pred_check_branch
          %725 = sbr.rel (%p723) target = $region16
        $region15: #{nciemil_forward.1} parent=11 // pred_region
          _
        $region16: #{nciemil_forward.1} parent=11 // pred_fallthru
          _
        // Predicated region
        $region17: #{nciemil_forward.1} parent=11 // pred_check
          %p726 = pneg %p136
        $region18: #{nciemil_forward.1} parent=11 // pred_check_branch
          %728 = sbr.rel (%p726) target = $region20
        $region19: #{nciemil_forward.1} parent=11 // pred_region
          _
        $region20: #{nciemil_forward.1} parent=11 // pred_fallthru
          _
        // Predicated region
        $region21: #{nciemil_forward.1} parent=11 // pred_check
          %p729 = pneg %p157
        $region22: #{nciemil_forward.1} parent=11 // pred_check_branch
          %731 = sbr.rel (%p729) target = $region24
        $region23: #{nciemil_forward.1} parent=11 // pred_region
          _
        $region24: #{nciemil_forward.1} parent=11 // pred_fallthru
          _
        // Predicated region
        $region25: #{nciemil_forward.1} parent=11 // pred_check
          %p732 = pneg %p178
        $region26: #{nciemil_forward.1} parent=11 // pred_check_branch
          %734 = sbr.rel (%p732) target = $region28
        $region27: #{nciemil_forward.1} parent=11 // pred_region
          _
        $region28: #{nciemil_forward.1} parent=11 // pred_fallthru
          _
        // Predicated region
        $region29: #{nciemil_forward.1} parent=11 // pred_check
          %p735 = pneg %p199
        $region30: #{nciemil_forward.1} parent=11 // pred_check_branch
          %737 = sbr.rel (%p735) target = $region32
        $region31: #{nciemil_forward.1} parent=11 // pred_region
          _
        $region32: #{nciemil_forward.1} parent=11 // pred_fallthru
          _
        // Predicated region
        $region33: #{nciemil_forward.1} parent=11 // pred_check
          %p738 = pneg %p220
        $region34: #{nciemil_forward.1} parent=11 // pred_check_branch
          %740 = sbr.rel (%p738) target = $region36
        $region35: #{nciemil_forward.1} parent=11 // pred_region
          _
        $region36: #{nciemil_forward.1} parent=11 // pred_fallthru
          _
        // Predicated region
        $region37: #{nciemil_forward.1} parent=11 // pred_check
          %p741 = pneg %p241
        $region38: #{nciemil_forward.1} parent=11 // pred_check_branch
          %743 = sbr.rel (%p741) target = $region40
        $region39: #{nciemil_forward.1} parent=11 // pred_region
          _
        $region40: #{nciemil_forward.1} parent=11 // pred_fallthru
          _
        // Predicated region
        $region41: #{nciemil_forward.1} parent=11 // pred_check
          %p744 = pneg %p262
        $region42: #{nciemil_forward.1} parent=11 // pred_check_branch
          %746 = sbr.rel (%p744) target = $region44
        $region43: #{nciemil_forward.1} parent=11 // pred_region
          _
        $region44: #{nciemil_forward.1} parent=11 // pred_fallthru
          _
        // Predicated region
        $region45: #{nciemil_forward.1} parent=11 // pred_check
          %p747 = pneg %p283
        $region46: #{nciemil_forward.1} parent=11 // pred_check_branch
          %749 = sbr.rel (%p747) target = $region48
        $region47: #{nciemil_forward.1} parent=11 // pred_region
          _
        $region48: #{nciemil_forward.1} parent=11 // pred_fallthru
          _
        // Predicated region
        $region49: #{nciemil_forward.1} parent=11 // pred_check
          %p750 = pneg %p304
        $region50: #{nciemil_forward.1} parent=11 // pred_check_branch
          %752 = sbr.rel (%p750) target = $region52
        $region51: #{nciemil_forward.1} parent=11 // pred_region
          _
        $region52: #{nciemil_forward.1} parent=11 // pred_fallthru
          _
        // Predicated region
        $region53: #{nciemil_forward.1} parent=11 // pred_check
          %p753 = pneg %p325
        $region54: #{nciemil_forward.1} parent=11 // pred_check_branch
          %755 = sbr.rel (%p753) target = $region56
        $region55: #{nciemil_forward.1} parent=11 // pred_region
          _
        $region56: #{nciemil_forward.1} parent=11 // pred_fallthru
          _
        // Predicated region
        $region57: #{nciemil_forward.1} parent=11 // pred_check
          %p756 = pneg %p346
        $region58: #{nciemil_forward.1} parent=11 // pred_check_branch
          %758 = sbr.rel (%p756) target = $region60
        $region59: #{nciemil_forward.1} parent=11 // pred_region
          _
        $region60: #{nciemil_forward.1} parent=11 // pred_fallthru
          _
        // Predicated region
        $region61: #{nciemil_forward.1} parent=11 // pred_check
          %p759 = pneg %p367
        $region62: #{nciemil_forward.1} parent=11 // pred_check_branch
          %761 = sbr.rel (%p759) target = $region64
        $region63: #{nciemil_forward.1} parent=11 // pred_region
          _
        $region64: #{nciemil_forward.1} parent=11 // pred_fallthru
          _
        // Predicated region
        $region65: #{nciemil_forward.1} parent=11 // pred_check
          %p762 = pneg %p388
        $region66: #{nciemil_forward.1} parent=11 // pred_check_branch
          %764 = sbr.rel (%p762) target = $region68
        $region67: #{nciemil_forward.1} parent=11 // pred_region
          _
        $region68: #{nciemil_forward.1} parent=11 // pred_fallthru
          _
        // Predicated region
        $region69: #{nciemil_forward.1} parent=11 // pred_check
          %p765 = pneg %p409
        $region70: #{nciemil_forward.1} parent=11 // pred_check_branch
          %767 = sbr.rel (%p765) target = $region72
        $region71: #{nciemil_forward.1} parent=11 // pred_region
          _
        $region72: #{nciemil_forward.1} parent=11 // pred_fallthru
          _
        // Predicated region
        $region73: #{nciemil_forward.1} parent=11 // pred_check
          %p768 = pneg %p430
        $region74: #{nciemil_forward.1} parent=11 // pred_check_branch
          %770 = sbr.rel (%p768) target = $region76
        $region75: #{nciemil_forward.1} parent=11 // pred_region
          _
        $region76: #{nciemil_forward.1} parent=11 // pred_fallthru
          _
        // Predicated region
        $region77: #{nciemil_forward.1} parent=11 // pred_check
          %p771 = pneg %p451
        $region78: #{nciemil_forward.1} parent=11 // pred_check_branch
          %773 = sbr.rel (%p771) target = $region80
        $region79: #{nciemil_forward.1} parent=11 // pred_region
          _
        $region80: #{nciemil_forward.1} parent=11 // pred_fallthru
          _
        // Predicated region
        $region81: #{nciemil_forward.1} parent=11 // pred_check
          %p774 = pneg %p472
        $region82: #{nciemil_forward.1} parent=11 // pred_check_branch
          %776 = sbr.rel (%p774) target = $region84
        $region83: #{nciemil_forward.1} parent=11 // pred_region
          _
        $region84: #{nciemil_forward.1} parent=11 // pred_fallthru
          _
        // Predicated region
        $region85: #{nciemil_forward.1} parent=11 // pred_check
          %p777 = pneg %p493
        $region86: #{nciemil_forward.1} parent=11 // pred_check_branch
          %779 = sbr.rel (%p777) target = $region88
        $region87: #{nciemil_forward.1} parent=11 // pred_region
          _
        $region88: #{nciemil_forward.1} parent=11 // pred_fallthru
          _
        // Predicated region
        $region89: #{nciemil_forward.1} parent=11 // pred_check
          %p780 = pneg %p514
        $region90: #{nciemil_forward.1} parent=11 // pred_check_branch
          %782 = sbr.rel (%p780) target = $region92
        $region91: #{nciemil_forward.1} parent=11 // pred_region
          _
        $region92: #{nciemil_forward.1} parent=11 // pred_fallthru
          _
        // Predicated region
        $region93: #{nciemil_forward.1} parent=11 // pred_check
          %p783 = pneg %p535
        $region94: #{nciemil_forward.1} parent=11 // pred_check_branch
          %785 = sbr.rel (%p783) target = $region96
        $region95: #{nciemil_forward.1} parent=11 // pred_region
          _
        $region96: #{nciemil_forward.1} parent=11 // pred_fallthru
          _
        // Predicated region
        $region97: #{nciemil_forward.1} parent=11 // pred_check
          %p786 = pneg %p556
        $region98: #{nciemil_forward.1} parent=11 // pred_check_branch
          %788 = sbr.rel (%p786) target = $region100
        $region99: #{nciemil_forward.1} parent=11 // pred_region
          _
        $region100: #{nciemil_forward.1} parent=11 // pred_fallthru
          _
        // Predicated region
        $region101: #{nciemil_forward.1} parent=11 // pred_check
          %p789 = pneg %p577
        $region102: #{nciemil_forward.1} parent=11 // pred_check_branch
          %791 = sbr.rel (%p789) target = $region104
        $region103: #{nciemil_forward.1} parent=11 // pred_region
          _
        $region104: #{nciemil_forward.1} parent=11 // pred_fallthru
          _
        // Predicated region
        $region105: #{nciemil_forward.1} parent=11 // pred_check
          %p792 = pneg %p598
        $region106: #{nciemil_forward.1} parent=11 // pred_check_branch
          %794 = sbr.rel (%p792) target = $region108
        $region107: #{nciemil_forward.1} parent=11 // pred_region
          _
        $region108: #{nciemil_forward.1} parent=11 // pred_fallthru
          _
        // Predicated region
        $region109: #{nciemil_forward.1} parent=11 // pred_check
          %p795 = pneg %p619
        $region110: #{nciemil_forward.1} parent=11 // pred_check_branch
          %797 = sbr.rel (%p795) target = $region112
        $region111: #{nciemil_forward.1} parent=11 // pred_region
          _
        $region112: #{nciemil_forward.1} parent=11 // pred_fallthru
          _
        // Predicated region
        $region113: #{nciemil_forward.1} parent=11 // pred_check
          %p798 = pneg %p640
        $region114: #{nciemil_forward.1} parent=11 // pred_check_branch
          %800 = sbr.rel (%p798) target = $region116
        $region115: #{nciemil_forward.1} parent=11 // pred_region
          _
        $region116: #{nciemil_forward.1} parent=11 // pred_fallthru
          _
        // Predicated region
        $region117: #{nciemil_forward.1} parent=11 // pred_check
          %p801 = pneg %p661
        $region118: #{nciemil_forward.1} parent=11 // pred_check_branch
          %803 = sbr.rel (%p801) target = $region120
        $region119: #{nciemil_forward.1} parent=11 // pred_region
          _
        $region120: #{nciemil_forward.1} parent=11 // pred_fallthru
          _
        // Predicated region
        $region121: #{nciemil_forward.1} parent=11 // pred_check
          %p804 = pneg %p682
        $region122: #{nciemil_forward.1} parent=11 // pred_check_branch
          %806 = sbr.rel (%p804) target = $region124
        $region123: #{nciemil_forward.1} parent=11 // pred_region
          _
        $region124: #{nciemil_forward.1} parent=11 // pred_fallthru
          _
      $region12: #{nciemil_forward.1} parent=5 // pred_fallthru
        _
      %p807 = scmp.lt.s32.totalorder %s68, 2
      // Predicated region
      $region125: #{nciemil_forward.1} parent=5 // pred_check
        %p808 = pneg %p807
      $region126: #{nciemil_forward.1} parent=5 // pred_check_branch
        %810 = sbr.rel (%p808) target = $region128
      $region127: #{nciemil_forward.1} parent=5 // pred_region
        // Predicated region
        $region129: #{nciemil_forward.1} parent=127 // pred_check
          %p811 = pneg %p88
        $region130: #{nciemil_forward.1} parent=127 // pred_check_branch
          %813 = sbr.rel (%p811) target = $region132
        $region131: #{nciemil_forward.1} parent=127 // pred_region
          %p814 = scmp.lt.s32.totalorder %s68, 1
          %s815 = scalar_select %p814, %s68, 1
          %s816 = smul.addr %s815, 2
          %s817 = smul.addr %s816, 8
          %s818 = scalar_lea.vmem %s1, %s817
        $region132: #{nciemil_forward.1} parent=127 // pred_fallthru
          _
      $region128: #{nciemil_forward.1} parent=5 // pred_fallthru
        _
      %p819 = scmp.le.s32.totalorder 1, %s68
      %p820 = scmp.lt.s32.totalorder %s68, 3
      %p821 = pnand %p819, %p820
      %p822 = pneg %p821
      // Predicated region
      $region133: #{nciemil_forward.1} parent=5 // pred_check
        _
      $region134: #{nciemil_forward.1} parent=5 // pred_check_branch
        %824 = sbr.rel (%p821) target = $region136
      $region135: #{nciemil_forward.1} parent=5 // pred_region
        %s825 = ssub.s32 %s68, 1
        %p826 = scmp.lt.s32.totalorder %s73, 1
        %s827 = scalar_select %p826, %s73, 1
        %s828 = smul.addr %s827, 2
        %s829 = smul.addr %s828, 8
        %s830 = scalar_lea.vmem %s1, %s829
        %p831 = pneg %p94
        %p832 = pneg %p91
        %p833 = pneg %p115
        %p834 = pneg %p112
        %p835 = pneg %p136
        %p836 = pneg %p133
        %p837 = pneg %p157
        %p838 = pneg %p154
        %p839 = pneg %p178
        %p840 = pneg %p175
        %p841 = pneg %p199
        %p842 = pneg %p196
        %p843 = pneg %p220
        %p844 = pneg %p217
        %p845 = pneg %p241
        %p846 = pneg %p238
        %p847 = pneg %p262
        %p848 = pneg %p259
        %p849 = pneg %p283
        %p850 = pneg %p280
        %p851 = pneg %p304
        %p852 = pneg %p301
        %p853 = pneg %p325
        %p854 = pneg %p322
        %p855 = pneg %p346
        %p856 = pneg %p343
        %p857 = pneg %p367
        %p858 = pneg %p364
        %p859 = pneg %p388
        %p860 = pneg %p385
        %p861 = pneg %p409
        %p862 = pneg %p406
        %p863 = pneg %p430
        %p864 = pneg %p427
        %p865 = pneg %p451
        %p866 = pneg %p448
        %p867 = pneg %p472
        %p868 = pneg %p469
        %p869 = pneg %p493
        %p870 = pneg %p490
        %p871 = pneg %p514
        %p872 = pneg %p511
        %p873 = pneg %p535
        %p874 = pneg %p532
        %p875 = pneg %p556
        %p876 = pneg %p553
        %p877 = pneg %p577
        %p878 = pneg %p574
        %p879 = pneg %p598
        %p880 = pneg %p595
        %p881 = pneg %p619
        %p882 = pneg %p616
        %p883 = pneg %p640
        %p884 = pneg %p637
        %p885 = pneg %p661
        %p886 = pneg %p658
        %p887 = pneg %p682
        %p888 = pneg %p679
        %p889 = pneg %p708
        %p890 = pneg %p705
        %s891 = sand.u32 %s695, 1
        %s892 = scalar_lea.sflag [#allocation3], %s891
        %s893 = sand.u32 %s695, 1
        %s894 = scalar_lea.vmem [#allocation2], %s893
        %p895 = scmp.lt.s32.totalorder %s73, 1
        %s896 = scalar_select %p895, %s73, 1
        %s897 = smul.addr %s896, 2
        %s898 = smul.addr %s897, 8
        %s899 = scalar_lea.vmem %s1, %s898
        %v901 = vld [vmem:[%s899] sm:$0xff]
        %v902 = vld [vmem:[%s899 + $0x8] sm:$0xff]
        %v903 = vld [vmem:[%s3] sm:$0xff]
        %v904 = vld [vmem:[%s3 + $0x8] sm:$0xff]
        %v905 = vld [vmem:[%s3 + $0x10] sm:$0xff]
        %v906 = vld [vmem:[%s3 + $0x18] sm:$0xff]
        %v907 = vpack.c.bf16 %v902, %v901
        %v908 = vpack.c.bf16 %v904, %v903
        %v909 = vpack.c.bf16 %v906, %v905
        %v910 = vld [vmem:[%s5] sm:$0x1]
        %v912 = vperm.slane %v910, 0
        %vm914 = vcmask 261120
        %v916 = vsel %vm914, %v907, 0
        %918 = vmatpush.bf16.msra.mxu0 0
        %919 = vmatpush.bf16.msra.mxu0 0
        %920 = vmatpush.bf16.msra.mxu0 0
        %921 = vmatpush.bf16.msra.mxu0 0
        %922 = vmatpush.bf16.msra.mxu0 0
        %923 = vmatpush.bf16.msra.mxu0 0
        %924 = vmatpush.bf16.msra.mxu0 %v909
        %925 = vmatpush.bf16.msra.mxu0 %v908
        %926 = vmatmul.bf16.gmra.mxu0 %v916
        %v927 = vpop.f32.mrf.mxu0
        %v928 = vadd.f32 %v912, %v927
        %v929 = vpop.f32.mrf.mxu0
        %v930 = vadd.f32 %v912, %v929
        %931 = vdwg.mxu0
        %v932 = vmax.f32 %v928, 0.0
        %v933 = vmax.f32 %v930, 0.0
        %v934 = vld [vmem:[%s7] sm:$0x1]
        %v935 = vld [vmem:[%s9] sm:$0x1]
        %vm936 = vcmask 523264
        %v937 = vsel %vm936, %v932, 0.0
        %938 = vadd.xlane.f32.xlu0 %v937
        %v939 = vpop.xlane.xlu0 %938
        %v940 = vsel %vm936, %v933, 0.0
        %941 = vadd.xlane.f32.xlu0 %v940
        %v942 = vpop.xlane.xlu0 %941
        %v943 = vrcp.pop 64.0
        %v944 = vmul.f32 64.0, %v943
        %v945 = vsub.f32 1.0, %v944
        %v946 = vmul.f32 %v943, %v945
        %v947 = vadd.f32 %v943, %v946
        %vm948 = vweird.f32 %v943
        %v949 = vsel %vm948, %v943, %v947
        %v950 = vmul.f32 %v939, %v949
        %v951 = vmul.f32 %v942, %v949
        %v952 = vsub.f32 %v932, %v950
        %v953 = vsub.f32 %v933, %v951
        %v954 = vmul.f32 %v952, %v952
        %v955 = vmul.f32 %v953, %v953
        %v956 = vsel %vm936, %v954, 0.0
        %957 = vadd.xlane.f32.xlu0 %v956
        %v958 = vpop.xlane.xlu0 %957
        %v959 = vsel %vm936, %v955, 0.0
        %960 = vadd.xlane.f32.xlu0 %v959
        %v961 = vpop.xlane.xlu0 %960
        %v962 = vmul.f32 %v958, %v949
        %v963 = vmul.f32 %v961, %v949
        %v964 = vadd.f32 %v962, 1e-05
        %v965 = vadd.f32 %v963, 1e-05
        %v966 = vrsqrt.pop %v964
        %v967 = vmul.f32 %v966, %v964
        %v968 = vmul.f32 %v967, %v966
        %v969 = vmul.f32 0.5, %v968
        %v970 = vsub.f32 1.5, %v969
        %v971 = vmul.f32 %v966, %v970
        %vm972 = vweird.f32 %v964
        %vm973 = vweird.f32 %v966
        %vm974 = vmor %vm972, %vm973
        %v975 = vsel %vm974, %v966, %v971
        %v976 = vrsqrt.pop %v965
        %v977 = vmul.f32 %v976, %v965
        %v978 = vmul.f32 %v977, %v976
        %v979 = vmul.f32 0.5, %v978
        %v980 = vsub.f32 1.5, %v979
        %v981 = vmul.f32 %v976, %v980
        %vm982 = vweird.f32 %v965
        %vm983 = vweird.f32 %v976
        %vm984 = vmor %vm982, %vm983
        %v985 = vsel %vm984, %v976, %v981
        %v986 = vmul.f32 %v952, %v975
        %v987 = vmul.f32 %v953, %v985
        %v989 = vperm.slane %v934, 0
        %v991 = vmul.f32 %v986, %v989
        %v992 = vmul.f32 %v987, %v989
        %v994 = vperm.slane %v935, 0
        %v996 = vadd.f32 %v991, %v994
        %v997 = vadd.f32 %v992, %v994
        %v998 = vld [vmem:[%s11] sm:$0x1]
        %vm1001 = vcmask 1040384
        %v1002 = vrot.slane %v996, 7
        %v1003 = vrot.slane %v997, 7
        %v1004 = vsel %vm1001, %v1002, %v1003
        %v1008 = vsel %vm1001, %v998, %v1002
        %v1009 = vld [vmem:[%s13] sm:$0x1]
        %v1010 = vld [vmem:[%s15] sm:$0x1]
        %v1011 = vsel %vm936, %v1008, 0.0
        %1012 = vadd.xlane.f32.xlu0 %v1011
        %v1013 = vpop.xlane.xlu0 %1012
        %v1014 = vsel %vm936, %v1004, 0.0
        %1015 = vadd.xlane.f32.xlu0 %v1014
        %v1016 = vpop.xlane.xlu0 %1015
        %vm1017 = vcmask 516096
        %v1018 = vsel %vm1017, %v1003, 0.0
        %1019 = vadd.xlane.f32.xlu0 %v1018
        %v1020 = vpop.xlane.xlu0 %1019
        %v1021 = vmul.f32 %v1013, %v949
        %v1022 = vmul.f32 %v1016, %v949
        %v1023 = vmul.f32 %v1020, %v949
        %v1024 = vsub.f32 %v1008, %v1021
        %v1025 = vsub.f32 %v1004, %v1022
        %v1026 = vsub.f32 %v1003, %v1023
        %v1027 = vmul.f32 %v1024, %v1024
        %v1028 = vmul.f32 %v1025, %v1025
        %v1029 = vmul.f32 %v1026, %v1026
        %v1030 = vsel %vm936, %v1027, 0.0
        %1031 = vadd.xlane.f32.xlu0 %v1030
        %v1032 = vpop.xlane.xlu0 %1031
        %v1033 = vsel %vm936, %v1028, 0.0
        %1034 = vadd.xlane.f32.xlu0 %v1033
        %v1035 = vpop.xlane.xlu0 %1034
        %v1036 = vsel %vm1017, %v1029, 0.0
        %1037 = vadd.xlane.f32.xlu0 %v1036
        %v1038 = vpop.xlane.xlu0 %1037
        %v1039 = vmul.f32 %v1032, %v949
        %v1040 = vmul.f32 %v1035, %v949
        %v1041 = vmul.f32 %v1038, %v949
        %v1042 = vadd.f32 %v1039, 1e-05
        %v1043 = vadd.f32 %v1040, 1e-05
        %v1044 = vadd.f32 %v1041, 1e-05
        %v1045 = vrsqrt.pop %v1042
        %v1046 = vmul.f32 %v1045, %v1042
        %v1047 = vmul.f32 %v1046, %v1045
        %v1048 = vmul.f32 0.5, %v1047
        %v1049 = vsub.f32 1.5, %v1048
        %v1050 = vmul.f32 %v1045, %v1049
        %vm1051 = vweird.f32 %v1042
        %vm1052 = vweird.f32 %v1045
        %vm1053 = vmor %vm1051, %vm1052
        %v1054 = vsel %vm1053, %v1045, %v1050
        %v1055 = vrsqrt.pop %v1043
        %v1056 = vmul.f32 %v1055, %v1043
        %v1057 = vmul.f32 %v1056, %v1055
        %v1058 = vmul.f32 0.5, %v1057
        %v1059 = vsub.f32 1.5, %v1058
        %v1060 = vmul.f32 %v1055, %v1059
        %vm1061 = vweird.f32 %v1043
        %vm1062 = vweird.f32 %v1055
        %vm1063 = vmor %vm1061, %vm1062
        %v1064 = vsel %vm1063, %v1055, %v1060
        %v1065 = vrsqrt.pop %v1044
        %v1066 = vmul.f32 %v1065, %v1044
        %v1067 = vmul.f32 %v1066, %v1065
        %v1068 = vmul.f32 0.5, %v1067
        %v1069 = vsub.f32 1.5, %v1068
        %v1070 = vmul.f32 %v1065, %v1069
        %vm1071 = vweird.f32 %v1044
        %vm1072 = vweird.f32 %v1065
        %vm1073 = vmor %vm1071, %vm1072
        %v1074 = vsel %vm1073, %v1065, %v1070
        %v1075 = vmul.f32 %v1024, %v1054
        %v1076 = vmul.f32 %v1025, %v1064
        %v1077 = vmul.f32 %v1026, %v1074
        %v1079 = vperm.slane %v1009, 0
        %v1081 = vmul.f32 %v1075, %v1079
        %v1082 = vmul.f32 %v1076, %v1079
        %v1083 = vmul.f32 %v1077, %v1079
        %v1085 = vperm.slane %v1010, 0
        %v1087 = vadd.f32 %v1081, %v1085
        %v1088 = vadd.f32 %v1082, %v1085
        %v1089 = vadd.f32 %v1083, %v1085
        %v1090 = vld [vmem:[%s25] sm:$0x1]
        %v1091 = vld [vmem:[%s17] sm:$0xff]
        %v1092 = vld [vmem:[%s17 + $0x8] sm:$0xff]
        %v1093 = vld [vmem:[%s17 + $0x10] sm:$0xff]
        %v1094 = vld [vmem:[%s17 + $0x18] sm:$0xff]
        %v1095 = vld [vmem:[%s17 + $0x20] sm:$0xff]
        %v1096 = vld [vmem:[%s17 + $0x28] sm:$0xff]
        %v1097 = vld [vmem:[%s17 + $0x30] sm:$0xff]
        %v1098 = vld [vmem:[%s17 + $0x38] sm:$0xff]
        %v1099 = vpack.c.bf16 %v1087, %v1087
        %v1100 = vpack.c.bf16 %v1092, %v1091
        %v1101 = vpack.c.bf16 %v1094, %v1093
        %v1102 = vpack.c.bf16 %v1096, %v1095
        %v1103 = vpack.c.bf16 %v1098, %v1097
        %v1105 = vsel %vm936, %v1099, 0
        %1107 = vmatpush.bf16.msra.mxu0 0
        %1108 = vmatpush.bf16.msra.mxu0 0
        %1109 = vmatpush.bf16.msra.mxu0 0
        %1110 = vmatpush.bf16.msra.mxu0 0
        %1111 = vmatpush.bf16.msra.mxu0 %v1103
        %1112 = vmatpush.bf16.msra.mxu0 %v1102
        %1113 = vmatpush.bf16.msra.mxu0 %v1101
        %1114 = vmatpush.bf16.msra.mxu0 %v1100
        %1115 = vmatmul.bf16.gmra.mxu0 %v1105
        %v1116 = vpop.f32.mrf.mxu0
        %v1117 = vadd.f32 0.0, %v1116
        %v1118 = vpop.f32.mrf.mxu0
        %1119 = vdwg.mxu0
        %v1120 = vld [vmem:[%s19] sm:$0xff]
        %v1121 = vld [vmem:[%s19 + $0x8] sm:$0xff]
        %v1122 = vld [vmem:[%s19 + $0x10] sm:$0xff]
        %v1123 = vld [vmem:[%s19 + $0x18] sm:$0xff]
        %v1124 = vld [vmem:[%s19 + $0x20] sm:$0xff]
        %v1125 = vld [vmem:[%s19 + $0x28] sm:$0xff]
        %v1126 = vld [vmem:[%s19 + $0x30] sm:$0xff]
        %v1127 = vld [vmem:[%s19 + $0x38] sm:$0xff]
        %v1128 = vpack.c.bf16 %v1088, %v1087
        %v1129 = vpack.c.bf16 %v1089, %v1089
        %v1130 = vpack.c.bf16 %v1121, %v1120
        %v1131 = vpack.c.bf16 %v1123, %v1122
        %v1132 = vpack.c.bf16 %v1125, %v1124
        %v1133 = vpack.c.bf16 %v1127, %v1126
        %v1135 = vsel %vm936, %v1128, 0
        %v1138 = vsel %vm936, %v1129, 0
        %1140 = vmatpush.bf16.msra.mxu0 0
        %1141 = vmatpush.bf16.msra.mxu0 0
        %1142 = vmatpush.bf16.msra.mxu0 0
        %1143 = vmatpush.bf16.msra.mxu0 0
        %1144 = vmatpush.bf16.msra.mxu0 %v1133
        %1145 = vmatpush.bf16.msra.mxu0 %v1132
        %1146 = vmatpush.bf16.msra.mxu0 %v1131
        %1147 = vmatpush.bf16.msra.mxu0 %v1130
        %1148 = vmatmul.bf16.gmra.mxu0 %v1135
        %v1149 = vpop.f32.mrf.mxu0
        %v1150 = vadd.f32 0.0, %v1149
        %v1151 = vpop.f32.mrf.mxu0
        %v1152 = vadd.f32 0.0, %v1151
        %1153 = vmatmul.bf16.gmra.mxu0 %v1138
        %v1154 = vpop.f32.mrf.mxu0
        %v1155 = vadd.f32 0.0, %v1154
        %v1156 = vpop.f32.mrf.mxu0
        %1157 = vdwg.mxu0
        %v1158 = vld [vmem:[%s21] sm:$0xff]
        %v1159 = vld [vmem:[%s21 + $0x8] sm:$0xff]
        %v1160 = vld [vmem:[%s21 + $0x10] sm:$0xff]
        %v1161 = vld [vmem:[%s21 + $0x18] sm:$0xff]
        %v1162 = vld [vmem:[%s21 + $0x20] sm:$0xff]
        %v1163 = vld [vmem:[%s21 + $0x28] sm:$0xff]
        %v1164 = vld [vmem:[%s21 + $0x30] sm:$0xff]
        %v1165 = vld [vmem:[%s21 + $0x38] sm:$0xff]
        %v1166 = vpack.c.bf16 %v1159, %v1158
        %v1167 = vpack.c.bf16 %v1161, %v1160
        %v1168 = vpack.c.bf16 %v1163, %v1162
        %v1169 = vpack.c.bf16 %v1165, %v1164
        %1170 = vmatpush.bf16.msra.mxu0 0
        %1171 = vmatpush.bf16.msra.mxu0 0
        %1172 = vmatpush.bf16.msra.mxu0 0
        %1173 = vmatpush.bf16.msra.mxu0 0
        %1174 = vmatpush.bf16.msra.mxu0 %v1169
        %1175 = vmatpush.bf16.msra.mxu0 %v1168
        %1176 = vmatpush.bf16.msra.mxu0 %v1167
        %1177 = vmatpush.bf16.msra.mxu0 %v1166
        %1178 = vmatmul.bf16.gmra.mxu0 %v1135
        %v1179 = vpop.f32.mrf.mxu0
        %v1180 = vadd.f32 0.0, %v1179
        %v1181 = vpop.f32.mrf.mxu0
        %v1182 = vadd.f32 0.0, %v1181
        %1183 = vmatmul.bf16.gmra.mxu0 %v1138
        %v1184 = vpop.f32.mrf.mxu0
        %v1185 = vadd.f32 0.0, %v1184
        %v1186 = vpop.f32.mrf.mxu0
        %1187 = vdwg.mxu0
        %v1188 = vpack.c.bf16 %v1117, %v1117
        %v1189 = vpack.c.bf16 %v1152, %v1150
        %v1190 = vpack.c.bf16 %v1155, %v1155
        %vm1191 = vcmask 130048
        %v1193 = vsel %vm1191, %v1188, 0
        %v1196 = vsel %vm1191, %v1189, 0
        %v1199 = vsel %vm1191, %v1190, 0
        %1201 = vmatpush.bf16.xpose.msra.mxu0 0
        %1202 = vmatpush.bf16.xpose.msra.mxu0 0
        %1203 = vmatpush.bf16.xpose.msra.mxu0 0
        %1204 = vmatpush.bf16.xpose.msra.mxu0 0
        %1205 = vmatpush.bf16.xpose.msra.mxu0 0
        %1206 = vmatpush.bf16.xpose.msra.mxu0 0
        %1207 = vmatpush.bf16.xpose.msra.mxu0 %v1199
        %1208 = vmatpush.bf16.xpose.msra.mxu0 %v1196
        %1209 = vmatmul.bf16.gmra.mxu0 %v1193
        %v1210 = vpop.f32.mrf.mxu0
        %v1211 = vadd.f32 0.0, %v1210
        %v1212 = vpop.f32.mrf.mxu0
        %1213 = vdwg.mxu0
        %v1214 = vmul.f32 %v1211, 0.25
        %vm1215 = vcmask 131072
        %v1216 = vsel %vm1215, %v1214, -inf
        %1217 = vmax.xlane.f32.xlu0 %v1216
        %v1218 = vpop.xlane.xlu0 %1217
        %v1219 = vsub.f32 %v1214, %v1218
        %v1220 = vmul.f32 %v1219, 1.442695
        %v1221 = vpow.pop %v1220
        %v1222 = vsel %vm1215, %v1221, 0.0
        %1223 = vadd.xlane.f32.xlu0 %v1222
        %v1224 = vpop.xlane.xlu0 %1223
        %v1225 = vrcp.pop %v1224
        %v1226 = vmul.f32 %v1221, %v1225
        %v1227 = vpack.c.bf16 %v1226, %v1226
        %v1228 = vpack.c.bf16 %v1182, %v1180
        %v1229 = vpack.c.bf16 %v1185, %v1185
        %vm1230 = vcmask 138240
        %v1232 = vsel %vm1230, %v1227, 0
        %v1234 = vsel 0, 4294967295, 65535
        %v1235 = vsel %vm1001, %v1234, 0
        %v1237 = vand.u32 %v1229, %v1235
        %1239 = vmatpush.bf16.msra.mxu0 0
        %1240 = vmatpush.bf16.msra.mxu0 0
        %1241 = vmatpush.bf16.msra.mxu0 0
        %1242 = vmatpush.bf16.msra.mxu0 0
        %1243 = vmatpush.bf16.msra.mxu0 0
        %1244 = vmatpush.bf16.msra.mxu0 0
        %1245 = vmatpush.bf16.msra.mxu0 %v1237
        %1246 = vmatpush.bf16.msra.mxu0 %v1228
        %1247 = vmatmul.bf16.gmra.mxu0 %v1232
        %v1248 = vpop.f32.mrf.mxu0
        %v1249 = vadd.f32 0.0, %v1248
        %v1250 = vpop.f32.mrf.mxu0
        %1251 = vdwg.mxu0
        %v1252 = vld [vmem:[%s23] sm:$0xff]
        %v1253 = vld [vmem:[%s23 + $0x8] sm:$0xff]
        %v1254 = vpack.c.bf16 %v1249, %v1249
        %v1255 = vpack.c.bf16 %v1253, %v1252
        %v1257 = vsel %vm1191, %v1254, 0
        %1259 = vmatpush.bf16.msra.mxu0 0
        %1260 = vmatpush.bf16.msra.mxu0 0
        %1261 = vmatpush.bf16.msra.mxu0 0
        %1262 = vmatpush.bf16.msra.mxu0 0
        %1263 = vmatpush.bf16.msra.mxu0 0
        %1264 = vmatpush.bf16.msra.mxu0 0
        %1265 = vmatpush.bf16.msra.mxu0 0
        %1266 = vmatpush.bf16.msra.mxu0 %v1255
        %1267 = vmatmul.bf16.gmra.mxu0 %v1257
        %v1268 = vpop.f32.mrf.mxu0
        %v1269 = vadd.f32 0.0, %v1268
        %v1270 = vpop.f32.mrf.mxu0
        %1271 = vdwg.mxu0
        %v1272 = vadd.f32 %v1090, %v1269
        %s1273 = scalar_lea.vmem %s17, 64
        %v1274 = vld [vmem:[%s1273] sm:$0xff]
        %v1275 = vld [vmem:[%s1273 + $0x8] sm:$0xff]
        %v1276 = vld [vmem:[%s1273 + $0x10] sm:$0xff]
        %v1277 = vld [vmem:[%s1273 + $0x18] sm:$0xff]
        %v1278 = vld [vmem:[%s1273 + $0x20] sm:$0xff]
        %v1279 = vld [vmem:[%s1273 + $0x28] sm:$0xff]
        %v1280 = vld [vmem:[%s1273 + $0x30] sm:$0xff]
        %v1281 = vld [vmem:[%s1273 + $0x38] sm:$0xff]
        %v1282 = vpack.c.bf16 %v1275, %v1274
        %v1283 = vpack.c.bf16 %v1277, %v1276
        %v1284 = vpack.c.bf16 %v1279, %v1278
        %v1285 = vpack.c.bf16 %v1281, %v1280
        %1286 = vmatpush.bf16.msra.mxu0 0
        %1287 = vmatpush.bf16.msra.mxu0 0
        %1288 = vmatpush.bf16.msra.mxu0 0
        %1289 = vmatpush.bf16.msra.mxu0 0
        %1290 = vmatpush.bf16.msra.mxu0 %v1285
        %1291 = vmatpush.bf16.msra.mxu0 %v1284
        %1292 = vmatpush.bf16.msra.mxu0 %v1283
        %1293 = vmatpush.bf16.msra.mxu0 %v1282
        %1294 = vmatmul.bf16.gmra.mxu0 %v1105
        %v1295 = vpop.f32.mrf.mxu0
        %v1296 = vadd.f32 0.0, %v1295
        %v1297 = vpop.f32.mrf.mxu0
        %1298 = vdwg.mxu0
        %s1299 = scalar_lea.vmem %s19, 64
        %v1300 = vld [vmem:[%s1299] sm:$0xff]
        %v1301 = vld [vmem:[%s1299 + $0x8] sm:$0xff]
        %v1302 = vld [vmem:[%s1299 + $0x10] sm:$0xff]
        %v1303 = vld [vmem:[%s1299 + $0x18] sm:$0xff]
        %v1304 = vld [vmem:[%s1299 + $0x20] sm:$0xff]
        %v1305 = vld [vmem:[%s1299 + $0x28] sm:$0xff]
        %v1306 = vld [vmem:[%s1299 + $0x30] sm:$0xff]
        %v1307 = vld [vmem:[%s1299 + $0x38] sm:$0xff]
        %v1308 = vpack.c.bf16 %v1301, %v1300
        %v1309 = vpack.c.bf16 %v1303, %v1302
        %v1310 = vpack.c.bf16 %v1305, %v1304
        %v1311 = vpack.c.bf16 %v1307, %v1306
        %1312 = vmatpush.bf16.msra.mxu0 0
        %1313 = vmatpush.bf16.msra.mxu0 0
        %1314 = vmatpush.bf16.msra.mxu0 0
        %1315 = vmatpush.bf16.msra.mxu0 0
        %1316 = vmatpush.bf16.msra.mxu0 %v1311
        %1317 = vmatpush.bf16.msra.mxu0 %v1310
        %1318 = vmatpush.bf16.msra.mxu0 %v1309
        %1319 = vmatpush.bf16.msra.mxu0 %v1308
        %1320 = vmatmul.bf16.gmra.mxu0 %v1135
        %v1321 = vpop.f32.mrf.mxu0
        %v1322 = vadd.f32 0.0, %v1321
        %v1323 = vpop.f32.mrf.mxu0
        %v1324 = vadd.f32 0.0, %v1323
        %1325 = vmatmul.bf16.gmra.mxu0 %v1138
        %v1326 = vpop.f32.mrf.mxu0
        %v1327 = vadd.f32 0.0, %v1326
        %v1328 = vpop.f32.mrf.mxu0
        %1329 = vdwg.mxu0
        %s1330 = scalar_lea.vmem %s21, 64
        %v1331 = vld [vmem:[%s1330] sm:$0xff]
        %v1332 = vld [vmem:[%s1330 + $0x8] sm:$0xff]
        %v1333 = vld [vmem:[%s1330 + $0x10] sm:$0xff]
        %v1334 = vld [vmem:[%s1330 + $0x18] sm:$0xff]
        %v1335 = vld [vmem:[%s1330 + $0x20] sm:$0xff]
        %v1336 = vld [vmem:[%s1330 + $0x28] sm:$0xff]
        %v1337 = vld [vmem:[%s1330 + $0x30] sm:$0xff]
        %v1338 = vld [vmem:[%s1330 + $0x38] sm:$0xff]
        %v1339 = vpack.c.bf16 %v1332, %v1331
        %v1340 = vpack.c.bf16 %v1334, %v1333
        %v1341 = vpack.c.bf16 %v1336, %v1335
        %v1342 = vpack.c.bf16 %v1338, %v1337
        %1343 = vmatpush.bf16.msra.mxu0 0
        %1344 = vmatpush.bf16.msra.mxu0 0
        %1345 = vmatpush.bf16.msra.mxu0 0
        %1346 = vmatpush.bf16.msra.mxu0 0
        %1347 = vmatpush.bf16.msra.mxu0 %v1342
        %1348 = vmatpush.bf16.msra.mxu0 %v1341
        %1349 = vmatpush.bf16.msra.mxu0 %v1340
        %1350 = vmatpush.bf16.msra.mxu0 %v1339
        %1351 = vmatmul.bf16.gmra.mxu0 %v1135
        %v1352 = vpop.f32.mrf.mxu0
        %v1353 = vadd.f32 0.0, %v1352
        %v1354 = vpop.f32.mrf.mxu0
        %v1355 = vadd.f32 0.0, %v1354
        %1356 = vmatmul.bf16.gmra.mxu0 %v1138
        %v1357 = vpop.f32.mrf.mxu0
        %v1358 = vadd.f32 0.0, %v1357
        %v1359 = vpop.f32.mrf.mxu0
        %1360 = vdwg.mxu0
        %v1361 = vpack.c.bf16 %v1296, %v1296
        %v1362 = vpack.c.bf16 %v1324, %v1322
        %v1363 = vpack.c.bf16 %v1327, %v1327
        %v1365 = vsel %vm1191, %v1361, 0
        %v1368 = vsel %vm1191, %v1362, 0
        %v1371 = vsel %vm1191, %v1363, 0
        %1373 = vmatpush.bf16.xpose.msra.mxu0 0
        %1374 = vmatpush.bf16.xpose.msra.mxu0 0
        %1375 = vmatpush.bf16.xpose.msra.mxu0 0
        %1376 = vmatpush.bf16.xpose.msra.mxu0 0
        %1377 = vmatpush.bf16.xpose.msra.mxu0 0
        %1378 = vmatpush.bf16.xpose.msra.mxu0 0
        %1379 = vmatpush.bf16.xpose.msra.mxu0 %v1371
        %1380 = vmatpush.bf16.xpose.msra.mxu0 %v1368
        %1381 = vmatmul.bf16.gmra.mxu0 %v1365
        %v1382 = vpop.f32.mrf.mxu0
        %v1383 = vadd.f32 0.0, %v1382
        %v1384 = vpop.f32.mrf.mxu0
        %1385 = vdwg.mxu0
        %v1386 = vmul.f32 %v1383, 0.25
        %v1387 = vsel %vm1215, %v1386, -inf
        %1388 = vmax.xlane.f32.xlu0 %v1387
        %v1389 = vpop.xlane.xlu0 %1388
        %v1390 = vsub.f32 %v1386, %v1389
        %v1391 = vmul.f32 %v1390, 1.442695
        %v1392 = vpow.pop %v1391
        %v1393 = vsel %vm1215, %v1392, 0.0
        %1394 = vadd.xlane.f32.xlu0 %v1393
        %v1395 = vpop.xlane.xlu0 %1394
        %v1396 = vrcp.pop %v1395
        %v1397 = vmul.f32 %v1392, %v1396
        %v1398 = vpack.c.bf16 %v1397, %v1397
        %v1399 = vpack.c.bf16 %v1355, %v1353
        %v1400 = vpack.c.bf16 %v1358, %v1358
        %v1402 = vsel %vm1230, %v1398, 0
        %v1405 = vand.u32 %v1400, %v1235
        %1407 = vmatpush.bf16.msra.mxu0 0
        %1408 = vmatpush.bf16.msra.mxu0 0
        %1409 = vmatpush.bf16.msra.mxu0 0
        %1410 = vmatpush.bf16.msra.mxu0 0
        %1411 = vmatpush.bf16.msra.mxu0 0
        %1412 = vmatpush.bf16.msra.mxu0 0
        %1413 = vmatpush.bf16.msra.mxu0 %v1405
        %1414 = vmatpush.bf16.msra.mxu0 %v1399
        %1415 = vmatmul.bf16.gmra.mxu0 %v1402
        %v1416 = vpop.f32.mrf.mxu0
        %v1417 = vadd.f32 0.0, %v1416
        %v1418 = vpop.f32.mrf.mxu0
        %1419 = vdwg.mxu0
        %s1420 = scalar_lea.vmem %s23, 16
        %v1421 = vld [vmem:[%s1420] sm:$0xff]
        %v1422 = vld [vmem:[%s1420 + $0x8] sm:$0xff]
        %v1423 = vpack.c.bf16 %v1417, %v1417
        %v1424 = vpack.c.bf16 %v1422, %v1421
        %v1426 = vsel %vm1191, %v1423, 0
        %1428 = vmatpush.bf16.msra.mxu0 0
        %1429 = vmatpush.bf16.msra.mxu0 0
        %1430 = vmatpush.bf16.msra.mxu0 0
        %1431 = vmatpush.bf16.msra.mxu0 0
        %1432 = vmatpush.bf16.msra.mxu0 0
        %1433 = vmatpush.bf16.msra.mxu0 0
        %1434 = vmatpush.bf16.msra.mxu0 0
        %1435 = vmatpush.bf16.msra.mxu0 %v1424
        %1436 = vmatmul.bf16.gmra.mxu0 %v1426
        %v1437 = vpop.f32.mrf.mxu0
        %v1438 = vadd.f32 0.0, %v1437
        %v1439 = vpop.f32.mrf.mxu0
        %1440 = vdwg.mxu0
        %v1441 = vadd.f32 %v1272, %v1438
        %s1442 = scalar_lea.vmem %s17, 128
        %v1443 = vld [vmem:[%s1442] sm:$0xff]
        %v1444 = vld [vmem:[%s1442 + $0x8] sm:$0xff]
        %v1445 = vld [vmem:[%s1442 + $0x10] sm:$0xff]
        %v1446 = vld [vmem:[%s1442 + $0x18] sm:$0xff]
        %v1447 = vld [vmem:[%s1442 + $0x20] sm:$0xff]
        %v1448 = vld [vmem:[%s1442 + $0x28] sm:$0xff]
        %v1449 = vld [vmem:[%s1442 + $0x30] sm:$0xff]
        %v1450 = vld [vmem:[%s1442 + $0x38] sm:$0xff]
        %v1451 = vpack.c.bf16 %v1444, %v1443
        %v1452 = vpack.c.bf16 %v1446, %v1445
        %v1453 = vpack.c.bf16 %v1448, %v1447
        %v1454 = vpack.c.bf16 %v1450, %v1449
        %1455 = vmatpush.bf16.msra.mxu0 0
        %1456 = vmatpush.bf16.msra.mxu0 0
        %1457 = vmatpush.bf16.msra.mxu0 0
        %1458 = vmatpush.bf16.msra.mxu0 0
        %1459 = vmatpush.bf16.msra.mxu0 %v1454
        %1460 = vmatpush.bf16.msra.mxu0 %v1453
        %1461 = vmatpush.bf16.msra.mxu0 %v1452
        %1462 = vmatpush.bf16.msra.mxu0 %v1451
        %1463 = vmatmul.bf16.gmra.mxu0 %v1105
        %v1464 = vpop.f32.mrf.mxu0
        %v1465 = vadd.f32 0.0, %v1464
        %v1466 = vpop.f32.mrf.mxu0
        %1467 = vdwg.mxu0
        %s1468 = scalar_lea.vmem %s19, 128
        %v1469 = vld [vmem:[%s1468] sm:$0xff]
        %v1470 = vld [vmem:[%s1468 + $0x8] sm:$0xff]
        %v1471 = vld [vmem:[%s1468 + $0x10] sm:$0xff]
        %v1472 = vld [vmem:[%s1468 + $0x18] sm:$0xff]
        %v1473 = vld [vmem:[%s1468 + $0x20] sm:$0xff]
        %v1474 = vld [vmem:[%s1468 + $0x28] sm:$0xff]
        %v1475 = vld [vmem:[%s1468 + $0x30] sm:$0xff]
        %v1476 = vld [vmem:[%s1468 + $0x38] sm:$0xff]
        %v1477 = vpack.c.bf16 %v1470, %v1469
        %v1478 = vpack.c.bf16 %v1472, %v1471
        %v1479 = vpack.c.bf16 %v1474, %v1473
        %v1480 = vpack.c.bf16 %v1476, %v1475
        %1481 = vmatpush.bf16.msra.mxu0 0
        %1482 = vmatpush.bf16.msra.mxu0 0
        %1483 = vmatpush.bf16.msra.mxu0 0
        %1484 = vmatpush.bf16.msra.mxu0 0
        %1485 = vmatpush.bf16.msra.mxu0 %v1480
        %1486 = vmatpush.bf16.msra.mxu0 %v1479
        %1487 = vmatpush.bf16.msra.mxu0 %v1478
        %1488 = vmatpush.bf16.msra.mxu0 %v1477
        %1489 = vmatmul.bf16.gmra.mxu0 %v1135
        %v1490 = vpop.f32.mrf.mxu0
        %v1491 = vadd.f32 0.0, %v1490
        %v1492 = vpop.f32.mrf.mxu0
        %v1493 = vadd.f32 0.0, %v1492
        %1494 = vmatmul.bf16.gmra.mxu0 %v1138
        %v1495 = vpop.f32.mrf.mxu0
        %v1496 = vadd.f32 0.0, %v1495
        %v1497 = vpop.f32.mrf.mxu0
        %1498 = vdwg.mxu0
        %s1499 = scalar_lea.vmem %s21, 128
        %v1500 = vld [vmem:[%s1499] sm:$0xff]
        %v1501 = vld [vmem:[%s1499 + $0x8] sm:$0xff]
        %v1502 = vld [vmem:[%s1499 + $0x10] sm:$0xff]
        %v1503 = vld [vmem:[%s1499 + $0x18] sm:$0xff]
        %v1504 = vld [vmem:[%s1499 + $0x20] sm:$0xff]
        %v1505 = vld [vmem:[%s1499 + $0x28] sm:$0xff]
        %v1506 = vld [vmem:[%s1499 + $0x30] sm:$0xff]
        %v1507 = vld [vmem:[%s1499 + $0x38] sm:$0xff]
        %v1508 = vpack.c.bf16 %v1501, %v1500
        %v1509 = vpack.c.bf16 %v1503, %v1502
        %v1510 = vpack.c.bf16 %v1505, %v1504
        %v1511 = vpack.c.bf16 %v1507, %v1506
        %1512 = vmatpush.bf16.msra.mxu0 0
        %1513 = vmatpush.bf16.msra.mxu0 0
        %1514 = vmatpush.bf16.msra.mxu0 0
        %1515 = vmatpush.bf16.msra.mxu0 0
        %1516 = vmatpush.bf16.msra.mxu0 %v1511
        %1517 = vmatpush.bf16.msra.mxu0 %v1510
        %1518 = vmatpush.bf16.msra.mxu0 %v1509
        %1519 = vmatpush.bf16.msra.mxu0 %v1508
        %1520 = vmatmul.bf16.gmra.mxu0 %v1135
        %v1521 = vpop.f32.mrf.mxu0
        %v1522 = vadd.f32 0.0, %v1521
        %v1523 = vpop.f32.mrf.mxu0
        %v1524 = vadd.f32 0.0, %v1523
        %1525 = vmatmul.bf16.gmra.mxu0 %v1138
        %v1526 = vpop.f32.mrf.mxu0
        %v1527 = vadd.f32 0.0, %v1526
        %v1528 = vpop.f32.mrf.mxu0
        %1529 = vdwg.mxu0
        %v1530 = vpack.c.bf16 %v1465, %v1465
        %v1531 = vpack.c.bf16 %v1493, %v1491
        %v1532 = vpack.c.bf16 %v1496, %v1496
        %v1534 = vsel %vm1191, %v1530, 0
        %v1537 = vsel %vm1191, %v1531, 0
        %v1540 = vsel %vm1191, %v1532, 0
        %1542 = vmatpush.bf16.xpose.msra.mxu0 0
        %1543 = vmatpush.bf16.xpose.msra.mxu0 0
        %1544 = vmatpush.bf16.xpose.msra.mxu0 0
        %1545 = vmatpush.bf16.xpose.msra.mxu0 0
        %1546 = vmatpush.bf16.xpose.msra.mxu0 0
        %1547 = vmatpush.bf16.xpose.msra.mxu0 0
        %1548 = vmatpush.bf16.xpose.msra.mxu0 %v1540
        %1549 = vmatpush.bf16.xpose.msra.mxu0 %v1537
        %1550 = vmatmul.bf16.gmra.mxu0 %v1534
        %v1551 = vpop.f32.mrf.mxu0
        %v1552 = vadd.f32 0.0, %v1551
        %v1553 = vpop.f32.mrf.mxu0
        %1554 = vdwg.mxu0
        %v1555 = vmul.f32 %v1552, 0.25
        %v1556 = vsel %vm1215, %v1555, -inf
        %1557 = vmax.xlane.f32.xlu0 %v1556
        %v1558 = vpop.xlane.xlu0 %1557
        %v1559 = vsub.f32 %v1555, %v1558
        %v1560 = vmul.f32 %v1559, 1.442695
        %v1561 = vpow.pop %v1560
        %v1562 = vsel %vm1215, %v1561, 0.0
        %1563 = vadd.xlane.f32.xlu0 %v1562
        %v1564 = vpop.xlane.xlu0 %1563
        %v1565 = vrcp.pop %v1564
        %v1566 = vmul.f32 %v1561, %v1565
        %v1567 = vpack.c.bf16 %v1566, %v1566
        %v1568 = vpack.c.bf16 %v1524, %v1522
        %v1569 = vpack.c.bf16 %v1527, %v1527
        %v1571 = vsel %vm1230, %v1567, 0
        %v1574 = vand.u32 %v1569, %v1235
        %1576 = vmatpush.bf16.msra.mxu0 0
        %1577 = vmatpush.bf16.msra.mxu0 0
        %1578 = vmatpush.bf16.msra.mxu0 0
        %1579 = vmatpush.bf16.msra.mxu0 0
        %1580 = vmatpush.bf16.msra.mxu0 0
        %1581 = vmatpush.bf16.msra.mxu0 0
        %1582 = vmatpush.bf16.msra.mxu0 %v1574
        %1583 = vmatpush.bf16.msra.mxu0 %v1568
        %1584 = vmatmul.bf16.gmra.mxu0 %v1571
        %v1585 = vpop.f32.mrf.mxu0
        %v1586 = vadd.f32 0.0, %v1585
        %v1587 = vpop.f32.mrf.mxu0
        %1588 = vdwg.mxu0
        %s1589 = scalar_lea.vmem %s23, 32
        %v1590 = vld [vmem:[%s1589] sm:$0xff]
        %v1591 = vld [vmem:[%s1589 + $0x8] sm:$0xff]
        %v1592 = vpack.c.bf16 %v1586, %v1586
        %v1593 = vpack.c.bf16 %v1591, %v1590
        %v1595 = vsel %vm1191, %v1592, 0
        %1597 = vmatpush.bf16.msra.mxu0 0
        %1598 = vmatpush.bf16.msra.mxu0 0
        %1599 = vmatpush.bf16.msra.mxu0 0
        %1600 = vmatpush.bf16.msra.mxu0 0
        %1601 = vmatpush.bf16.msra.mxu0 0
        %1602 = vmatpush.bf16.msra.mxu0 0
        %1603 = vmatpush.bf16.msra.mxu0 0
        %1604 = vmatpush.bf16.msra.mxu0 %v1593
        %1605 = vmatmul.bf16.gmra.mxu0 %v1595
        %v1606 = vpop.f32.mrf.mxu0
        %v1607 = vadd.f32 0.0, %v1606
        %v1608 = vpop.f32.mrf.mxu0
        %1609 = vdwg.mxu0
        %v1610 = vadd.f32 %v1441, %v1607
        %s1611 = scalar_lea.vmem %s17, 192
        %v1612 = vld [vmem:[%s1611] sm:$0xff]
        %v1613 = vld [vmem:[%s1611 + $0x8] sm:$0xff]
        %v1614 = vld [vmem:[%s1611 + $0x10] sm:$0xff]
        %v1615 = vld [vmem:[%s1611 + $0x18] sm:$0xff]
        %v1616 = vld [vmem:[%s1611 + $0x20] sm:$0xff]
        %v1617 = vld [vmem:[%s1611 + $0x28] sm:$0xff]
        %v1618 = vld [vmem:[%s1611 + $0x30] sm:$0xff]
        %v1619 = vld [vmem:[%s1611 + $0x38] sm:$0xff]
        %v1620 = vpack.c.bf16 %v1613, %v1612
        %v1621 = vpack.c.bf16 %v1615, %v1614
        %v1622 = vpack.c.bf16 %v1617, %v1616
        %v1623 = vpack.c.bf16 %v1619, %v1618
        %1624 = vmatpush.bf16.msra.mxu0 0
        %1625 = vmatpush.bf16.msra.mxu0 0
        %1626 = vmatpush.bf16.msra.mxu0 0
        %1627 = vmatpush.bf16.msra.mxu0 0
        %1628 = vmatpush.bf16.msra.mxu0 %v1623
        %1629 = vmatpush.bf16.msra.mxu0 %v1622
        %1630 = vmatpush.bf16.msra.mxu0 %v1621
        %1631 = vmatpush.bf16.msra.mxu0 %v1620
        %1632 = vmatmul.bf16.gmra.mxu0 %v1105
        %v1633 = vpop.f32.mrf.mxu0
        %v1634 = vadd.f32 0.0, %v1633
        %v1635 = vpop.f32.mrf.mxu0
        %1636 = vdwg.mxu0
        %s1637 = scalar_lea.vmem %s19, 192
        %v1638 = vld [vmem:[%s1637] sm:$0xff]
        %v1639 = vld [vmem:[%s1637 + $0x8] sm:$0xff]
        %v1640 = vld [vmem:[%s1637 + $0x10] sm:$0xff]
        %v1641 = vld [vmem:[%s1637 + $0x18] sm:$0xff]
        %v1642 = vld [vmem:[%s1637 + $0x20] sm:$0xff]
        %v1643 = vld [vmem:[%s1637 + $0x28] sm:$0xff]
        %v1644 = vld [vmem:[%s1637 + $0x30] sm:$0xff]
        %v1645 = vld [vmem:[%s1637 + $0x38] sm:$0xff]
        %v1646 = vpack.c.bf16 %v1639, %v1638
        %v1647 = vpack.c.bf16 %v1641, %v1640
        %v1648 = vpack.c.bf16 %v1643, %v1642
        %v1649 = vpack.c.bf16 %v1645, %v1644
        %1650 = vmatpush.bf16.msra.mxu0 0
        %1651 = vmatpush.bf16.msra.mxu0 0
        %1652 = vmatpush.bf16.msra.mxu0 0
        %1653 = vmatpush.bf16.msra.mxu0 0
        %1654 = vmatpush.bf16.msra.mxu0 %v1649
        %1655 = vmatpush.bf16.msra.mxu0 %v1648
        %1656 = vmatpush.bf16.msra.mxu0 %v1647
        %1657 = vmatpush.bf16.msra.mxu0 %v1646
        %1658 = vmatmul.bf16.gmra.mxu0 %v1135
        %v1659 = vpop.f32.mrf.mxu0
        %v1660 = vadd.f32 0.0, %v1659
        %v1661 = vpop.f32.mrf.mxu0
        %v1662 = vadd.f32 0.0, %v1661
        %1663 = vmatmul.bf16.gmra.mxu0 %v1138
        %v1664 = vpop.f32.mrf.mxu0
        %v1665 = vadd.f32 0.0, %v1664
        %v1666 = vpop.f32.mrf.mxu0
        %1667 = vdwg.mxu0
        %s1668 = scalar_lea.vmem %s21, 192
        %v1669 = vld [vmem:[%s1668] sm:$0xff]
        %v1670 = vld [vmem:[%s1668 + $0x8] sm:$0xff]
        %v1671 = vld [vmem:[%s1668 + $0x10] sm:$0xff]
        %v1672 = vld [vmem:[%s1668 + $0x18] sm:$0xff]
        %v1673 = vld [vmem:[%s1668 + $0x20] sm:$0xff]
        %v1674 = vld [vmem:[%s1668 + $0x28] sm:$0xff]
        %v1675 = vld [vmem:[%s1668 + $0x30] sm:$0xff]
        %v1676 = vld [vmem:[%s1668 + $0x38] sm:$0xff]
        %v1677 = vpack.c.bf16 %v1670, %v1669
        %v1678 = vpack.c.bf16 %v1672, %v1671
        %v1679 = vpack.c.bf16 %v1674, %v1673
        %v1680 = vpack.c.bf16 %v1676, %v1675
        %1681 = vmatpush.bf16.msra.mxu0 0
        %1682 = vmatpush.bf16.msra.mxu0 0
        %1683 = vmatpush.bf16.msra.mxu0 0
        %1684 = vmatpush.bf16.msra.mxu0 0
        %1685 = vmatpush.bf16.msra.mxu0 %v1680
        %1686 = vmatpush.bf16.msra.mxu0 %v1679
        %1687 = vmatpush.bf16.msra.mxu0 %v1678
        %1688 = vmatpush.bf16.msra.mxu0 %v1677
        %1689 = vmatmul.bf16.gmra.mxu0 %v1135
        %v1690 = vpop.f32.mrf.mxu0
        %v1691 = vadd.f32 0.0, %v1690
        %v1692 = vpop.f32.mrf.mxu0
        %v1693 = vadd.f32 0.0, %v1692
        %1694 = vmatmul.bf16.gmra.mxu0 %v1138
        %v1695 = vpop.f32.mrf.mxu0
        %v1696 = vadd.f32 0.0, %v1695
        %v1697 = vpop.f32.mrf.mxu0
        %1698 = vdwg.mxu0
        %v1699 = vpack.c.bf16 %v1634, %v1634
        %v1700 = vpack.c.bf16 %v1662, %v1660
        %v1701 = vpack.c.bf16 %v1665, %v1665
        %v1703 = vsel %vm1191, %v1699, 0
        %v1706 = vsel %vm1191, %v1700, 0
        %v1709 = vsel %vm1191, %v1701, 0
        %1711 = vmatpush.bf16.xpose.msra.mxu0 0
        %1712 = vmatpush.bf16.xpose.msra.mxu0 0
        %1713 = vmatpush.bf16.xpose.msra.mxu0 0
        %1714 = vmatpush.bf16.xpose.msra.mxu0 0
        %1715 = vmatpush.bf16.xpose.msra.mxu0 0
        %1716 = vmatpush.bf16.xpose.msra.mxu0 0
        %1717 = vmatpush.bf16.xpose.msra.mxu0 %v1709
        %1718 = vmatpush.bf16.xpose.msra.mxu0 %v1706
        %1719 = vmatmul.bf16.gmra.mxu0 %v1703
        %v1720 = vpop.f32.mrf.mxu0
        %v1721 = vadd.f32 0.0, %v1720
        %v1722 = vpop.f32.mrf.mxu0
        %1723 = vdwg.mxu0
        %v1724 = vmul.f32 %v1721, 0.25
        %v1725 = vsel %vm1215, %v1724, -inf
        %1726 = vmax.xlane.f32.xlu0 %v1725
        %v1727 = vpop.xlane.xlu0 %1726
        %v1728 = vsub.f32 %v1724, %v1727
        %v1729 = vmul.f32 %v1728, 1.442695
        %v1730 = vpow.pop %v1729
        %v1731 = vsel %vm1215, %v1730, 0.0
        %1732 = vadd.xlane.f32.xlu0 %v1731
        %v1733 = vpop.xlane.xlu0 %1732
        %v1734 = vrcp.pop %v1733
        %v1735 = vmul.f32 %v1730, %v1734
        %v1736 = vpack.c.bf16 %v1735, %v1735
        %v1737 = vpack.c.bf16 %v1693, %v1691
        %v1738 = vpack.c.bf16 %v1696, %v1696
        %v1740 = vsel %vm1230, %v1736, 0
        %v1743 = vand.u32 %v1738, %v1235
        %1745 = vmatpush.bf16.msra.mxu0 0
        %1746 = vmatpush.bf16.msra.mxu0 0
        %1747 = vmatpush.bf16.msra.mxu0 0
        %1748 = vmatpush.bf16.msra.mxu0 0
        %1749 = vmatpush.bf16.msra.mxu0 0
        %1750 = vmatpush.bf16.msra.mxu0 0
        %1751 = vmatpush.bf16.msra.mxu0 %v1743
        %1752 = vmatpush.bf16.msra.mxu0 %v1737
        %1753 = vmatmul.bf16.gmra.mxu0 %v1740
        %v1754 = vpop.f32.mrf.mxu0
        %v1755 = vadd.f32 0.0, %v1754
        %v1756 = vpop.f32.mrf.mxu0
        %1757 = vdwg.mxu0
        %s1758 = scalar_lea.vmem %s23, 48
        %v1759 = vld [vmem:[%s1758] sm:$0xff]
        %v1760 = vld [vmem:[%s1758 + $0x8] sm:$0xff]
        %v1761 = vpack.c.bf16 %v1755, %v1755
        %v1762 = vpack.c.bf16 %v1760, %v1759
        %v1764 = vsel %vm1191, %v1761, 0
        %1766 = vmatpush.bf16.msra.mxu0 0
        %1767 = vmatpush.bf16.msra.mxu0 0
        %1768 = vmatpush.bf16.msra.mxu0 0
        %1769 = vmatpush.bf16.msra.mxu0 0
        %1770 = vmatpush.bf16.msra.mxu0 0
        %1771 = vmatpush.bf16.msra.mxu0 0
        %1772 = vmatpush.bf16.msra.mxu0 0
        %1773 = vmatpush.bf16.msra.mxu0 %v1762
        %1774 = vmatmul.bf16.gmra.mxu0 %v1764
        %v1775 = vpop.f32.mrf.mxu0
        %v1776 = vadd.f32 0.0, %v1775
        %v1777 = vpop.f32.mrf.mxu0
        %1778 = vdwg.mxu0
        %v1779 = vadd.f32 %v1610, %v1776
        %v1780 = vadd.f32 %v998, %v1779
        %v1781 = vld [vmem:[%s27] sm:$0x1]
        %v1782 = vld [vmem:[%s29] sm:$0x1]
        %v1783 = vsel %vm936, %v996, 0.0
        %1784 = vadd.xlane.f32.xlu0 %v1783
        %v1785 = vpop.xlane.xlu0 %1784
        %v1786 = vsel %vm936, %v997, 0.0
        %1787 = vadd.xlane.f32.xlu0 %v1786
        %v1788 = vpop.xlane.xlu0 %1787
        %v1789 = vmul.f32 %v1785, %v949
        %v1790 = vmul.f32 %v1788, %v949
        %v1791 = vsub.f32 %v996, %v1789
        %v1792 = vsub.f32 %v997, %v1790
        %v1793 = vmul.f32 %v1791, %v1791
        %v1794 = vmul.f32 %v1792, %v1792
        %v1795 = vsel %vm936, %v1793, 0.0
        %1796 = vadd.xlane.f32.xlu0 %v1795
        %v1797 = vpop.xlane.xlu0 %1796
        %v1798 = vsel %vm936, %v1794, 0.0
        %1799 = vadd.xlane.f32.xlu0 %v1798
        %v1800 = vpop.xlane.xlu0 %1799
        %v1801 = vmul.f32 %v1797, %v949
        %v1802 = vmul.f32 %v1800, %v949
        %v1803 = vadd.f32 %v1801, 1e-05
        %v1804 = vadd.f32 %v1802, 1e-05
        %v1805 = vrsqrt.pop %v1803
        %v1806 = vmul.f32 %v1805, %v1803
        %v1807 = vmul.f32 %v1806, %v1805
        %v1808 = vmul.f32 0.5, %v1807
        %v1809 = vsub.f32 1.5, %v1808
        %v1810 = vmul.f32 %v1805, %v1809
        %vm1811 = vweird.f32 %v1803
        %vm1812 = vweird.f32 %v1805
        %vm1813 = vmor %vm1811, %vm1812
        %v1814 = vsel %vm1813, %v1805, %v1810
        %v1815 = vrsqrt.pop %v1804
        %v1816 = vmul.f32 %v1815, %v1804
        %v1817 = vmul.f32 %v1816, %v1815
        %v1818 = vmul.f32 0.5, %v1817
        %v1819 = vsub.f32 1.5, %v1818
        %v1820 = vmul.f32 %v1815, %v1819
        %vm1821 = vweird.f32 %v1804
        %vm1822 = vweird.f32 %v1815
        %vm1823 = vmor %vm1821, %vm1822
        %v1824 = vsel %vm1823, %v1815, %v1820
        %v1825 = vmul.f32 %v1791, %v1814
        %v1826 = vmul.f32 %v1792, %v1824
        %v1828 = vperm.slane %v1781, 0
        %v1830 = vmul.f32 %v1825, %v1828
        %v1831 = vmul.f32 %v1826, %v1828
        %v1833 = vperm.slane %v1782, 0
        %v1835 = vadd.f32 %v1830, %v1833
        %v1836 = vadd.f32 %v1831, %v1833
        %v1837 = vld [vmem:[%s35] sm:$0x1]
        %v1839 = vperm.slane %v1837, 0
        %v1841 = vadd.f32 %v1839, 0.0
        %v1842 = vld [vmem:[%s31] sm:$0xff]
        %v1843 = vld [vmem:[%s31 + $0x8] sm:$0xff]
        %v1844 = vpack.c.bf16 %v1843, %v1842
        %v1845 = vpack.c.bf16 %v1836, %v1835
        %v1847 = vsel %vm1191, %v1844, 0
        %1849 = vmatpush.bf16.msra.mxu0 0
        %1850 = vmatpush.bf16.msra.mxu0 0
        %1851 = vmatpush.bf16.msra.mxu0 0
        %1852 = vmatpush.bf16.msra.mxu0 0
        %1853 = vmatpush.bf16.msra.mxu0 0
        %1854 = vmatpush.bf16.msra.mxu0 0
        %1855 = vmatpush.bf16.msra.mxu0 0
        %1856 = vmatpush.bf16.msra.mxu0 %v1845
        %1857 = vmatmul.bf16.gmra.mxu0 %v1847
        %v1858 = vpop.f32.mrf.mxu0
        %v1859 = vadd.f32 0.0, %v1858
        %v1860 = vpop.f32.mrf.mxu0
        %v1861 = vadd.f32 0.0, %v1860
        %1862 = vdwg.mxu0
        %v1863 = vld [vmem:[%s33] sm:$0x1]
        %v1864 = vperm.slane %v1863, 0
        %v1865 = vmul.f32 %v1859, %v1864
        %v1866 = vmul.f32 %v1861, %v1864
        %v1867 = vadd.f32 %v1841, %v1865
        %v1868 = vadd.f32 %v1841, %v1866
        %s1869 = scalar_lea.vmem %s31, 16
        %v1870 = vld [vmem:[%s1869] sm:$0xff]
        %v1871 = vld [vmem:[%s1869 + $0x8] sm:$0xff]
        %v1872 = vpack.c.bf16 %v1871, %v1870
        %v1874 = vsel %vm1191, %v1872, 0
        %1876 = vmatpush.bf16.msra.mxu0 0
        %1877 = vmatpush.bf16.msra.mxu0 0
        %1878 = vmatpush.bf16.msra.mxu0 0
        %1879 = vmatpush.bf16.msra.mxu0 0
        %1880 = vmatpush.bf16.msra.mxu0 0
        %1881 = vmatpush.bf16.msra.mxu0 0
        %1882 = vmatpush.bf16.msra.mxu0 0
        %1883 = vmatpush.bf16.msra.mxu0 %v1845
        %1884 = vmatmul.bf16.gmra.mxu0 %v1874
        %v1885 = vpop.f32.mrf.mxu0
        %v1886 = vadd.f32 0.0, %v1885
        %v1887 = vpop.f32.mrf.mxu0
        %v1888 = vadd.f32 0.0, %v1887
        %1889 = vdwg.mxu0
        %v1890 = vld [vmem:[%s33 + $0x1] sm:$0x1]
        %v1891 = vperm.slane %v1890, 0
        %v1892 = vmul.f32 %v1886, %v1891
        %v1893 = vmul.f32 %v1888, %v1891
        %v1894 = vadd.f32 %v1867, %v1892
        %v1895 = vadd.f32 %v1868, %v1893
        %s1896 = scalar_lea.vmem %s31, 32
        %v1897 = vld [vmem:[%s1896] sm:$0xff]
        %v1898 = vld [vmem:[%s1896 + $0x8] sm:$0xff]
        %v1899 = vpack.c.bf16 %v1898, %v1897
        %v1901 = vsel %vm1191, %v1899, 0
        %1903 = vmatpush.bf16.msra.mxu0 0
        %1904 = vmatpush.bf16.msra.mxu0 0
        %1905 = vmatpush.bf16.msra.mxu0 0
        %1906 = vmatpush.bf16.msra.mxu0 0
        %1907 = vmatpush.bf16.msra.mxu0 0
        %1908 = vmatpush.bf16.msra.mxu0 0
        %1909 = vmatpush.bf16.msra.mxu0 0
        %1910 = vmatpush.bf16.msra.mxu0 %v1845
        %1911 = vmatmul.bf16.gmra.mxu0 %v1901
        %v1912 = vpop.f32.mrf.mxu0
        %v1913 = vadd.f32 0.0, %v1912
        %v1914 = vpop.f32.mrf.mxu0
        %v1915 = vadd.f32 0.0, %v1914
        %1916 = vdwg.mxu0
        %v1917 = vld [vmem:[%s33 + $0x2] sm:$0x1]
        %v1918 = vperm.slane %v1917, 0
        %v1919 = vmul.f32 %v1913, %v1918
        %v1920 = vmul.f32 %v1915, %v1918
        %v1921 = vadd.f32 %v1894, %v1919
        %v1922 = vadd.f32 %v1895, %v1920
        %s1923 = scalar_lea.vmem %s31, 48
        %v1924 = vld [vmem:[%s1923] sm:$0xff]
        %v1925 = vld [vmem:[%s1923 + $0x8] sm:$0xff]
        %v1926 = vpack.c.bf16 %v1925, %v1924
        %v1928 = vsel %vm1191, %v1926, 0
        %1930 = vmatpush.bf16.msra.mxu0 0
        %1931 = vmatpush.bf16.msra.mxu0 0
        %1932 = vmatpush.bf16.msra.mxu0 0
        %1933 = vmatpush.bf16.msra.mxu0 0
        %1934 = vmatpush.bf16.msra.mxu0 0
        %1935 = vmatpush.bf16.msra.mxu0 0
        %1936 = vmatpush.bf16.msra.mxu0 0
        %1937 = vmatpush.bf16.msra.mxu0 %v1845
        %1938 = vmatmul.bf16.gmra.mxu0 %v1928
        %v1939 = vpop.f32.mrf.mxu0
        %v1940 = vadd.f32 0.0, %v1939
        %v1941 = vpop.f32.mrf.mxu0
        %v1942 = vadd.f32 0.0, %v1941
        %1943 = vdwg.mxu0
        %v1944 = vld [vmem:[%s33 + $0x3] sm:$0x1]
        %v1945 = vperm.slane %v1944, 0
        %v1946 = vmul.f32 %v1940, %v1945
        %v1947 = vmul.f32 %v1942, %v1945
        %v1948 = vadd.f32 %v1921, %v1946
        %v1949 = vadd.f32 %v1922, %v1947
        %s1950 = scalar_lea.vmem %s31, 64
        %v1951 = vld [vmem:[%s1950] sm:$0xff]
        %v1952 = vld [vmem:[%s1950 + $0x8] sm:$0xff]
        %v1953 = vpack.c.bf16 %v1952, %v1951
        %v1955 = vsel %vm1191, %v1953, 0
        %1957 = vmatpush.bf16.msra.mxu0 0
        %1958 = vmatpush.bf16.msra.mxu0 0
        %1959 = vmatpush.bf16.msra.mxu0 0
        %1960 = vmatpush.bf16.msra.mxu0 0
        %1961 = vmatpush.bf16.msra.mxu0 0
        %1962 = vmatpush.bf16.msra.mxu0 0
        %1963 = vmatpush.bf16.msra.mxu0 0
        %1964 = vmatpush.bf16.msra.mxu0 %v1845
        %1965 = vmatmul.bf16.gmra.mxu0 %v1955
        %v1966 = vpop.f32.mrf.mxu0
        %v1967 = vadd.f32 0.0, %v1966
        %v1968 = vpop.f32.mrf.mxu0
        %v1969 = vadd.f32 0.0, %v1968
        %1970 = vdwg.mxu0
        %v1971 = vld [vmem:[%s33 + $0x4] sm:$0x1]
        %v1972 = vperm.slane %v1971, 0
        %v1973 = vmul.f32 %v1967, %v1972
        %v1974 = vmul.f32 %v1969, %v1972
        %v1975 = vadd.f32 %v1948, %v1973
        %v1976 = vadd.f32 %v1949, %v1974
        %s1977 = scalar_lea.vmem %s31, 80
        %v1978 = vld [vmem:[%s1977] sm:$0xff]
        %v1979 = vld [vmem:[%s1977 + $0x8] sm:$0xff]
        %v1980 = vpack.c.bf16 %v1979, %v1978
        %v1982 = vsel %vm1191, %v1980, 0
        %1984 = vmatpush.bf16.msra.mxu0 0
        %1985 = vmatpush.bf16.msra.mxu0 0
        %1986 = vmatpush.bf16.msra.mxu0 0
        %1987 = vmatpush.bf16.msra.mxu0 0
        %1988 = vmatpush.bf16.msra.mxu0 0
        %1989 = vmatpush.bf16.msra.mxu0 0
        %1990 = vmatpush.bf16.msra.mxu0 0
        %1991 = vmatpush.bf16.msra.mxu0 %v1845
        %1992 = vmatmul.bf16.gmra.mxu0 %v1982
        %v1993 = vpop.f32.mrf.mxu0
        %v1994 = vadd.f32 0.0, %v1993
        %v1995 = vpop.f32.mrf.mxu0
        %v1996 = vadd.f32 0.0, %v1995
        %1997 = vdwg.mxu0
        %v1998 = vld [vmem:[%s33 + $0x5] sm:$0x1]
        %v1999 = vperm.slane %v1998, 0
        %v2000 = vmul.f32 %v1994, %v1999
        %v2001 = vmul.f32 %v1996, %v1999
        %v2002 = vadd.f32 %v1975, %v2000
        %v2003 = vadd.f32 %v1976, %v2001
        %s2004 = scalar_lea.vmem %s31, 96
        %v2005 = vld [vmem:[%s2004] sm:$0xff]
        %v2006 = vld [vmem:[%s2004 + $0x8] sm:$0xff]
        %v2007 = vpack.c.bf16 %v2006, %v2005
        %v2009 = vsel %vm1191, %v2007, 0
        %2011 = vmatpush.bf16.msra.mxu0 0
        %2012 = vmatpush.bf16.msra.mxu0 0
        %2013 = vmatpush.bf16.msra.mxu0 0
        %2014 = vmatpush.bf16.msra.mxu0 0
        %2015 = vmatpush.bf16.msra.mxu0 0
        %2016 = vmatpush.bf16.msra.mxu0 0
        %2017 = vmatpush.bf16.msra.mxu0 0
        %2018 = vmatpush.bf16.msra.mxu0 %v1845
        %2019 = vmatmul.bf16.gmra.mxu0 %v2009
        %v2020 = vpop.f32.mrf.mxu0
        %v2021 = vadd.f32 0.0, %v2020
        %v2022 = vpop.f32.mrf.mxu0
        %v2023 = vadd.f32 0.0, %v2022
        %2024 = vdwg.mxu0
        %v2025 = vld [vmem:[%s33 + $0x6] sm:$0x1]
        %v2026 = vperm.slane %v2025, 0
        %v2027 = vmul.f32 %v2021, %v2026
        %v2028 = vmul.f32 %v2023, %v2026
        %v2029 = vadd.f32 %v2002, %v2027
        %v2030 = vadd.f32 %v2003, %v2028
        %s2031 = scalar_lea.vmem %s31, 112
        %v2032 = vld [vmem:[%s2031] sm:$0xff]
        %v2033 = vld [vmem:[%s2031 + $0x8] sm:$0xff]
        %v2034 = vpack.c.bf16 %v2033, %v2032
        %v2036 = vsel %vm1191, %v2034, 0
        %2038 = vmatpush.bf16.msra.mxu0 0
        %2039 = vmatpush.bf16.msra.mxu0 0
        %2040 = vmatpush.bf16.msra.mxu0 0
        %2041 = vmatpush.bf16.msra.mxu0 0
        %2042 = vmatpush.bf16.msra.mxu0 0
        %2043 = vmatpush.bf16.msra.mxu0 0
        %2044 = vmatpush.bf16.msra.mxu0 0
        %2045 = vmatpush.bf16.msra.mxu0 %v1845
        %2046 = vmatmul.bf16.gmra.mxu0 %v2036
        %v2047 = vpop.f32.mrf.mxu0
        %v2048 = vadd.f32 0.0, %v2047
        %v2049 = vpop.f32.mrf.mxu0
        %v2050 = vadd.f32 0.0, %v2049
        %2051 = vdwg.mxu0
        %v2052 = vld [vmem:[%s33 + $0x7] sm:$0x1]
        %v2053 = vperm.slane %v2052, 0
        %v2054 = vmul.f32 %v2048, %v2053
        %v2055 = vmul.f32 %v2050, %v2053
        %v2056 = vadd.f32 %v2029, %v2054
        %v2057 = vadd.f32 %v2030, %v2055
        %s2058 = scalar_lea.vmem %s31, 128
        %v2059 = vld [vmem:[%s2058] sm:$0xff]
        %v2060 = vld [vmem:[%s2058 + $0x8] sm:$0xff]
        %v2061 = vpack.c.bf16 %v2060, %v2059
        %v2063 = vsel %vm1191, %v2061, 0
        %2065 = vmatpush.bf16.msra.mxu0 0
        %2066 = vmatpush.bf16.msra.mxu0 0
        %2067 = vmatpush.bf16.msra.mxu0 0
        %2068 = vmatpush.bf16.msra.mxu0 0
        %2069 = vmatpush.bf16.msra.mxu0 0
        %2070 = vmatpush.bf16.msra.mxu0 0
        %2071 = vmatpush.bf16.msra.mxu0 0
        %2072 = vmatpush.bf16.msra.mxu0 %v1845
        %2073 = vmatmul.bf16.gmra.mxu0 %v2063
        %v2074 = vpop.f32.mrf.mxu0
        %v2075 = vadd.f32 0.0, %v2074
        %v2076 = vpop.f32.mrf.mxu0
        %v2077 = vadd.f32 0.0, %v2076
        %2078 = vdwg.mxu0
        %v2079 = vld [vmem:[%s33 + $0x8] sm:$0x1]
        %v2080 = vperm.slane %v2079, 0
        %v2081 = vmul.f32 %v2075, %v2080
        %v2082 = vmul.f32 %v2077, %v2080
        %v2083 = vadd.f32 %v2056, %v2081
        %v2084 = vadd.f32 %v2057, %v2082
        %v2085 = vsel %vm936, %v2083, 0.0
        %v2086 = vsel %vm936, %v2084, 0.0
        %v2087 = vadd.f32 %v2085, %v2086
        %v2088 = vrot.slane %v2087, 4
        %v2089 = vadd.f32 %v2087, %v2088
        %v2090 = vrot.slane %v2089, 2
        %v2091 = vadd.f32 %v2089, %v2090
        %v2092 = vrot.slane %v2091, 1
        %v2093 = vadd.f32 %v2091, %v2092
        %v2094 = vrcp.pop 16.0
        %v2095 = vmul.f32 16.0, %v2094
        %v2096 = vsub.f32 1.0, %v2095
        %v2097 = vmul.f32 %v2094, %v2096
        %v2098 = vadd.f32 %v2094, %v2097
        %vm2099 = vweird.f32 %v2094
        %v2100 = vsel %vm2099, %v2094, %v2098
        %v2101 = vmul.f32 %v2093, %v2100
        %v2102 = vld [vmem:[%s37] sm:$0xff]
        %v2103 = vld [vmem:[%s37 + $0x8] sm:$0xff]
        %v2104 = vld [vmem:[%s37 + $0x10] sm:$0xff]
        %v2105 = vld [vmem:[%s37 + $0x18] sm:$0xff]
        %v2106 = vld [vmem:[%s37 + $0x20] sm:$0xff]
        %v2107 = vld [vmem:[%s37 + $0x28] sm:$0xff]
        %v2108 = vld [vmem:[%s37 + $0x30] sm:$0xff]
        %v2109 = vld [vmem:[%s37 + $0x38] sm:$0xff]
        %v2110 = vpack.c.bf16 %v2101, %v2101
        %v2111 = vpack.c.bf16 %v2103, %v2102
        %v2112 = vpack.c.bf16 %v2105, %v2104
        %v2113 = vpack.c.bf16 %v2107, %v2106
        %v2114 = vpack.c.bf16 %v2109, %v2108
        %v2115 = vld [vmem:[%s39] sm:$0x1]
        %v2117 = vsel %vm936, %v2110, 0
        %2119 = vmatpush.bf16.msra.mxu0 0
        %2120 = vmatpush.bf16.msra.mxu0 0
        %2121 = vmatpush.bf16.msra.mxu0 0
        %2122 = vmatpush.bf16.msra.mxu0 0
        %2123 = vmatpush.bf16.msra.mxu0 %v2114
        %2124 = vmatpush.bf16.msra.mxu0 %v2113
        %2125 = vmatpush.bf16.msra.mxu0 %v2112
        %2126 = vmatpush.bf16.msra.mxu0 %v2111
        %2127 = vmatmul.bf16.gmra.mxu0 %v2117
        %v2128 = vpop.f32.mrf.mxu0
        %v2129 = vadd.f32 %v2115, %v2128
        %v2130 = vpop.f32.mrf.mxu0
        %2131 = vdwg.mxu0
        %v2132 = vmul.f32 %v2129, 0.5
        %v2133 = vmul.f32 %v2129, 0.044715
        %v2134 = vmul.f32 %v2133, %v2129
        %v2135 = vmul.f32 %v2134, %v2129
        %v2136 = vadd.f32 %v2129, %v2135
        %v2137 = vmul.f32 %v2136, 0.7978846
        %v2138 = vtanh.pop %v2137
        %v2139 = vadd.f32 %v2138, 1.0
        %v2140 = vmul.f32 %v2132, %v2139
        %v2141 = vld [vmem:[%s41] sm:$0x3]
        %v2142 = vpack.c.bf16 %v2140, %v2140
        %v2143 = vpack.c.bf16 %v2141, %v2141
        %vm2144 = vcmask 15360
        %v2146 = vsel %vm2144, %v2142, 0
        %v2149 = vsel %vm1001, %v2143, 0
        %2151 = vmatpush.bf16.msra.mxu0 0
        %2152 = vmatpush.bf16.msra.mxu0 0
        %2153 = vmatpush.bf16.msra.mxu0 0
        %2154 = vmatpush.bf16.msra.mxu0 0
        %2155 = vmatpush.bf16.msra.mxu0 0
        %2156 = vmatpush.bf16.msra.mxu0 0
        %2157 = vmatpush.bf16.msra.mxu0 0
        %2158 = vmatpush.bf16.msra.mxu0 %v2149
        %2159 = vmatmul.bf16.gmra.mxu0 %v2146
        %v2160 = vpop.f32.mrf.mxu0
        %v2161 = vadd.f32 0.0, %v2160
        %v2162 = vpop.f32.mrf.mxu0
        %2163 = vdwg.mxu0
        %v2164 = vsub.f32 0.0, %v2161
        %v2165 = vmul.f32 %v2164, 1.442695
        %v2166 = vpow.pop %v2165
        %v2167 = vadd.f32 %v2166, 1.0
        %v2168 = vrcp.pop %v2167
        %v2169 = vperm.slane %v2168, 0
        %v2170 = vmul.f32 %v2083, %v2169
        %v2171 = vmul.f32 %v2084, %v2169
        %v2172 = vadd.f32 %v996, %v2170
        %v2173 = vadd.f32 %v997, %v2171
        %v2174 = vlaneseq
        %v2175 = vshrl.u32 %v2174, 7
        %v2176 = vlaneseq
        %v2177 = vand.u32 %v2176, 127
        %v2178 = vmul.u32 %v2175, 2
        %vm2179 = vcmp.eq.s32.totalorder %v2177, %v2178
        %v2180 = vsel %vm2179, 1, 0
        %v2181 = vcvt.s32.f32 %v2180
        %v2182 = vpack.c.bf16 %v2181, %v2181
        %v2183 = vpack.c.bf16 %v2173, %v2172
        %v2185 = vsel %vm1191, %v2182, 0
        %2187 = vmatpush.bf16.msra.mxu0 0
        %2188 = vmatpush.bf16.msra.mxu0 0
        %2189 = vmatpush.bf16.msra.mxu0 0
        %2190 = vmatpush.bf16.msra.mxu0 0
        %2191 = vmatpush.bf16.msra.mxu0 0
        %2192 = vmatpush.bf16.msra.mxu0 0
        %2193 = vmatpush.bf16.msra.mxu0 0
        %2194 = vmatpush.bf16.msra.mxu0 %v2183
        %2195 = vmatmul.bf16.gmra.mxu0 %v2185
        %v2196 = vpop.f32.mrf.mxu0
        %v2197 = vadd.f32 0.0, %v2196
        %v2198 = vpop.f32.mrf.mxu0
        %2199 = vdwg.mxu0
        %v2200 = vadd.s32 %v2178, 1
        %vm2201 = vcmp.eq.s32.totalorder %v2177, %v2200
        %v2202 = vsel %vm2201, 1, 0
        %v2203 = vcvt.s32.f32 %v2202
        %v2204 = vpack.c.bf16 %v2203, %v2203
        %v2206 = vsel %vm1191, %v2204, 0
        %2208 = vmatpush.bf16.msra.mxu0 0
        %2209 = vmatpush.bf16.msra.mxu0 0
        %2210 = vmatpush.bf16.msra.mxu0 0
        %2211 = vmatpush.bf16.msra.mxu0 0
        %2212 = vmatpush.bf16.msra.mxu0 0
        %2213 = vmatpush.bf16.msra.mxu0 0
        %2214 = vmatpush.bf16.msra.mxu0 0
        %2215 = vmatpush.bf16.msra.mxu0 %v2183
        %2216 = vmatmul.bf16.gmra.mxu0 %v2206
        %v2217 = vpop.f32.mrf.mxu0
        %v2218 = vadd.f32 0.0, %v2217
        %v2219 = vpop.f32.mrf.mxu0
        %2220 = vdwg.mxu0
        %v2221 = vld [vmem:[%s49] sm:$0x1]
        %v2222 = vld [vmem:[%s43] sm:$0xff]
        %v2223 = vld [vmem:[%s43 + $0x8] sm:$0xff]
        %v2224 = vld [vmem:[%s43 + $0x10] sm:$0xff]
        %v2225 = vld [vmem:[%s43 + $0x18] sm:$0xff]
        %v2226 = vld [vmem:[%s43 + $0x20] sm:$0xff]
        %v2227 = vld [vmem:[%s43 + $0x28] sm:$0xff]
        %v2228 = vld [vmem:[%s43 + $0x30] sm:$0xff]
        %v2229 = vld [vmem:[%s43 + $0x38] sm:$0xff]
        %v2230 = vpack.c.bf16 %v1780, %v1780
        %v2231 = vpack.c.bf16 %v2223, %v2222
        %v2232 = vpack.c.bf16 %v2225, %v2224
        %v2233 = vpack.c.bf16 %v2227, %v2226
        %v2234 = vpack.c.bf16 %v2229, %v2228
        %v2236 = vsel %vm936, %v2230, 0
        %2238 = vmatpush.bf16.msra.mxu0 0
        %2239 = vmatpush.bf16.msra.mxu0 0
        %2240 = vmatpush.bf16.msra.mxu0 0
        %2241 = vmatpush.bf16.msra.mxu0 0
        %2242 = vmatpush.bf16.msra.mxu0 %v2234
        %2243 = vmatpush.bf16.msra.mxu0 %v2233
        %2244 = vmatpush.bf16.msra.mxu0 %v2232
        %2245 = vmatpush.bf16.msra.mxu0 %v2231
        %2246 = vmatmul.bf16.gmra.mxu0 %v2236
        %v2247 = vpop.f32.mrf.mxu0
        %v2248 = vadd.f32 0.0, %v2247
        %v2249 = vpop.f32.mrf.mxu0
        %2250 = vdwg.mxu0
        %v2251 = vld [vmem:[%s45] sm:$0xff]
        %v2252 = vld [vmem:[%s45 + $0x8] sm:$0xff]
        %v2253 = vld [vmem:[%s45 + $0x10] sm:$0xff]
        %v2254 = vld [vmem:[%s45 + $0x18] sm:$0xff]
        %v2255 = vld [vmem:[%s45 + $0x20] sm:$0xff]
        %v2256 = vld [vmem:[%s45 + $0x28] sm:$0xff]
        %v2257 = vld [vmem:[%s45 + $0x30] sm:$0xff]
        %v2258 = vld [vmem:[%s45 + $0x38] sm:$0xff]
        %v2259 = vpack.c.bf16 %v2197, %v2197
        %v2260 = vpack.c.bf16 %v2252, %v2251
        %v2261 = vpack.c.bf16 %v2254, %v2253
        %v2262 = vpack.c.bf16 %v2256, %v2255
        %v2263 = vpack.c.bf16 %v2258, %v2257
        %v2265 = vsel %vm936, %v2259, 0
        %2267 = vmatpush.bf16.msra.mxu0 0
        %2268 = vmatpush.bf16.msra.mxu0 0
        %2269 = vmatpush.bf16.msra.mxu0 0
        %2270 = vmatpush.bf16.msra.mxu0 0
        %2271 = vmatpush.bf16.msra.mxu0 %v2263
        %2272 = vmatpush.bf16.msra.mxu0 %v2262
        %2273 = vmatpush.bf16.msra.mxu0 %v2261
        %2274 = vmatpush.bf16.msra.mxu0 %v2260
        %2275 = vmatmul.bf16.gmra.mxu0 %v2265
        %v2276 = vpop.f32.mrf.mxu0
        %v2277 = vadd.f32 0.0, %v2276
        %v2278 = vpop.f32.mrf.mxu0
        %2279 = vdwg.mxu0
        %v2280 = vpack.c.bf16 %v2218, %v2218
        %v2282 = vsel %vm936, %v2280, 0
        %2284 = vmatpush.bf16.msra.mxu0 0
        %2285 = vmatpush.bf16.msra.mxu0 0
        %2286 = vmatpush.bf16.msra.mxu0 0
        %2287 = vmatpush.bf16.msra.mxu0 0
        %2288 = vmatpush.bf16.msra.mxu0 %v2263
        %2289 = vmatpush.bf16.msra.mxu0 %v2262
        %2290 = vmatpush.bf16.msra.mxu0 %v2261
        %2291 = vmatpush.bf16.msra.mxu0 %v2260
        %2292 = vmatmul.bf16.gmra.mxu0 %v2282
        %v2293 = vpop.f32.mrf.mxu0
        %v2294 = vadd.f32 0.0, %v2293
        %v2295 = vpop.f32.mrf.mxu0
        %2296 = vdwg.mxu0
        %v2297 = vpack.c.bf16 %v2248, %v2248
        %v2298 = vpack.c.bf16 %v2277, %v2277
        %v2300 = vsel %vm1191, %v2297, 0
        %v2303 = vsel %vm1191, %v2298, 0
        %2305 = vmatpush.bf16.xpose.msra.mxu0 0
        %2306 = vmatpush.bf16.xpose.msra.mxu0 0
        %2307 = vmatpush.bf16.xpose.msra.mxu0 0
        %2308 = vmatpush.bf16.xpose.msra.mxu0 0
        %2309 = vmatpush.bf16.xpose.msra.mxu0 0
        %2310 = vmatpush.bf16.xpose.msra.mxu0 0
        %2311 = vmatpush.bf16.xpose.msra.mxu0 0
        %2312 = vmatpush.bf16.xpose.msra.mxu0 %v2303
        %2313 = vmatmul.bf16.gmra.mxu0 %v2300
        %v2314 = vpop.f32.mrf.mxu0
        %v2315 = vadd.f32 0.0, %v2314
        %v2316 = vpop.f32.mrf.mxu0
        %2317 = vdwg.mxu0
        %v2318 = vmul.f32 %v2315, 0.25
        %vm2319 = vcmask 57344
        %v2320 = vsel %vm2319, %v2318, -inf
        %2321 = vmax.xlane.f32.xlu0 %v2320
        %v2322 = vpop.xlane.xlu0 %2321
        %v2323 = vsub.f32 %v2318, %v2322
        %v2324 = vmul.f32 %v2323, 1.442695
        %v2325 = vpow.pop %v2324
        %v2326 = vsel %vm2319, %v2325, 0.0
        %2327 = vadd.xlane.f32.xlu0 %v2326
        %v2328 = vpop.xlane.xlu0 %2327
        %v2329 = vrcp.pop %v2328
        %v2330 = vmul.f32 %v2325, %v2329
        %v2331 = vpack.c.bf16 %v2330, %v2330
        %v2332 = vpack.c.bf16 %v2294, %v2294
        %vm2333 = vcmask 64512
        %v2335 = vsel %vm2333, %v2331, 0
        %vm2337 = vcmask 1043456
        %v2339 = vsel %vm2337, %v2332, 0
        %2341 = vmatpush.bf16.msra.mxu0 0
        %2342 = vmatpush.bf16.msra.mxu0 0
        %2343 = vmatpush.bf16.msra.mxu0 0
        %2344 = vmatpush.bf16.msra.mxu0 0
        %2345 = vmatpush.bf16.msra.mxu0 0
        %2346 = vmatpush.bf16.msra.mxu0 0
        %2347 = vmatpush.bf16.msra.mxu0 0
        %2348 = vmatpush.bf16.msra.mxu0 %v2339
        %2349 = vmatmul.bf16.gmra.mxu0 %v2335
        %v2350 = vpop.f32.mrf.mxu0
        %v2351 = vadd.f32 0.0, %v2350
        %v2352 = vpop.f32.mrf.mxu0
        %2353 = vdwg.mxu0
        %v2354 = vld [vmem:[%s47] sm:$0xff]
        %v2355 = vld [vmem:[%s47 + $0x8] sm:$0xff]
        %v2356 = vpack.c.bf16 %v2351, %v2351
        %v2357 = vpack.c.bf16 %v2355, %v2354
        %v2359 = vsel %vm1191, %v2356, 0
        %2361 = vmatpush.bf16.msra.mxu0 0
        %2362 = vmatpush.bf16.msra.mxu0 0
        %2363 = vmatpush.bf16.msra.mxu0 0
        %2364 = vmatpush.bf16.msra.mxu0 0
        %2365 = vmatpush.bf16.msra.mxu0 0
        %2366 = vmatpush.bf16.msra.mxu0 0
        %2367 = vmatpush.bf16.msra.mxu0 0
        %2368 = vmatpush.bf16.msra.mxu0 %v2357
        %2369 = vmatmul.bf16.gmra.mxu0 %v2359
        %v2370 = vpop.f32.mrf.mxu0
        %v2371 = vadd.f32 0.0, %v2370
        %v2372 = vpop.f32.mrf.mxu0
        %2373 = vdwg.mxu0
        %v2374 = vadd.f32 %v2221, %v2371
        %s2375 = scalar_lea.vmem %s43, 64
        %v2376 = vld [vmem:[%s2375] sm:$0xff]
        %v2377 = vld [vmem:[%s2375 + $0x8] sm:$0xff]
        %v2378 = vld [vmem:[%s2375 + $0x10] sm:$0xff]
        %v2379 = vld [vmem:[%s2375 + $0x18] sm:$0xff]
        %v2380 = vld [vmem:[%s2375 + $0x20] sm:$0xff]
        %v2381 = vld [vmem:[%s2375 + $0x28] sm:$0xff]
        %v2382 = vld [vmem:[%s2375 + $0x30] sm:$0xff]
        %v2383 = vld [vmem:[%s2375 + $0x38] sm:$0xff]
        %v2384 = vpack.c.bf16 %v2377, %v2376
        %v2385 = vpack.c.bf16 %v2379, %v2378
        %v2386 = vpack.c.bf16 %v2381, %v2380
        %v2387 = vpack.c.bf16 %v2383, %v2382
        %2388 = vmatpush.bf16.msra.mxu0 0
        %2389 = vmatpush.bf16.msra.mxu0 0
        %2390 = vmatpush.bf16.msra.mxu0 0
        %2391 = vmatpush.bf16.msra.mxu0 0
        %2392 = vmatpush.bf16.msra.mxu0 %v2387
        %2393 = vmatpush.bf16.msra.mxu0 %v2386
        %2394 = vmatpush.bf16.msra.mxu0 %v2385
        %2395 = vmatpush.bf16.msra.mxu0 %v2384
        %2396 = vmatmul.bf16.gmra.mxu0 %v2236
        %v2397 = vpop.f32.mrf.mxu0
        %v2398 = vadd.f32 0.0, %v2397
        %v2399 = vpop.f32.mrf.mxu0
        %2400 = vdwg.mxu0
        %s2401 = scalar_lea.vmem %s45, 64
        %v2402 = vld [vmem:[%s2401] sm:$0xff]
        %v2403 = vld [vmem:[%s2401 + $0x8] sm:$0xff]
        %v2404 = vld [vmem:[%s2401 + $0x10] sm:$0xff]
        %v2405 = vld [vmem:[%s2401 + $0x18] sm:$0xff]
        %v2406 = vld [vmem:[%s2401 + $0x20] sm:$0xff]
        %v2407 = vld [vmem:[%s2401 + $0x28] sm:$0xff]
        %v2408 = vld [vmem:[%s2401 + $0x30] sm:$0xff]
        %v2409 = vld [vmem:[%s2401 + $0x38] sm:$0xff]
        %v2410 = vpack.c.bf16 %v2403, %v2402
        %v2411 = vpack.c.bf16 %v2405, %v2404
        %v2412 = vpack.c.bf16 %v2407, %v2406
        %v2413 = vpack.c.bf16 %v2409, %v2408
        %2414 = vmatpush.bf16.msra.mxu0 0
        %2415 = vmatpush.bf16.msra.mxu0 0
        %2416 = vmatpush.bf16.msra.mxu0 0
        %2417 = vmatpush.bf16.msra.mxu0 0
        %2418 = vmatpush.bf16.msra.mxu0 %v2413
        %2419 = vmatpush.bf16.msra.mxu0 %v2412
        %2420 = vmatpush.bf16.msra.mxu0 %v2411
        %2421 = vmatpush.bf16.msra.mxu0 %v2410
        %2422 = vmatmul.bf16.gmra.mxu0 %v2265
        %v2423 = vpop.f32.mrf.mxu0
        %v2424 = vadd.f32 0.0, %v2423
        %v2425 = vpop.f32.mrf.mxu0
        %2426 = vdwg.mxu0
        %2427 = vmatpush.bf16.msra.mxu0 0
        %2428 = vmatpush.bf16.msra.mxu0 0
        %2429 = vmatpush.bf16.msra.mxu0 0
        %2430 = vmatpush.bf16.msra.mxu0 0
        %2431 = vmatpush.bf16.msra.mxu0 %v2413
        %2432 = vmatpush.bf16.msra.mxu0 %v2412
        %2433 = vmatpush.bf16.msra.mxu0 %v2411
        %2434 = vmatpush.bf16.msra.mxu0 %v2410
        %2435 = vmatmul.bf16.gmra.mxu0 %v2282
        %v2436 = vpop.f32.mrf.mxu0
        %v2437 = vadd.f32 0.0, %v2436
        %v2438 = vpop.f32.mrf.mxu0
        %2439 = vdwg.mxu0
        %v2440 = vpack.c.bf16 %v2398, %v2398
        %v2441 = vpack.c.bf16 %v2424, %v2424
        %v2443 = vsel %vm1191, %v2440, 0
        %v2446 = vsel %vm1191, %v2441, 0
        %2448 = vmatpush.bf16.xpose.msra.mxu0 0
        %2449 = vmatpush.bf16.xpose.msra.mxu0 0
        %2450 = vmatpush.bf16.xpose.msra.mxu0 0
        %2451 = vmatpush.bf16.xpose.msra.mxu0 0
        %2452 = vmatpush.bf16.xpose.msra.mxu0 0
        %2453 = vmatpush.bf16.xpose.msra.mxu0 0
        %2454 = vmatpush.bf16.xpose.msra.mxu0 0
        %2455 = vmatpush.bf16.xpose.msra.mxu0 %v2446
        %2456 = vmatmul.bf16.gmra.mxu0 %v2443
        %v2457 = vpop.f32.mrf.mxu0
        %v2458 = vadd.f32 0.0, %v2457
        %v2459 = vpop.f32.mrf.mxu0
        %2460 = vdwg.mxu0
        %v2461 = vmul.f32 %v2458, 0.25
        %v2462 = vsel %vm2319, %v2461, -inf
        %2463 = vmax.xlane.f32.xlu0 %v2462
        %v2464 = vpop.xlane.xlu0 %2463
        %v2465 = vsub.f32 %v2461, %v2464
        %v2466 = vmul.f32 %v2465, 1.442695
        %v2467 = vpow.pop %v2466
        %v2468 = vsel %vm2319, %v2467, 0.0
        %2469 = vadd.xlane.f32.xlu0 %v2468
        %v2470 = vpop.xlane.xlu0 %2469
        %v2471 = vrcp.pop %v2470
        %v2472 = vmul.f32 %v2467, %v2471
        %v2473 = vpack.c.bf16 %v2472, %v2472
        %v2474 = vpack.c.bf16 %v2437, %v2437
        %v2476 = vsel %vm2333, %v2473, 0
        %v2479 = vsel %vm2337, %v2474, 0
        %2481 = vmatpush.bf16.msra.mxu0 0
        %2482 = vmatpush.bf16.msra.mxu0 0
        %2483 = vmatpush.bf16.msra.mxu0 0
        %2484 = vmatpush.bf16.msra.mxu0 0
        %2485 = vmatpush.bf16.msra.mxu0 0
        %2486 = vmatpush.bf16.msra.mxu0 0
        %2487 = vmatpush.bf16.msra.mxu0 0
        %2488 = vmatpush.bf16.msra.mxu0 %v2479
        %2489 = vmatmul.bf16.gmra.mxu0 %v2476
        %v2490 = vpop.f32.mrf.mxu0
        %v2491 = vadd.f32 0.0, %v2490
        %v2492 = vpop.f32.mrf.mxu0
        %2493 = vdwg.mxu0
        %s2494 = scalar_lea.vmem %s47, 16
        %v2495 = vld [vmem:[%s2494] sm:$0xff]
        %v2496 = vld [vmem:[%s2494 + $0x8] sm:$0xff]
        %v2497 = vpack.c.bf16 %v2491, %v2491
        %v2498 = vpack.c.bf16 %v2496, %v2495
        %v2500 = vsel %vm1191, %v2497, 0
        %2502 = vmatpush.bf16.msra.mxu0 0
        %2503 = vmatpush.bf16.msra.mxu0 0
        %2504 = vmatpush.bf16.msra.mxu0 0
        %2505 = vmatpush.bf16.msra.mxu0 0
        %2506 = vmatpush.bf16.msra.mxu0 0
        %2507 = vmatpush.bf16.msra.mxu0 0
        %2508 = vmatpush.bf16.msra.mxu0 0
        %2509 = vmatpush.bf16.msra.mxu0 %v2498
        %2510 = vmatmul.bf16.gmra.mxu0 %v2500
        %v2511 = vpop.f32.mrf.mxu0
        %v2512 = vadd.f32 0.0, %v2511
        %v2513 = vpop.f32.mrf.mxu0
        %2514 = vdwg.mxu0
        %v2515 = vadd.f32 %v2374, %v2512
        %s2516 = scalar_lea.vmem %s43, 128
        %v2517 = vld [vmem:[%s2516] sm:$0xff]
        %v2518 = vld [vmem:[%s2516 + $0x8] sm:$0xff]
        %v2519 = vld [vmem:[%s2516 + $0x10] sm:$0xff]
        %v2520 = vld [vmem:[%s2516 + $0x18] sm:$0xff]
        %v2521 = vld [vmem:[%s2516 + $0x20] sm:$0xff]
        %v2522 = vld [vmem:[%s2516 + $0x28] sm:$0xff]
        %v2523 = vld [vmem:[%s2516 + $0x30] sm:$0xff]
        %v2524 = vld [vmem:[%s2516 + $0x38] sm:$0xff]
        %v2525 = vpack.c.bf16 %v2518, %v2517
        %v2526 = vpack.c.bf16 %v2520, %v2519
        %v2527 = vpack.c.bf16 %v2522, %v2521
        %v2528 = vpack.c.bf16 %v2524, %v2523
        %2529 = vmatpush.bf16.msra.mxu0 0
        %2530 = vmatpush.bf16.msra.mxu0 0
        %2531 = vmatpush.bf16.msra.mxu0 0
        %2532 = vmatpush.bf16.msra.mxu0 0
        %2533 = vmatpush.bf16.msra.mxu0 %v2528
        %2534 = vmatpush.bf16.msra.mxu0 %v2527
        %2535 = vmatpush.bf16.msra.mxu0 %v2526
        %2536 = vmatpush.bf16.msra.mxu0 %v2525
        %2537 = vmatmul.bf16.gmra.mxu0 %v2236
        %v2538 = vpop.f32.mrf.mxu0
        %v2539 = vadd.f32 0.0, %v2538
        %v2540 = vpop.f32.mrf.mxu0
        %2541 = vdwg.mxu0
        %s2542 = scalar_lea.vmem %s45, 128
        %v2543 = vld [vmem:[%s2542] sm:$0xff]
        %v2544 = vld [vmem:[%s2542 + $0x8] sm:$0xff]
        %v2545 = vld [vmem:[%s2542 + $0x10] sm:$0xff]
        %v2546 = vld [vmem:[%s2542 + $0x18] sm:$0xff]
        %v2547 = vld [vmem:[%s2542 + $0x20] sm:$0xff]
        %v2548 = vld [vmem:[%s2542 + $0x28] sm:$0xff]
        %v2549 = vld [vmem:[%s2542 + $0x30] sm:$0xff]
        %v2550 = vld [vmem:[%s2542 + $0x38] sm:$0xff]
        %v2551 = vpack.c.bf16 %v2544, %v2543
        %v2552 = vpack.c.bf16 %v2546, %v2545
        %v2553 = vpack.c.bf16 %v2548, %v2547
        %v2554 = vpack.c.bf16 %v2550, %v2549
        %2555 = vmatpush.bf16.msra.mxu0 0
        %2556 = vmatpush.bf16.msra.mxu0 0
        %2557 = vmatpush.bf16.msra.mxu0 0
        %2558 = vmatpush.bf16.msra.mxu0 0
        %2559 = vmatpush.bf16.msra.mxu0 %v2554
        %2560 = vmatpush.bf16.msra.mxu0 %v2553
        %2561 = vmatpush.bf16.msra.mxu0 %v2552
        %2562 = vmatpush.bf16.msra.mxu0 %v2551
        %2563 = vmatmul.bf16.gmra.mxu0 %v2265
        %v2564 = vpop.f32.mrf.mxu0
        %v2565 = vadd.f32 0.0, %v2564
        %v2566 = vpop.f32.mrf.mxu0
        %2567 = vdwg.mxu0
        %2568 = vmatpush.bf16.msra.mxu0 0
        %2569 = vmatpush.bf16.msra.mxu0 0
        %2570 = vmatpush.bf16.msra.mxu0 0
        %2571 = vmatpush.bf16.msra.mxu0 0
        %2572 = vmatpush.bf16.msra.mxu0 %v2554
        %2573 = vmatpush.bf16.msra.mxu0 %v2553
        %2574 = vmatpush.bf16.msra.mxu0 %v2552
        %2575 = vmatpush.bf16.msra.mxu0 %v2551
        %2576 = vmatmul.bf16.gmra.mxu0 %v2282
        %v2577 = vpop.f32.mrf.mxu0
        %v2578 = vadd.f32 0.0, %v2577
        %v2579 = vpop.f32.mrf.mxu0
        %2580 = vdwg.mxu0
        %v2581 = vpack.c.bf16 %v2539, %v2539
        %v2582 = vpack.c.bf16 %v2565, %v2565
        %v2584 = vsel %vm1191, %v2581, 0
        %v2587 = vsel %vm1191, %v2582, 0
        %2589 = vmatpush.bf16.xpose.msra.mxu0 0
        %2590 = vmatpush.bf16.xpose.msra.mxu0 0
        %2591 = vmatpush.bf16.xpose.msra.mxu0 0
        %2592 = vmatpush.bf16.xpose.msra.mxu0 0
        %2593 = vmatpush.bf16.xpose.msra.mxu0 0
        %2594 = vmatpush.bf16.xpose.msra.mxu0 0
        %2595 = vmatpush.bf16.xpose.msra.mxu0 0
        %2596 = vmatpush.bf16.xpose.msra.mxu0 %v2587
        %2597 = vmatmul.bf16.gmra.mxu0 %v2584
        %v2598 = vpop.f32.mrf.mxu0
        %v2599 = vadd.f32 0.0, %v2598
        %v2600 = vpop.f32.mrf.mxu0
        %2601 = vdwg.mxu0
        %v2602 = vmul.f32 %v2599, 0.25
        %v2603 = vsel %vm2319, %v2602, -inf
        %2604 = vmax.xlane.f32.xlu0 %v2603
        %v2605 = vpop.xlane.xlu0 %2604
        %v2606 = vsub.f32 %v2602, %v2605
        %v2607 = vmul.f32 %v2606, 1.442695
        %v2608 = vpow.pop %v2607
        %v2609 = vsel %vm2319, %v2608, 0.0
        %2610 = vadd.xlane.f32.xlu0 %v2609
        %v2611 = vpop.xlane.xlu0 %2610
        %v2612 = vrcp.pop %v2611
        %v2613 = vmul.f32 %v2608, %v2612
        %v2614 = vpack.c.bf16 %v2613, %v2613
        %v2615 = vpack.c.bf16 %v2578, %v2578
        %v2617 = vsel %vm2333, %v2614, 0
        %v2620 = vsel %vm2337, %v2615, 0
        %2622 = vmatpush.bf16.msra.mxu0 0
        %2623 = vmatpush.bf16.msra.mxu0 0
        %2624 = vmatpush.bf16.msra.mxu0 0
        %2625 = vmatpush.bf16.msra.mxu0 0
        %2626 = vmatpush.bf16.msra.mxu0 0
        %2627 = vmatpush.bf16.msra.mxu0 0
        %2628 = vmatpush.bf16.msra.mxu0 0
        %2629 = vmatpush.bf16.msra.mxu0 %v2620
        %2630 = vmatmul.bf16.gmra.mxu0 %v2617
        %v2631 = vpop.f32.mrf.mxu0
        %v2632 = vadd.f32 0.0, %v2631
        %v2633 = vpop.f32.mrf.mxu0
        %2634 = vdwg.mxu0
        %s2635 = scalar_lea.vmem %s47, 32
        %v2636 = vld [vmem:[%s2635] sm:$0xff]
        %v2637 = vld [vmem:[%s2635 + $0x8] sm:$0xff]
        %v2638 = vpack.c.bf16 %v2632, %v2632
        %v2639 = vpack.c.bf16 %v2637, %v2636
        %v2641 = vsel %vm1191, %v2638, 0
        %2643 = vmatpush.bf16.msra.mxu0 0
        %2644 = vmatpush.bf16.msra.mxu0 0
        %2645 = vmatpush.bf16.msra.mxu0 0
        %2646 = vmatpush.bf16.msra.mxu0 0
        %2647 = vmatpush.bf16.msra.mxu0 0
        %2648 = vmatpush.bf16.msra.mxu0 0
        %2649 = vmatpush.bf16.msra.mxu0 0
        %2650 = vmatpush.bf16.msra.mxu0 %v2639
        %2651 = vmatmul.bf16.gmra.mxu0 %v2641
        %v2652 = vpop.f32.mrf.mxu0
        %v2653 = vadd.f32 0.0, %v2652
        %v2654 = vpop.f32.mrf.mxu0
        %2655 = vdwg.mxu0
        %v2656 = vadd.f32 %v2515, %v2653
        %s2657 = scalar_lea.vmem %s43, 192
        %v2658 = vld [vmem:[%s2657] sm:$0xff]
        %v2659 = vld [vmem:[%s2657 + $0x8] sm:$0xff]
        %v2660 = vld [vmem:[%s2657 + $0x10] sm:$0xff]
        %v2661 = vld [vmem:[%s2657 + $0x18] sm:$0xff]
        %v2662 = vld [vmem:[%s2657 + $0x20] sm:$0xff]
        %v2663 = vld [vmem:[%s2657 + $0x28] sm:$0xff]
        %v2664 = vld [vmem:[%s2657 + $0x30] sm:$0xff]
        %v2665 = vld [vmem:[%s2657 + $0x38] sm:$0xff]
        %v2666 = vpack.c.bf16 %v2659, %v2658
        %v2667 = vpack.c.bf16 %v2661, %v2660
        %v2668 = vpack.c.bf16 %v2663, %v2662
        %v2669 = vpack.c.bf16 %v2665, %v2664
        %2670 = vmatpush.bf16.msra.mxu0 0
        %2671 = vmatpush.bf16.msra.mxu0 0
        %2672 = vmatpush.bf16.msra.mxu0 0
        %2673 = vmatpush.bf16.msra.mxu0 0
        %2674 = vmatpush.bf16.msra.mxu0 %v2669
        %2675 = vmatpush.bf16.msra.mxu0 %v2668
        %2676 = vmatpush.bf16.msra.mxu0 %v2667
        %2677 = vmatpush.bf16.msra.mxu0 %v2666
        %2678 = vmatmul.bf16.gmra.mxu0 %v2236
        %v2679 = vpop.f32.mrf.mxu0
        %v2680 = vadd.f32 0.0, %v2679
        %v2681 = vpop.f32.mrf.mxu0
        %2682 = vdwg.mxu0
        %s2683 = scalar_lea.vmem %s45, 192
        %v2684 = vld [vmem:[%s2683] sm:$0xff]
        %v2685 = vld [vmem:[%s2683 + $0x8] sm:$0xff]
        %v2686 = vld [vmem:[%s2683 + $0x10] sm:$0xff]
        %v2687 = vld [vmem:[%s2683 + $0x18] sm:$0xff]
        %v2688 = vld [vmem:[%s2683 + $0x20] sm:$0xff]
        %v2689 = vld [vmem:[%s2683 + $0x28] sm:$0xff]
        %v2690 = vld [vmem:[%s2683 + $0x30] sm:$0xff]
        %v2691 = vld [vmem:[%s2683 + $0x38] sm:$0xff]
        %v2692 = vpack.c.bf16 %v2685, %v2684
        %v2693 = vpack.c.bf16 %v2687, %v2686
        %v2694 = vpack.c.bf16 %v2689, %v2688
        %v2695 = vpack.c.bf16 %v2691, %v2690
        %2696 = vmatpush.bf16.msra.mxu0 0
        %2697 = vmatpush.bf16.msra.mxu0 0
        %2698 = vmatpush.bf16.msra.mxu0 0
        %2699 = vmatpush.bf16.msra.mxu0 0
        %2700 = vmatpush.bf16.msra.mxu0 %v2695
        %2701 = vmatpush.bf16.msra.mxu0 %v2694
        %2702 = vmatpush.bf16.msra.mxu0 %v2693
        %2703 = vmatpush.bf16.msra.mxu0 %v2692
        %2704 = vmatmul.bf16.gmra.mxu0 %v2265
        %v2705 = vpop.f32.mrf.mxu0
        %v2706 = vadd.f32 0.0, %v2705
        %v2707 = vpop.f32.mrf.mxu0
        %2708 = vdwg.mxu0
        %2709 = vmatpush.bf16.msra.mxu0 0
        %2710 = vmatpush.bf16.msra.mxu0 0
        %2711 = vmatpush.bf16.msra.mxu0 0
        %2712 = vmatpush.bf16.msra.mxu0 0
        %2713 = vmatpush.bf16.msra.mxu0 %v2695
        %2714 = vmatpush.bf16.msra.mxu0 %v2694
        %2715 = vmatpush.bf16.msra.mxu0 %v2693
        %2716 = vmatpush.bf16.msra.mxu0 %v2692
        %2717 = vmatmul.bf16.gmra.mxu0 %v2282
        %v2718 = vpop.f32.mrf.mxu0
        %v2719 = vadd.f32 0.0, %v2718
        %v2720 = vpop.f32.mrf.mxu0
        %2721 = vdwg.mxu0
        %v2722 = vpack.c.bf16 %v2680, %v2680
        %v2723 = vpack.c.bf16 %v2706, %v2706
        %v2725 = vsel %vm1191, %v2722, 0
        %v2728 = vsel %vm1191, %v2723, 0
        %2730 = vmatpush.bf16.xpose.msra.mxu0 0
        %2731 = vmatpush.bf16.xpose.msra.mxu0 0
        %2732 = vmatpush.bf16.xpose.msra.mxu0 0
        %2733 = vmatpush.bf16.xpose.msra.mxu0 0
        %2734 = vmatpush.bf16.xpose.msra.mxu0 0
        %2735 = vmatpush.bf16.xpose.msra.mxu0 0
        %2736 = vmatpush.bf16.xpose.msra.mxu0 0
        %2737 = vmatpush.bf16.xpose.msra.mxu0 %v2728
        %2738 = vmatmul.bf16.gmra.mxu0 %v2725
        %v2739 = vpop.f32.mrf.mxu0
        %v2740 = vadd.f32 0.0, %v2739
        %v2741 = vpop.f32.mrf.mxu0
        %2742 = vdwg.mxu0
        %v2743 = vmul.f32 %v2740, 0.25
        %v2744 = vsel %vm2319, %v2743, -inf
        %2745 = vmax.xlane.f32.xlu0 %v2744
        %v2746 = vpop.xlane.xlu0 %2745
        %v2747 = vsub.f32 %v2743, %v2746
        %v2748 = vmul.f32 %v2747, 1.442695
        %v2749 = vpow.pop %v2748
        %v2750 = vsel %vm2319, %v2749, 0.0
        %2751 = vadd.xlane.f32.xlu0 %v2750
        %v2752 = vpop.xlane.xlu0 %2751
        %v2753 = vrcp.pop %v2752
        %v2754 = vmul.f32 %v2749, %v2753
        %v2755 = vpack.c.bf16 %v2754, %v2754
        %v2756 = vpack.c.bf16 %v2719, %v2719
        %v2758 = vsel %vm2333, %v2755, 0
        %v2761 = vsel %vm2337, %v2756, 0
        %2763 = vmatpush.bf16.msra.mxu0 0
        %2764 = vmatpush.bf16.msra.mxu0 0
        %2765 = vmatpush.bf16.msra.mxu0 0
        %2766 = vmatpush.bf16.msra.mxu0 0
        %2767 = vmatpush.bf16.msra.mxu0 0
        %2768 = vmatpush.bf16.msra.mxu0 0
        %2769 = vmatpush.bf16.msra.mxu0 0
        %2770 = vmatpush.bf16.msra.mxu0 %v2761
        %2771 = vmatmul.bf16.gmra.mxu0 %v2758
        %v2772 = vpop.f32.mrf.mxu0
        %v2773 = vadd.f32 0.0, %v2772
        %v2774 = vpop.f32.mrf.mxu0
        %2775 = vdwg.mxu0
        %s2776 = scalar_lea.vmem %s47, 48
        %v2777 = vld [vmem:[%s2776] sm:$0xff]
        %v2778 = vld [vmem:[%s2776 + $0x8] sm:$0xff]
        %v2779 = vpack.c.bf16 %v2773, %v2773
        %v2780 = vpack.c.bf16 %v2778, %v2777
        %v2782 = vsel %vm1191, %v2779, 0
        %2784 = vmatpush.bf16.msra.mxu0 0
        %2785 = vmatpush.bf16.msra.mxu0 0
        %2786 = vmatpush.bf16.msra.mxu0 0
        %2787 = vmatpush.bf16.msra.mxu0 0
        %2788 = vmatpush.bf16.msra.mxu0 0
        %2789 = vmatpush.bf16.msra.mxu0 0
        %2790 = vmatpush.bf16.msra.mxu0 0
        %2791 = vmatpush.bf16.msra.mxu0 %v2780
        %2792 = vmatmul.bf16.gmra.mxu0 %v2782
        %v2793 = vpop.f32.mrf.mxu0
        %v2794 = vadd.f32 0.0, %v2793
        %v2795 = vpop.f32.mrf.mxu0
        %2796 = vdwg.mxu0
        %v2797 = vadd.f32 %v2656, %v2794
        %v2798 = vld [vmem:[%s51] sm:$0x1]
        %v2799 = vld [vmem:[%s53] sm:$0x1]
        %v2800 = vsel %vm1017, %v2797, 0.0
        %2801 = vadd.xlane.f32.xlu0 %v2800
        %v2802 = vpop.xlane.xlu0 %2801
        %v2803 = vmul.f32 %v2802, %v949
        %v2804 = vsub.f32 %v2797, %v2803
        %v2805 = vmul.f32 %v2804, %v2804
        %v2806 = vsel %vm1017, %v2805, 0.0
        %2807 = vadd.xlane.f32.xlu0 %v2806
        %v2808 = vpop.xlane.xlu0 %2807
        %v2809 = vmul.f32 %v2808, %v949
        %v2810 = vadd.f32 %v2809, 1e-05
        %v2811 = vrsqrt.pop %v2810
        %v2812 = vmul.f32 %v2811, %v2810
        %v2813 = vmul.f32 %v2812, %v2811
        %v2814 = vmul.f32 0.5, %v2813
        %v2815 = vsub.f32 1.5, %v2814
        %v2816 = vmul.f32 %v2811, %v2815
        %vm2817 = vweird.f32 %v2810
        %vm2818 = vweird.f32 %v2811
        %vm2819 = vmor %vm2817, %vm2818
        %v2820 = vsel %vm2819, %v2811, %v2816
        %v2821 = vmul.f32 %v2804, %v2820
        %v2822 = vmul.f32 %v2821, %v2798
        %v2823 = vadd.f32 %v2822, %v2799
        %v2824 = vld [vmem:[%s55] sm:$0xff]
        %v2825 = vld [vmem:[%s55 + $0x8] sm:$0xff]
        %v2826 = vld [vmem:[%s55 + $0x10] sm:$0xff]
        %v2827 = vld [vmem:[%s55 + $0x18] sm:$0xff]
        %v2828 = vld [vmem:[%s55 + $0x20] sm:$0xff]
        %v2829 = vld [vmem:[%s55 + $0x28] sm:$0xff]
        %v2830 = vld [vmem:[%s55 + $0x30] sm:$0xff]
        %v2831 = vld [vmem:[%s55 + $0x38] sm:$0xff]
        %v2832 = vpack.c.bf16 %v2823, %v2823
        %v2833 = vpack.c.bf16 %v2825, %v2824
        %v2834 = vpack.c.bf16 %v2827, %v2826
        %v2835 = vpack.c.bf16 %v2829, %v2828
        %v2836 = vpack.c.bf16 %v2831, %v2830
        %v2837 = vld [vmem:[%s57] sm:$0x1]
        %v2839 = vsel %vm936, %v2832, 0
        %2841 = vmatpush.bf16.msra.mxu0 0
        %2842 = vmatpush.bf16.msra.mxu0 0
        %2843 = vmatpush.bf16.msra.mxu0 0
        %2844 = vmatpush.bf16.msra.mxu0 0
        %2845 = vmatpush.bf16.msra.mxu0 %v2836
        %2846 = vmatpush.bf16.msra.mxu0 %v2835
        %2847 = vmatpush.bf16.msra.mxu0 %v2834
        %2848 = vmatpush.bf16.msra.mxu0 %v2833
        %2849 = vmatmul.bf16.gmra.mxu0 %v2839
        %v2850 = vpop.f32.mrf.mxu0
        %v2851 = vadd.f32 %v2837, %v2850
        %v2852 = vpop.f32.mrf.mxu0
        %2853 = vdwg.mxu0
        %vm2854 = vcmask 8192
        %2855 = vst.msk [vmem:[%s894] sm:$0x1] %vm2854, %v2851
        %s2856 = sand.u32 %s695, 1
        %s2857 = scalar_lea.sflag [#allocation3], %s2856
        %s2858 = sand.u32 %s695, 1
        %s2859 = scalar_lea.vmem [#allocation2], %s2858
        // Predicated region
        $region137: #{nciemil_forward.1} parent=135 // pred_check
          %p2860 = pneg %p705
        $region138: #{nciemil_forward.1} parent=135 // pred_check_branch
          %2862 = sbr.rel (%p2860) target = $region140
        $region139: #{nciemil_forward.1} parent=135 // pred_region
          %2864 = vsyncadd %s2857, 0
          %s2865 = scalar_lea.hbm %s59, %s73
          %s2867 = sshll.u32 %s2859, 4
          %s2868 = int_to_ptr.vmem [resolvable:$true] %s2867
          %s2869 = sshll.u32 %s2865, 4
          %s2870 = int_to_ptr.hbm [resolvable:$true] %s2869
          %2872 = dma.vmem_to_hbm [thread:$0]  %s2868, 16, %s2870, %s2857
        $region140: #{nciemil_forward.1} parent=135 // pred_fallthru
          _
      $region136: #{nciemil_forward.1} parent=5 // pred_fallthru
        _
      %p2873 = scmp.le.s32.totalorder 2, %s68
      // Predicated region
      $region141: #{nciemil_forward.1} parent=5 // pred_check
        %p2874 = pneg %p2873
      $region142: #{nciemil_forward.1} parent=5 // pred_check_branch
        %2876 = sbr.rel (%p2874) target = $region144
      $region143: #{nciemil_forward.1} parent=5 // pred_region
        %s2877 = ssub.s32 %s68, 2
        // Predicated region
        $region145: #{nciemil_forward.1} parent=143 // pred_check
          %p2878 = pneg %p711
        $region146: #{nciemil_forward.1} parent=143 // pred_check_branch
          %2880 = sbr.rel (%p2878) target = $region148
        $region147: #{nciemil_forward.1} parent=143 // pred_region
          %s2881 = sand.u32 %s696, 1
          %s2882 = scalar_lea.sflag [#allocation3], %s2881
          %s2883 = sand.u32 %s696, 1
          %s2884 = scalar_lea.vmem [#allocation2], %s2883
          %2886 = dma.done %s2882, 16
        $region148: #{nciemil_forward.1} parent=143 // pred_fallthru
          _
      $region144: #{nciemil_forward.1} parent=5 // pred_fallthru
        _
    $region6: #{nciemil_forward.1} parent=1 // loop_footer
      %s72 = sadd.s32 1, %s68
    $region7: #{nciemil_forward.1} parent=1 // loop_footer_branch
      %67 = sbr.rel target = $region3
    $region8: #{nciemil_forward.1} parent=1 // loop_exit
      _
    %2887 = vsyncpa [#allocation3], 1
    %s2888 = scalar_lea.sflag [#allocation3], 1
    %2889 = vsyncpa %s2888, 1

</llo_original>
